<compile_context>
chip_gen: v6e
topology: v6e:2x2x1
jax: 0.10.0
libtpu: 0.0.40
codegen_flags: <defaults>
</compile_context>

<pallas_src>
import functools
import math

import jax
import jax.numpy as jnp
from jax.experimental import pallas as pl
from jax.experimental.pallas import tpu as pltpu

# ---- small config, structurally consistent with GPT2Config ----
VOCAB = 512
N_POS = 32
N_EMBD = 32
N_LAYER = 2
N_HEAD = 4
HEAD_DIM = N_EMBD // N_HEAD
LN_EPS = 1e-5

BATCH = 2
SEQ = 8


def _layernorm(x, g, b, eps):
    # torch.nn.LayerNorm: biased variance over the last dim (f32 math)
    mu = jnp.mean(x, axis=-1, keepdims=True)
    var = jnp.mean((x - mu) ** 2, axis=-1, keepdims=True)
    return (x - mu) * jax.lax.rsqrt(var + eps) * g + b


def _gelu_tanh(x):
    # tanh ("gelu_new") form -> transcendental goes to the EUP slot.
    # TODO(synk): the reference nn.Module uses F.gelu (exact erf); the tanh
    # form matches HF GPT-2 and differs from erf by O(1e-3).
    c = math.sqrt(2.0 / math.pi)
    return 0.5 * x * (1.0 + jnp.tanh(c * (x + 0.044715 * (x * x * x))))


def gpt2_fused_kernel(ids_ref, wte_ref, wpe_ref,
                      ln1w_ref, ln1b_ref, wqkv_ref, bqkv_ref, wo_ref, bo_ref,
                      ln2w_ref, ln2b_ref, wfc_ref, bfc_ref, wpr_ref, bpr_ref,
                      lnfw_ref, lnfb_ref, wtet_ref, out_ref,
                      *, n_layer, n_head, seq, vocab, eps):
    S, H, V = seq, n_head, vocab
    E = wte_ref.shape[1]
    D = E // H
    inv_sqrt_d = 1.0 / math.sqrt(D)

    # ---- embedding: in-kernel gather as one-hot @ wte (MXU) + positional add
    ids = ids_ref[...]                                             # (S, 1) i32
    onehot = jax.lax.broadcasted_iota(jnp.int32, (S, V), 1) == ids  # (S, V)
    tok = jnp.dot(onehot.astype(jnp.bfloat16),
                  wte_ref[...].astype(jnp.bfloat16),
                  preferred_element_type=jnp.float32)              # (S, E)
    x = tok + wpe_ref[...]                                         # (S, E) f32
    # TODO(synk): embd/attn/resid dropout are identity here (inference).

    # Per-sequence causal additive mask, built once.
    row = jax.lax.broadcasted_iota(jnp.int32, (S, S), 0)
    col = jax.lax.broadcasted_iota(jnp.int32, (S, S), 1)
    mask_bias = jnp.where(row >= col, 0.0, -1e30).astype(jnp.float32)

    # TODO(synk): at real depths, move this static unroll onto an "arbitrary"
    # grid axis over the stacked layer dim (per-layer weight streaming); at
    # n_layer=2 the unroll is cheaper.
    for l in range(n_layer):
        # ---------------- attention ----------------
        h1 = _layernorm(x, ln1w_ref[l], ln1b_ref[l], eps)          # (S, E) f32
        h1b = jnp.broadcast_to(h1.astype(jnp.bfloat16)[None], (3 * H, S, E))
        qkv = jnp.einsum('hse,hed->hsd', h1b, wqkv_ref[l],
                         preferred_element_type=jnp.float32) + bqkv_ref[l]
        q = qkv[0 * H:1 * H] * inv_sqrt_d                          # (H, S, D)
        k = qkv[1 * H:2 * H]
        v = qkv[2 * H:3 * H]

        s = jnp.einsum('hqd,hkd->hqk',
                       q.astype(jnp.bfloat16), k.astype(jnp.bfloat16),
                       preferred_element_type=jnp.float32) + mask_bias
        m = jnp.max(s, axis=-1, keepdims=True)
        p = jnp.exp(s - m)
        p = p * pl.reciprocal(jnp.sum(p, axis=-1, keepdims=True), approx=True)
        ctx = jnp.einsum('hqk,hkd->hqd',
                         p.astype(jnp.bfloat16), v.astype(jnp.bfloat16),
                         preferred_element_type=jnp.float32)       # (H, S, D)
        attn = jnp.einsum('hsd,hde->hse',
                          ctx.astype(jnp.bfloat16), wo_ref[l],
                          preferred_element_type=jnp.float32)      # (H, S, E)
        x = x + jnp.sum(attn, axis=0) + bo_ref[l]                  # (S, E)

        # ---------------- MLP ----------------
        h2 = _layernorm(x, ln2w_ref[l], ln2b_ref[l], eps)
        f = jnp.dot(h2.astype(jnp.bfloat16), wfc_ref[l],
                    preferred_element_type=jnp.float32) + bfc_ref[l]
        f = _gelu_tanh(f)
        x = x + jnp.dot(f.astype(jnp.bfloat16), wpr_ref[l],
                        preferred_element_type=jnp.float32) + bpr_ref[l]

    # ---- final LayerNorm + tied lm_head (lane-dense V=512 output) ----
    hf = _layernorm(x, lnfw_ref[...], lnfb_ref[...], eps)
    # TODO(synk): emit bf16 logits instead if downstream tolerates it (halves
    # the (S, V) writeback at production vocab sizes).
    out_ref[...] = jnp.dot(hf.astype(jnp.bfloat16), wtet_ref[...],
                           preferred_element_type=jnp.float32)


def gpt2_forward(params, input_ids):
    B, S = input_ids.shape
    V, E = params["wte"].shape
    L, H, D = params["w_o_h"].shape[0], params["w_o_h"].shape[1], params["w_o_h"].shape[2]

    ids2d = input_ids.reshape(B * S, 1).astype(jnp.int32)

    kernel = functools.partial(gpt2_fused_kernel, n_layer=L, n_head=H,
                               seq=S, vocab=V, eps=LN_EPS)
    zero2 = lambda b: (0, 0)
    zero3 = lambda b: (0, 0, 0)
    zero4 = lambda b: (0, 0, 0, 0)
    in_specs = [
        pl.BlockSpec((S, 1), lambda b: (b, 0)),         # ids  (per batch)
        pl.BlockSpec((V, E), zero2),                    # wte
        pl.BlockSpec((S, E), zero2),                    # wpe rows [0, S)
        pl.BlockSpec((L, 1, E), zero3),                 # ln1_w
        pl.BlockSpec((L, 1, E), zero3),                 # ln1_b
        pl.BlockSpec((L, 3 * H, E, D), zero4),          # w_qkv (head-split)
        pl.BlockSpec((L, 3 * H, 1, D), zero4),          # b_qkv
        pl.BlockSpec((L, H, D, E), zero4),              # w_o   (head-split)
        pl.BlockSpec((L, 1, E), zero3),                 # b_o
        pl.BlockSpec((L, 1, E), zero3),                 # ln2_w
        pl.BlockSpec((L, 1, E), zero3),                 # ln2_b
        pl.BlockSpec((L, E, 4 * E), zero3),             # w_fc
        pl.BlockSpec((L, 1, 4 * E), zero3),             # b_fc
        pl.BlockSpec((L, 4 * E, E), zero3),             # w_pr
        pl.BlockSpec((L, 1, E), zero3),                 # b_pr
        pl.BlockSpec((1, E), zero2),                    # ln_f_w
        pl.BlockSpec((1, E), zero2),                    # ln_f_b
        pl.BlockSpec((E, V), zero2),                    # wte_t (tied lm_head)
    ]
    logits = pl.pallas_call(
        kernel,
        grid=(B,),
        in_specs=in_specs,
        out_specs=pl.BlockSpec((S, V), lambda b: (b, 0)),
        out_shape=jax.ShapeDtypeStruct((B * S, V), jnp.float32),
        compiler_params=pltpu.CompilerParams(
            dimension_semantics=("parallel",),   # one sequence per TC on v7x
            vmem_limit_bytes=8 * 1024 * 1024),
    )(ids2d, params["wte"], params["wpe"],
      params["ln1_w"], params["ln1_b"],
      params["w_qkv_h"], params["b_qkv_h"], params["w_o_h"], params["b_o"],
      params["ln2_w"], params["ln2_b"],
      params["w_fc"], params["b_fc"], params["w_pr"], params["b_pr"],
      params["ln_f_w"], params["ln_f_b"], params["wte_t"])
    return logits.reshape(B, S, V)


def init_params(key):
    L, H, D, E, V = N_LAYER, N_HEAD, HEAD_DIM, N_EMBD, VOCAB

    def nrm(k, shape, scale=0.02):
        return scale * jax.random.normal(k, shape, jnp.float32)

    keys = jax.random.split(key, 10)
    wte = nrm(keys[0], (V, E))
    wpe = nrm(keys[1], (N_POS, E))

    # Dense weights in "y = x @ W + b" layout, stacked over layers.
    # qkv columns ordered [q | k | v], head-major within each (as torch splits).
    w_qkv = nrm(keys[2], (L, E, 3 * E))
    b_qkv = nrm(keys[3], (L, 3 * E))
    w_o = nrm(keys[4], (L, E, E))
    b_o = nrm(keys[5], (L, E))
    w_fc = nrm(keys[6], (L, E, 4 * E))
    b_fc = nrm(keys[7], (L, 4 * E))
    w_pr = nrm(keys[8], (L, 4 * E, E))
    b_pr = nrm(keys[9], (L, E))

    # Head-split layouts for the in-kernel batched einsums (done once, at init).
    w_qkv_h = (w_qkv.reshape(L, E, 3, H, D)
               .transpose(0, 2, 3, 1, 4)            # (L, 3, H, E, D)
               .reshape(L, 3 * H, E, D)).astype(jnp.bfloat16)
    b_qkv_h = b_qkv.reshape(L, 3 * H, 1, D)
    w_o_h = w_o.reshape(L, H, D, E).astype(jnp.bfloat16)

    return {
        "wte": wte,                                   # (V, E) f32 (embedding)
        "wpe": wpe,                                   # (N_POS, E) f32
        "wte_t": wte.T.astype(jnp.bfloat16),          # (E, V) bf16, pre-transposed tied head
        "ln1_w": jnp.ones((L, 1, E), jnp.float32),
        "ln1_b": jnp.zeros((L, 1, E), jnp.float32),
        "w_qkv_h": w_qkv_h,                           # (L, 3H, E, D) bf16
        "b_qkv_h": b_qkv_h,                           # (L, 3H, 1, D) f32
        "w_o_h": w_o_h,                               # (L, H, D, E) bf16
        "b_o": b_o.reshape(L, 1, E),
        "ln2_w": jnp.ones((L, 1, E), jnp.float32),
        "ln2_b": jnp.zeros((L, 1, E), jnp.float32),
        "w_fc": w_fc.astype(jnp.bfloat16),            # (L, E, 4E) bf16
        "b_fc": b_fc.reshape(L, 1, 4 * E),
        "w_pr": w_pr.astype(jnp.bfloat16),            # (L, 4E, E) bf16
        "b_pr": b_pr.reshape(L, 1, E),
        "ln_f_w": jnp.ones((1, E), jnp.float32),
        "ln_f_b": jnp.zeros((1, E), jnp.float32),
    }


def gpt2_reference(params, input_ids):
    """Plain-JAX f32 reference mirroring the module's forward, for validation."""
    B, S = input_ids.shape
    V, E = params["wte"].shape
    L, H, D = params["w_o_h"].shape[0], params["w_o_h"].shape[1], params["w_o_h"].shape[2]

    wqkv = params["w_qkv_h"].astype(jnp.float32)
    bqkv = params["b_qkv_h"].astype(jnp.float32)
    wo = params["w_o_h"].astype(jnp.float32)
    wfc = params["w_fc"].astype(jnp.float32)
    wpr = params["w_pr"].astype(jnp.float32)
    wte_t = params["wte_t"].astype(jnp.float32)

    x = params["wte"][input_ids] + params["wpe"][jnp.arange(S)][None]   # (B,S,E)
    mask = jnp.tril(jnp.ones((S, S), jnp.bool_))

    def ln(v, g, b):
        mu = jnp.mean(v, axis=-1, keepdims=True)
        var = jnp.mean((v - mu) ** 2, axis=-1, keepdims=True)
        return (v - mu) * jax.lax.rsqrt(var + LN_EPS) * g + b

    for l in range(L):
        h1 = ln(x, params["ln1_w"][l], params["ln1_b"][l])
        qkv = jnp.einsum('bse,ged->bgsd', h1, wqkv[l]) + bqkv[l][None]
        q = qkv[:, 0 * H:1 * H] / math.sqrt(D)
        k = qkv[:, 1 * H:2 * H]
        v = qkv[:, 2 * H:3 * H]
        s = jnp.einsum('bhqd,bhkd->bhqk', q, k)
        s = jnp.where(mask, s, -jnp.inf)
        p = jax.nn.softmax(s, axis=-1)
        ctx = jnp.einsum('bhqk,bhkd->bhqd', p, v)
        attn = jnp.einsum('bhsd,hde->bse', ctx, wo[l]) + params["b_o"][l][None]
        x = x + attn
        h2 = ln(x, params["ln2_w"][l], params["ln2_b"][l])
        f = _gelu_tanh(jnp.einsum('bse,ef->bsf', h2, wfc[l]) + params["b_fc"][l][None])
        x = x + jnp.einsum('bsf,fe->bse', f, wpr[l]) + params["b_pr"][l][None]

    hf = ln(x, params["ln_f_w"], params["ln_f_b"])
    return jnp.einsum('bse,ev->bsv', hf, wte_t)


if __name__ == "__main__":
    root = jax.random.PRNGKey(0)
    pkey, dkey = jax.random.split(root)
    params = init_params(pkey)
    input_ids = jax.random.randint(dkey, (BATCH, SEQ), 0, VOCAB, dtype=jnp.int32)

    logits = jax.jit(gpt2_forward)(params, input_ids)
    jax.block_until_ready(logits)

    assert logits.shape == (BATCH, SEQ, VOCAB)
    assert logits.dtype == jnp.float32
    assert bool(jnp.all(jnp.isfinite(logits)))

    ref = gpt2_reference(params, input_ids)
    max_err = float(jnp.max(jnp.abs(logits - ref)))
    assert max_err < 5e-2, f"kernel deviates from reference: max_err={max_err}"
    print("KERNEL_OK")
</pallas_src>

<mosaic_0001>
module attributes {stable_mosaic.version = 11 : i64} {
  func.func @gpt2_fused_kernel(%arg0: i32, %arg1: memref<8x1xi32, #tpu.memory_space<vmem>>, %arg2: memref<512x32xf32, #tpu.memory_space<vmem>>, %arg3: memref<8x32xf32, #tpu.memory_space<vmem>>, %arg4: memref<2x1x32xf32, #tpu.memory_space<vmem>>, %arg5: memref<2x1x32xf32, #tpu.memory_space<vmem>>, %arg6: memref<2x12x32x8xbf16, #tpu.memory_space<vmem>>, %arg7: memref<2x12x1x8xf32, #tpu.memory_space<vmem>>, %arg8: memref<2x4x8x32xbf16, #tpu.memory_space<vmem>>, %arg9: memref<2x1x32xf32, #tpu.memory_space<vmem>>, %arg10: memref<2x1x32xf32, #tpu.memory_space<vmem>>, %arg11: memref<2x1x32xf32, #tpu.memory_space<vmem>>, %arg12: memref<2x32x128xbf16, #tpu.memory_space<vmem>>, %arg13: memref<2x1x128xf32, #tpu.memory_space<vmem>>, %arg14: memref<2x128x32xbf16, #tpu.memory_space<vmem>>, %arg15: memref<2x1x32xf32, #tpu.memory_space<vmem>>, %arg16: memref<1x32xf32, #tpu.memory_space<vmem>>, %arg17: memref<1x32xf32, #tpu.memory_space<vmem>>, %arg18: memref<32x512xbf16, #tpu.memory_space<vmem>>, %arg19: memref<8x512xf32, #tpu.memory_space<vmem>>) attributes {dimension_semantics = [#tpu.dimension_semantics<parallel>], iteration_bounds = array<i64: 2>, scalar_prefetch = 0 : i64, scratch_operands = 0 : i64, tpu.core_type = #tpu.core_type<tc>, window_params = [{transform_indices = @transform_0, window_bounds = array<i64: 8, 1>}, {pipeline_mode = #tpu.pipeline_mode<synchronous>, transform_indices = @transform_1, window_bounds = array<i64: 512, 32>}, {transform_indices = @transform_2, window_bounds = array<i64: 8, 32>}, {pipeline_mode = #tpu.pipeline_mode<synchronous>, transform_indices = @transform_3, window_bounds = array<i64: 2, 1, 32>}, {pipeline_mode = #tpu.pipeline_mode<synchronous>, transform_indices = @transform_4, window_bounds = array<i64: 2, 1, 32>}, {pipeline_mode = #tpu.pipeline_mode<synchronous>, transform_indices = @transform_5, window_bounds = array<i64: 2, 12, 32, 8>}, {pipeline_mode = #tpu.pipeline_mode<synchronous>, transform_indices = @transform_6, window_bounds = array<i64: 2, 12, 1, 8>}, {pipeline_mode = #tpu.pipeline_mode<synchronous>, transform_indices = @transform_7, window_bounds = array<i64: 2, 4, 8, 32>}, {pipeline_mode = #tpu.pipeline_mode<synchronous>, transform_indices = @transform_8, window_bounds = array<i64: 2, 1, 32>}, {pipeline_mode = #tpu.pipeline_mode<synchronous>, transform_indices = @transform_9, window_bounds = array<i64: 2, 1, 32>}, {pipeline_mode = #tpu.pipeline_mode<synchronous>, transform_indices = @transform_10, window_bounds = array<i64: 2, 1, 32>}, {pipeline_mode = #tpu.pipeline_mode<synchronous>, transform_indices = @transform_11, window_bounds = array<i64: 2, 32, 128>}, {pipeline_mode = #tpu.pipeline_mode<synchronous>, transform_indices = @transform_12, window_bounds = array<i64: 2, 1, 128>}, {pipeline_mode = #tpu.pipeline_mode<synchronous>, transform_indices = @transform_13, window_bounds = array<i64: 2, 128, 32>}, {pipeline_mode = #tpu.pipeline_mode<synchronous>, transform_indices = @transform_14, window_bounds = array<i64: 2, 1, 32>}, {pipeline_mode = #tpu.pipeline_mode<synchronous>, transform_indices = @transform_15, window_bounds = array<i64: 1, 32>}, {pipeline_mode = #tpu.pipeline_mode<synchronous>, transform_indices = @transform_16, window_bounds = array<i64: 1, 32>}, {pipeline_mode = #tpu.pipeline_mode<synchronous>, transform_indices = @transform_17, window_bounds = array<i64: 32, 512>}, {transform_indices = @transform_18, window_bounds = array<i64: 8, 512>}]} {
    %c0 = arith.constant 0 : index
    %c0_0 = arith.constant 0 : index
    %0 = vector.load %arg1[%c0, %c0_0] : memref<8x1xi32, #tpu.memory_space<vmem>>, vector<8x1xi32>
    %1 = tpu.iota {dimensions = array<i32: 1>} : vector<8x512xi32>
    %2 = vector.broadcast %0 : vector<8x1xi32> to vector<8x512xi32>
    %3 = arith.cmpi eq, %1, %2 : vector<8x512xi32>
    %4 = arith.extui %3 : vector<8x512xi1> to vector<8x512xi32>
    %5 = arith.sitofp %4 : vector<8x512xi32> to vector<8x512xf32>
    %6 = arith.truncf %5 : vector<8x512xf32> to vector<8x512xbf16>
    %c0_1 = arith.constant 0 : index
    %c0_2 = arith.constant 0 : index
    %7 = vector.load %arg2[%c0_1, %c0_2] : memref<512x32xf32, #tpu.memory_space<vmem>>, vector<512x32xf32>
    %8 = arith.truncf %7 : vector<512x32xf32> to vector<512x32xbf16>
    %cst = arith.constant dense<0.000000e+00> : vector<8x32xf32>
    %9 = tpu.matmul %6, %8, %cst {dimension_numbers = #tpu.dot_dimension_numbers<[1], [0], [0], [1], [0, 0, 1, 1], [], []>} : vector<8x512xbf16>, vector<512x32xbf16>, vector<8x32xf32> -> vector<8x32xf32>
    %c0_3 = arith.constant 0 : index
    %c0_4 = arith.constant 0 : index
    %10 = vector.load %arg3[%c0_3, %c0_4] : memref<8x32xf32, #tpu.memory_space<vmem>>, vector<8x32xf32>
    %11 = arith.addf %9, %10 : vector<8x32xf32>
    %12 = tpu.iota {dimensions = array<i32: 0>} : vector<8x8xi32>
    %13 = tpu.iota {dimensions = array<i32: 1>} : vector<8x8xi32>
    %14 = arith.cmpi sge, %12, %13 : vector<8x8xi32>
    %cst_5 = arith.constant 0.000000e+00 : f32
    %cst_6 = arith.constant -1.000000e+30 : f32
    %15 = vector.broadcast %cst_5 : f32 to vector<8x8xf32>
    %16 = vector.broadcast %cst_6 : f32 to vector<8x8xf32>
    %17 = arith.select %14, %15, %16 : vector<8x8xi1>, vector<8x8xf32>
    %c0_7 = arith.constant 0 : index
    %c0_8 = arith.constant 0 : index
    %c0_9 = arith.constant 0 : index
    %18 = vector.load %arg4[%c0_7, %c0_8, %c0_9] : memref<2x1x32xf32, #tpu.memory_space<vmem>>, vector<1x1x32xf32>
    %19 = vector.shape_cast %18 : vector<1x1x32xf32> to vector<1x32xf32>
    %c0_10 = arith.constant 0 : index
    %c0_11 = arith.constant 0 : index
    %c0_12 = arith.constant 0 : index
    %20 = vector.load %arg5[%c0_10, %c0_11, %c0_12] : memref<2x1x32xf32, #tpu.memory_space<vmem>>, vector<1x1x32xf32>
    %21 = vector.shape_cast %20 : vector<1x1x32xf32> to vector<1x32xf32>
    %cst_13 = arith.constant dense<0.000000e+00> : vector<8xf32>
    %22 = vector.multi_reduction <add>, %11, %cst_13 [1] : vector<8x32xf32> to vector<8xf32>
    %23 = vector.shape_cast %22 : vector<8xf32> to vector<8x1xf32>
    %cst_14 = arith.constant 3.200000e+01 : f32
    %24 = vector.broadcast %cst_14 : f32 to vector<8x1xf32>
    %25 = arith.divf %23, %24 : vector<8x1xf32>
    %26 = vector.broadcast %25 : vector<8x1xf32> to vector<8x32xf32>
    %27 = arith.subf %11, %26 : vector<8x32xf32>
    %28 = arith.mulf %27, %27 : vector<8x32xf32>
    %cst_15 = arith.constant dense<0.000000e+00> : vector<8xf32>
    %29 = vector.multi_reduction <add>, %28, %cst_15 [1] : vector<8x32xf32> to vector<8xf32>
    %30 = vector.shape_cast %29 : vector<8xf32> to vector<8x1xf32>
    %cst_16 = arith.constant 3.200000e+01 : f32
    %31 = vector.broadcast %cst_16 : f32 to vector<8x1xf32>
    %32 = arith.divf %30, %31 : vector<8x1xf32>
    %33 = vector.broadcast %25 : vector<8x1xf32> to vector<8x32xf32>
    %34 = arith.subf %11, %33 : vector<8x32xf32>
    %cst_17 = arith.constant 9.99999974E-6 : f32
    %35 = vector.broadcast %cst_17 : f32 to vector<8x1xf32>
    %36 = arith.addf %32, %35 : vector<8x1xf32>
    %37 = math.rsqrt %36 : vector<8x1xf32>
    %38 = vector.broadcast %37 : vector<8x1xf32> to vector<8x32xf32>
    %39 = arith.mulf %34, %38 : vector<8x32xf32>
    %40 = vector.broadcast %19 : vector<1x32xf32> to vector<8x32xf32>
    %41 = arith.mulf %39, %40 : vector<8x32xf32>
    %42 = vector.broadcast %21 : vector<1x32xf32> to vector<8x32xf32>
    %43 = arith.addf %41, %42 : vector<8x32xf32>
    %44 = arith.truncf %43 : vector<8x32xf32> to vector<8x32xbf16>
    %45 = vector.shape_cast %44 : vector<8x32xbf16> to vector<1x8x32xbf16>
    %46 = vector.shape_cast %45 : vector<1x8x32xbf16> to vector<1x8x32xbf16>
    %47 = vector.broadcast %46 : vector<1x8x32xbf16> to vector<12x8x32xbf16>
    %c0_18 = arith.constant 0 : index
    %c0_19 = arith.constant 0 : index
    %c0_20 = arith.constant 0 : index
    %c0_21 = arith.constant 0 : index
    %48 = vector.load %arg6[%c0_18, %c0_19, %c0_20, %c0_21] : memref<2x12x32x8xbf16, #tpu.memory_space<vmem>>, vector<1x12x32x8xbf16>
    %49 = vector.shape_cast %48 : vector<1x12x32x8xbf16> to vector<12x32x8xbf16>
    "tpu.trace_start"() <{level = 10 : i32, message = "hse,hed->hsd"}> : () -> ()
    %cst_22 = arith.constant dense<0.000000e+00> : vector<12x8x8xf32>
    %50 = tpu.matmul %47, %49, %cst_22 {dimension_numbers = #tpu.dot_dimension_numbers<[2], [1], [1], [2], [0, 0, 0, 1, 1, 2], [0], [0]>} : vector<12x8x32xbf16>, vector<12x32x8xbf16>, vector<12x8x8xf32> -> vector<12x8x8xf32>
    "tpu.trace_stop"() : () -> ()
    %c0_23 = arith.constant 0 : index
    %c0_24 = arith.constant 0 : index
    %c0_25 = arith.constant 0 : index
    %c0_26 = arith.constant 0 : index
    %51 = vector.load %arg7[%c0_23, %c0_24, %c0_25, %c0_26] : memref<2x12x1x8xf32, #tpu.memory_space<vmem>>, vector<1x12x1x8xf32>
    %52 = vector.shape_cast %51 : vector<1x12x1x8xf32> to vector<12x1x8xf32>
    %53 = vector.broadcast %52 : vector<12x1x8xf32> to vector<12x8x8xf32>
    %54 = arith.addf %50, %53 : vector<12x8x8xf32>
    %55 = vector.extract_strided_slice %54 {offsets = [0, 0, 0], sizes = [4, 8, 8], strides = [1, 1, 1]} : vector<12x8x8xf32> to vector<4x8x8xf32>
    %cst_27 = arith.constant 0.353553385 : f32
    %56 = vector.broadcast %cst_27 : f32 to vector<4x8x8xf32>
    %57 = arith.mulf %55, %56 : vector<4x8x8xf32>
    %58 = vector.extract_strided_slice %54 {offsets = [4, 0, 0], sizes = [4, 8, 8], strides = [1, 1, 1]} : vector<12x8x8xf32> to vector<4x8x8xf32>
    %59 = vector.extract_strided_slice %54 {offsets = [8, 0, 0], sizes = [4, 8, 8], strides = [1, 1, 1]} : vector<12x8x8xf32> to vector<4x8x8xf32>
    %60 = arith.truncf %57 : vector<4x8x8xf32> to vector<4x8x8xbf16>
    %61 = arith.truncf %58 : vector<4x8x8xf32> to vector<4x8x8xbf16>
    "tpu.trace_start"() <{level = 10 : i32, message = "hqd,hkd->hqk"}> : () -> ()
    %cst_28 = arith.constant dense<0.000000e+00> : vector<4x8x8xf32>
    %62 = tpu.matmul %60, %61, %cst_28 {dimension_numbers = #tpu.dot_dimension_numbers<[2], [2], [1], [1], [0, 0, 0, 1, 1, 1], [0], [0]>} : vector<4x8x8xbf16>, vector<4x8x8xbf16>, vector<4x8x8xf32> -> vector<4x8x8xf32>
    "tpu.trace_stop"() : () -> ()
    %63 = vector.shape_cast %17 : vector<8x8xf32> to vector<1x8x8xf32>
    %64 = vector.broadcast %63 : vector<1x8x8xf32> to vector<4x8x8xf32>
    %65 = arith.addf %62, %64 : vector<4x8x8xf32>
    %cst_29 = arith.constant dense<0xFF800000> : vector<4x8xf32>
    %66 = vector.multi_reduction <maximumf>, %65, %cst_29 [2] : vector<4x8x8xf32> to vector<4x8xf32>
    %67 = vector.shape_cast %66 : vector<4x8xf32> to vector<4x8x1xf32>
    %68 = vector.broadcast %67 : vector<4x8x1xf32> to vector<4x8x8xf32>
    %69 = arith.subf %65, %68 : vector<4x8x8xf32>
    %70 = math.exp %69 : vector<4x8x8xf32>
    %cst_30 = arith.constant dense<0.000000e+00> : vector<4x8xf32>
    %71 = vector.multi_reduction <add>, %70, %cst_30 [2] : vector<4x8x8xf32> to vector<4x8xf32>
    %72 = vector.shape_cast %71 : vector<4x8xf32> to vector<4x8x1xf32>
    %73 = tpu.reciprocal %72 {approx = true} : vector<4x8x1xf32> -> vector<4x8x1xf32>
    %74 = vector.broadcast %73 : vector<4x8x1xf32> to vector<4x8x8xf32>
    %75 = arith.mulf %70, %74 : vector<4x8x8xf32>
    %76 = arith.truncf %75 : vector<4x8x8xf32> to vector<4x8x8xbf16>
    %77 = arith.truncf %59 : vector<4x8x8xf32> to vector<4x8x8xbf16>
    "tpu.trace_start"() <{level = 10 : i32, message = "hqk,hkd->hqd"}> : () -> ()
    %cst_31 = arith.constant dense<0.000000e+00> : vector<4x8x8xf32>
    %78 = tpu.matmul %76, %77, %cst_31 {dimension_numbers = #tpu.dot_dimension_numbers<[2], [1], [1], [2], [0, 0, 0, 1, 1, 2], [0], [0]>} : vector<4x8x8xbf16>, vector<4x8x8xbf16>, vector<4x8x8xf32> -> vector<4x8x8xf32>
    "tpu.trace_stop"() : () -> ()
    %79 = arith.truncf %78 : vector<4x8x8xf32> to vector<4x8x8xbf16>
    %c0_32 = arith.constant 0 : index
    %c0_33 = arith.constant 0 : index
    %c0_34 = arith.constant 0 : index
    %c0_35 = arith.constant 0 : index
    %80 = vector.load %arg8[%c0_32, %c0_33, %c0_34, %c0_35] : memref<2x4x8x32xbf16, #tpu.memory_space<vmem>>, vector<1x4x8x32xbf16>
    %81 = vector.shape_cast %80 : vector<1x4x8x32xbf16> to vector<4x8x32xbf16>
    "tpu.trace_start"() <{level = 10 : i32, message = "hsd,hde->hse"}> : () -> ()
    %cst_36 = arith.constant dense<0.000000e+00> : vector<4x8x32xf32>
    %82 = tpu.matmul %79, %81, %cst_36 {dimension_numbers = #tpu.dot_dimension_numbers<[2], [1], [1], [2], [0, 0, 0, 1, 1, 2], [0], [0]>} : vector<4x8x8xbf16>, vector<4x8x32xbf16>, vector<4x8x32xf32> -> vector<4x8x32xf32>
    "tpu.trace_stop"() : () -> ()
    %cst_37 = arith.constant dense<0.000000e+00> : vector<8x32xf32>
    %83 = vector.multi_reduction <add>, %82, %cst_37 [0] : vector<4x8x32xf32> to vector<8x32xf32>
    %84 = arith.addf %11, %83 : vector<8x32xf32>
    %c0_38 = arith.constant 0 : index
    %c0_39 = arith.constant 0 : index
    %c0_40 = arith.constant 0 : index
    %85 = vector.load %arg9[%c0_38, %c0_39, %c0_40] : memref<2x1x32xf32, #tpu.memory_space<vmem>>, vector<1x1x32xf32>
    %86 = vector.shape_cast %85 : vector<1x1x32xf32> to vector<1x32xf32>
    %87 = vector.broadcast %86 : vector<1x32xf32> to vector<8x32xf32>
    %88 = arith.addf %84, %87 : vector<8x32xf32>
    %c0_41 = arith.constant 0 : index
    %c0_42 = arith.constant 0 : index
    %c0_43 = arith.constant 0 : index
    %89 = vector.load %arg10[%c0_41, %c0_42, %c0_43] : memref<2x1x32xf32, #tpu.memory_space<vmem>>, vector<1x1x32xf32>
    %90 = vector.shape_cast %89 : vector<1x1x32xf32> to vector<1x32xf32>
    %c0_44 = arith.constant 0 : index
    %c0_45 = arith.constant 0 : index
    %c0_46 = arith.constant 0 : index
    %91 = vector.load %arg11[%c0_44, %c0_45, %c0_46] : memref<2x1x32xf32, #tpu.memory_space<vmem>>, vector<1x1x32xf32>
    %92 = vector.shape_cast %91 : vector<1x1x32xf32> to vector<1x32xf32>
    %cst_47 = arith.constant dense<0.000000e+00> : vector<8xf32>
    %93 = vector.multi_reduction <add>, %88, %cst_47 [1] : vector<8x32xf32> to vector<8xf32>
    %94 = vector.shape_cast %93 : vector<8xf32> to vector<8x1xf32>
    %cst_48 = arith.constant 3.200000e+01 : f32
    %95 = vector.broadcast %cst_48 : f32 to vector<8x1xf32>
    %96 = arith.divf %94, %95 : vector<8x1xf32>
    %97 = vector.broadcast %96 : vector<8x1xf32> to vector<8x32xf32>
    %98 = arith.subf %88, %97 : vector<8x32xf32>
    %99 = arith.mulf %98, %98 : vector<8x32xf32>
    %cst_49 = arith.constant dense<0.000000e+00> : vector<8xf32>
    %100 = vector.multi_reduction <add>, %99, %cst_49 [1] : vector<8x32xf32> to vector<8xf32>
    %101 = vector.shape_cast %100 : vector<8xf32> to vector<8x1xf32>
    %cst_50 = arith.constant 3.200000e+01 : f32
    %102 = vector.broadcast %cst_50 : f32 to vector<8x1xf32>
    %103 = arith.divf %101, %102 : vector<8x1xf32>
    %104 = vector.broadcast %96 : vector<8x1xf32> to vector<8x32xf32>
    %105 = arith.subf %88, %104 : vector<8x32xf32>
    %cst_51 = arith.constant 9.99999974E-6 : f32
    %106 = vector.broadcast %cst_51 : f32 to vector<8x1xf32>
    %107 = arith.addf %103, %106 : vector<8x1xf32>
    %108 = math.rsqrt %107 : vector<8x1xf32>
    %109 = vector.broadcast %108 : vector<8x1xf32> to vector<8x32xf32>
    %110 = arith.mulf %105, %109 : vector<8x32xf32>
    %111 = vector.broadcast %90 : vector<1x32xf32> to vector<8x32xf32>
    %112 = arith.mulf %110, %111 : vector<8x32xf32>
    %113 = vector.broadcast %92 : vector<1x32xf32> to vector<8x32xf32>
    %114 = arith.addf %112, %113 : vector<8x32xf32>
    %115 = arith.truncf %114 : vector<8x32xf32> to vector<8x32xbf16>
    %c0_52 = arith.constant 0 : index
    %c0_53 = arith.constant 0 : index
    %c0_54 = arith.constant 0 : index
    %116 = vector.load %arg12[%c0_52, %c0_53, %c0_54] : memref<2x32x128xbf16, #tpu.memory_space<vmem>>, vector<1x32x128xbf16>
    %117 = vector.shape_cast %116 : vector<1x32x128xbf16> to vector<32x128xbf16>
    %cst_55 = arith.constant dense<0.000000e+00> : vector<8x128xf32>
    %118 = tpu.matmul %115, %117, %cst_55 {dimension_numbers = #tpu.dot_dimension_numbers<[1], [0], [0], [1], [0, 0, 1, 1], [], []>} : vector<8x32xbf16>, vector<32x128xbf16>, vector<8x128xf32> -> vector<8x128xf32>
    %c0_56 = arith.constant 0 : index
    %c0_57 = arith.constant 0 : index
    %c0_58 = arith.constant 0 : index
    %119 = vector.load %arg13[%c0_56, %c0_57, %c0_58] : memref<2x1x128xf32, #tpu.memory_space<vmem>>, vector<1x1x128xf32>
    %120 = vector.shape_cast %119 : vector<1x1x128xf32> to vector<1x128xf32>
    %121 = vector.broadcast %120 : vector<1x128xf32> to vector<8x128xf32>
    %122 = arith.addf %118, %121 : vector<8x128xf32>
    %cst_59 = arith.constant 5.000000e-01 : f32
    %123 = vector.broadcast %cst_59 : f32 to vector<8x128xf32>
    %124 = arith.mulf %123, %122 : vector<8x128xf32>
    %125 = arith.mulf %122, %122 : vector<8x128xf32>
    %126 = arith.mulf %125, %122 : vector<8x128xf32>
    %cst_60 = arith.constant 4.471500e-02 : f32
    %127 = vector.broadcast %cst_60 : f32 to vector<8x128xf32>
    %128 = arith.mulf %127, %126 : vector<8x128xf32>
    %129 = arith.addf %122, %128 : vector<8x128xf32>
    %cst_61 = arith.constant 0.797884583 : f32
    %130 = vector.broadcast %cst_61 : f32 to vector<8x128xf32>
    %131 = arith.mulf %130, %129 : vector<8x128xf32>
    %132 = math.tanh %131 : vector<8x128xf32>
    %cst_62 = arith.constant 1.000000e+00 : f32
    %133 = vector.broadcast %cst_62 : f32 to vector<8x128xf32>
    %134 = arith.addf %133, %132 : vector<8x128xf32>
    %135 = arith.mulf %124, %134 : vector<8x128xf32>
    %136 = arith.truncf %135 : vector<8x128xf32> to vector<8x128xbf16>
    %c0_63 = arith.constant 0 : index
    %c0_64 = arith.constant 0 : index
    %c0_65 = arith.constant 0 : index
    %137 = vector.load %arg14[%c0_63, %c0_64, %c0_65] : memref<2x128x32xbf16, #tpu.memory_space<vmem>>, vector<1x128x32xbf16>
    %138 = vector.shape_cast %137 : vector<1x128x32xbf16> to vector<128x32xbf16>
    %cst_66 = arith.constant dense<0.000000e+00> : vector<8x32xf32>
    %139 = tpu.matmul %136, %138, %cst_66 {dimension_numbers = #tpu.dot_dimension_numbers<[1], [0], [0], [1], [0, 0, 1, 1], [], []>} : vector<8x128xbf16>, vector<128x32xbf16>, vector<8x32xf32> -> vector<8x32xf32>
    %140 = arith.addf %88, %139 : vector<8x32xf32>
    %c0_67 = arith.constant 0 : index
    %c0_68 = arith.constant 0 : index
    %c0_69 = arith.constant 0 : index
    %141 = vector.load %arg15[%c0_67, %c0_68, %c0_69] : memref<2x1x32xf32, #tpu.memory_space<vmem>>, vector<1x1x32xf32>
    %142 = vector.shape_cast %141 : vector<1x1x32xf32> to vector<1x32xf32>
    %143 = vector.broadcast %142 : vector<1x32xf32> to vector<8x32xf32>
    %144 = arith.addf %140, %143 : vector<8x32xf32>
    %c1 = arith.constant 1 : index
    %c0_70 = arith.constant 0 : index
    %c0_71 = arith.constant 0 : index
    %145 = vector.load %arg4[%c1, %c0_70, %c0_71] : memref<2x1x32xf32, #tpu.memory_space<vmem>>, vector<1x1x32xf32>
    %146 = vector.shape_cast %145 : vector<1x1x32xf32> to vector<1x32xf32>
    %c1_72 = arith.constant 1 : index
    %c0_73 = arith.constant 0 : index
    %c0_74 = arith.constant 0 : index
    %147 = vector.load %arg5[%c1_72, %c0_73, %c0_74] : memref<2x1x32xf32, #tpu.memory_space<vmem>>, vector<1x1x32xf32>
    %148 = vector.shape_cast %147 : vector<1x1x32xf32> to vector<1x32xf32>
    %cst_75 = arith.constant dense<0.000000e+00> : vector<8xf32>
    %149 = vector.multi_reduction <add>, %144, %cst_75 [1] : vector<8x32xf32> to vector<8xf32>
    %150 = vector.shape_cast %149 : vector<8xf32> to vector<8x1xf32>
    %cst_76 = arith.constant 3.200000e+01 : f32
    %151 = vector.broadcast %cst_76 : f32 to vector<8x1xf32>
    %152 = arith.divf %150, %151 : vector<8x1xf32>
    %153 = vector.broadcast %152 : vector<8x1xf32> to vector<8x32xf32>
    %154 = arith.subf %144, %153 : vector<8x32xf32>
    %155 = arith.mulf %154, %154 : vector<8x32xf32>
    %cst_77 = arith.constant dense<0.000000e+00> : vector<8xf32>
    %156 = vector.multi_reduction <add>, %155, %cst_77 [1] : vector<8x32xf32> to vector<8xf32>
    %157 = vector.shape_cast %156 : vector<8xf32> to vector<8x1xf32>
    %cst_78 = arith.constant 3.200000e+01 : f32
    %158 = vector.broadcast %cst_78 : f32 to vector<8x1xf32>
    %159 = arith.divf %157, %158 : vector<8x1xf32>
    %160 = vector.broadcast %152 : vector<8x1xf32> to vector<8x32xf32>
    %161 = arith.subf %144, %160 : vector<8x32xf32>
    %cst_79 = arith.constant 9.99999974E-6 : f32
    %162 = vector.broadcast %cst_79 : f32 to vector<8x1xf32>
    %163 = arith.addf %159, %162 : vector<8x1xf32>
    %164 = math.rsqrt %163 : vector<8x1xf32>
    %165 = vector.broadcast %164 : vector<8x1xf32> to vector<8x32xf32>
    %166 = arith.mulf %161, %165 : vector<8x32xf32>
    %167 = vector.broadcast %146 : vector<1x32xf32> to vector<8x32xf32>
    %168 = arith.mulf %166, %167 : vector<8x32xf32>
    %169 = vector.broadcast %148 : vector<1x32xf32> to vector<8x32xf32>
    %170 = arith.addf %168, %169 : vector<8x32xf32>
    %171 = arith.truncf %170 : vector<8x32xf32> to vector<8x32xbf16>
    %172 = vector.shape_cast %171 : vector<8x32xbf16> to vector<1x8x32xbf16>
    %173 = vector.shape_cast %172 : vector<1x8x32xbf16> to vector<1x8x32xbf16>
    %174 = vector.broadcast %173 : vector<1x8x32xbf16> to vector<12x8x32xbf16>
    %c1_80 = arith.constant 1 : index
    %c0_81 = arith.constant 0 : index
    %c0_82 = arith.constant 0 : index
    %c0_83 = arith.constant 0 : index
    %175 = vector.load %arg6[%c1_80, %c0_81, %c0_82, %c0_83] : memref<2x12x32x8xbf16, #tpu.memory_space<vmem>>, vector<1x12x32x8xbf16>
    %176 = vector.shape_cast %175 : vector<1x12x32x8xbf16> to vector<12x32x8xbf16>
    "tpu.trace_start"() <{level = 10 : i32, message = "hse,hed->hsd"}> : () -> ()
    %cst_84 = arith.constant dense<0.000000e+00> : vector<12x8x8xf32>
    %177 = tpu.matmul %174, %176, %cst_84 {dimension_numbers = #tpu.dot_dimension_numbers<[2], [1], [1], [2], [0, 0, 0, 1, 1, 2], [0], [0]>} : vector<12x8x32xbf16>, vector<12x32x8xbf16>, vector<12x8x8xf32> -> vector<12x8x8xf32>
    "tpu.trace_stop"() : () -> ()
    %c1_85 = arith.constant 1 : index
    %c0_86 = arith.constant 0 : index
    %c0_87 = arith.constant 0 : index
    %c0_88 = arith.constant 0 : index
    %178 = vector.load %arg7[%c1_85, %c0_86, %c0_87, %c0_88] : memref<2x12x1x8xf32, #tpu.memory_space<vmem>>, vector<1x12x1x8xf32>
    %179 = vector.shape_cast %178 : vector<1x12x1x8xf32> to vector<12x1x8xf32>
    %180 = vector.broadcast %179 : vector<12x1x8xf32> to vector<12x8x8xf32>
    %181 = arith.addf %177, %180 : vector<12x8x8xf32>
    %182 = vector.extract_strided_slice %181 {offsets = [0, 0, 0], sizes = [4, 8, 8], strides = [1, 1, 1]} : vector<12x8x8xf32> to vector<4x8x8xf32>
    %cst_89 = arith.constant 0.353553385 : f32
    %183 = vector.broadcast %cst_89 : f32 to vector<4x8x8xf32>
    %184 = arith.mulf %182, %183 : vector<4x8x8xf32>
    %185 = vector.extract_strided_slice %181 {offsets = [4, 0, 0], sizes = [4, 8, 8], strides = [1, 1, 1]} : vector<12x8x8xf32> to vector<4x8x8xf32>
    %186 = vector.extract_strided_slice %181 {offsets = [8, 0, 0], sizes = [4, 8, 8], strides = [1, 1, 1]} : vector<12x8x8xf32> to vector<4x8x8xf32>
    %187 = arith.truncf %184 : vector<4x8x8xf32> to vector<4x8x8xbf16>
    %188 = arith.truncf %185 : vector<4x8x8xf32> to vector<4x8x8xbf16>
    "tpu.trace_start"() <{level = 10 : i32, message = "hqd,hkd->hqk"}> : () -> ()
    %cst_90 = arith.constant dense<0.000000e+00> : vector<4x8x8xf32>
    %189 = tpu.matmul %187, %188, %cst_90 {dimension_numbers = #tpu.dot_dimension_numbers<[2], [2], [1], [1], [0, 0, 0, 1, 1, 1], [0], [0]>} : vector<4x8x8xbf16>, vector<4x8x8xbf16>, vector<4x8x8xf32> -> vector<4x8x8xf32>
    "tpu.trace_stop"() : () -> ()
    %190 = vector.shape_cast %17 : vector<8x8xf32> to vector<1x8x8xf32>
    %191 = vector.broadcast %190 : vector<1x8x8xf32> to vector<4x8x8xf32>
    %192 = arith.addf %189, %191 : vector<4x8x8xf32>
    %cst_91 = arith.constant dense<0xFF800000> : vector<4x8xf32>
    %193 = vector.multi_reduction <maximumf>, %192, %cst_91 [2] : vector<4x8x8xf32> to vector<4x8xf32>
    %194 = vector.shape_cast %193 : vector<4x8xf32> to vector<4x8x1xf32>
    %195 = vector.broadcast %194 : vector<4x8x1xf32> to vector<4x8x8xf32>
    %196 = arith.subf %192, %195 : vector<4x8x8xf32>
    %197 = math.exp %196 : vector<4x8x8xf32>
    %cst_92 = arith.constant dense<0.000000e+00> : vector<4x8xf32>
    %198 = vector.multi_reduction <add>, %197, %cst_92 [2] : vector<4x8x8xf32> to vector<4x8xf32>
    %199 = vector.shape_cast %198 : vector<4x8xf32> to vector<4x8x1xf32>
    %200 = tpu.reciprocal %199 {approx = true} : vector<4x8x1xf32> -> vector<4x8x1xf32>
    %201 = vector.broadcast %200 : vector<4x8x1xf32> to vector<4x8x8xf32>
    %202 = arith.mulf %197, %201 : vector<4x8x8xf32>
    %203 = arith.truncf %202 : vector<4x8x8xf32> to vector<4x8x8xbf16>
    %204 = arith.truncf %186 : vector<4x8x8xf32> to vector<4x8x8xbf16>
    "tpu.trace_start"() <{level = 10 : i32, message = "hqk,hkd->hqd"}> : () -> ()
    %cst_93 = arith.constant dense<0.000000e+00> : vector<4x8x8xf32>
    %205 = tpu.matmul %203, %204, %cst_93 {dimension_numbers = #tpu.dot_dimension_numbers<[2], [1], [1], [2], [0, 0, 0, 1, 1, 2], [0], [0]>} : vector<4x8x8xbf16>, vector<4x8x8xbf16>, vector<4x8x8xf32> -> vector<4x8x8xf32>
    "tpu.trace_stop"() : () -> ()
    %206 = arith.truncf %205 : vector<4x8x8xf32> to vector<4x8x8xbf16>
    %c1_94 = arith.constant 1 : index
    %c0_95 = arith.constant 0 : index
    %c0_96 = arith.constant 0 : index
    %c0_97 = arith.constant 0 : index
    %207 = vector.load %arg8[%c1_94, %c0_95, %c0_96, %c0_97] : memref<2x4x8x32xbf16, #tpu.memory_space<vmem>>, vector<1x4x8x32xbf16>
    %208 = vector.shape_cast %207 : vector<1x4x8x32xbf16> to vector<4x8x32xbf16>
    "tpu.trace_start"() <{level = 10 : i32, message = "hsd,hde->hse"}> : () -> ()
    %cst_98 = arith.constant dense<0.000000e+00> : vector<4x8x32xf32>
    %209 = tpu.matmul %206, %208, %cst_98 {dimension_numbers = #tpu.dot_dimension_numbers<[2], [1], [1], [2], [0, 0, 0, 1, 1, 2], [0], [0]>} : vector<4x8x8xbf16>, vector<4x8x32xbf16>, vector<4x8x32xf32> -> vector<4x8x32xf32>
    "tpu.trace_stop"() : () -> ()
    %cst_99 = arith.constant dense<0.000000e+00> : vector<8x32xf32>
    %210 = vector.multi_reduction <add>, %209, %cst_99 [0] : vector<4x8x32xf32> to vector<8x32xf32>
    %211 = arith.addf %144, %210 : vector<8x32xf32>
    %c1_100 = arith.constant 1 : index
    %c0_101 = arith.constant 0 : index
    %c0_102 = arith.constant 0 : index
    %212 = vector.load %arg9[%c1_100, %c0_101, %c0_102] : memref<2x1x32xf32, #tpu.memory_space<vmem>>, vector<1x1x32xf32>
    %213 = vector.shape_cast %212 : vector<1x1x32xf32> to vector<1x32xf32>
    %214 = vector.broadcast %213 : vector<1x32xf32> to vector<8x32xf32>
    %215 = arith.addf %211, %214 : vector<8x32xf32>
    %c1_103 = arith.constant 1 : index
    %c0_104 = arith.constant 0 : index
    %c0_105 = arith.constant 0 : index
    %216 = vector.load %arg10[%c1_103, %c0_104, %c0_105] : memref<2x1x32xf32, #tpu.memory_space<vmem>>, vector<1x1x32xf32>
    %217 = vector.shape_cast %216 : vector<1x1x32xf32> to vector<1x32xf32>
    %c1_106 = arith.constant 1 : index
    %c0_107 = arith.constant 0 : index
    %c0_108 = arith.constant 0 : index
    %218 = vector.load %arg11[%c1_106, %c0_107, %c0_108] : memref<2x1x32xf32, #tpu.memory_space<vmem>>, vector<1x1x32xf32>
    %219 = vector.shape_cast %218 : vector<1x1x32xf32> to vector<1x32xf32>
    %cst_109 = arith.constant dense<0.000000e+00> : vector<8xf32>
    %220 = vector.multi_reduction <add>, %215, %cst_109 [1] : vector<8x32xf32> to vector<8xf32>
    %221 = vector.shape_cast %220 : vector<8xf32> to vector<8x1xf32>
    %cst_110 = arith.constant 3.200000e+01 : f32
    %222 = vector.broadcast %cst_110 : f32 to vector<8x1xf32>
    %223 = arith.divf %221, %222 : vector<8x1xf32>
    %224 = vector.broadcast %223 : vector<8x1xf32> to vector<8x32xf32>
    %225 = arith.subf %215, %224 : vector<8x32xf32>
    %226 = arith.mulf %225, %225 : vector<8x32xf32>
    %cst_111 = arith.constant dense<0.000000e+00> : vector<8xf32>
    %227 = vector.multi_reduction <add>, %226, %cst_111 [1] : vector<8x32xf32> to vector<8xf32>
    %228 = vector.shape_cast %227 : vector<8xf32> to vector<8x1xf32>
    %cst_112 = arith.constant 3.200000e+01 : f32
    %229 = vector.broadcast %cst_112 : f32 to vector<8x1xf32>
    %230 = arith.divf %228, %229 : vector<8x1xf32>
    %231 = vector.broadcast %223 : vector<8x1xf32> to vector<8x32xf32>
    %232 = arith.subf %215, %231 : vector<8x32xf32>
    %cst_113 = arith.constant 9.99999974E-6 : f32
    %233 = vector.broadcast %cst_113 : f32 to vector<8x1xf32>
    %234 = arith.addf %230, %233 : vector<8x1xf32>
    %235 = math.rsqrt %234 : vector<8x1xf32>
    %236 = vector.broadcast %235 : vector<8x1xf32> to vector<8x32xf32>
    %237 = arith.mulf %232, %236 : vector<8x32xf32>
    %238 = vector.broadcast %217 : vector<1x32xf32> to vector<8x32xf32>
    %239 = arith.mulf %237, %238 : vector<8x32xf32>
    %240 = vector.broadcast %219 : vector<1x32xf32> to vector<8x32xf32>
    %241 = arith.addf %239, %240 : vector<8x32xf32>
    %242 = arith.truncf %241 : vector<8x32xf32> to vector<8x32xbf16>
    %c1_114 = arith.constant 1 : index
    %c0_115 = arith.constant 0 : index
    %c0_116 = arith.constant 0 : index
    %243 = vector.load %arg12[%c1_114, %c0_115, %c0_116] : memref<2x32x128xbf16, #tpu.memory_space<vmem>>, vector<1x32x128xbf16>
    %244 = vector.shape_cast %243 : vector<1x32x128xbf16> to vector<32x128xbf16>
    %cst_117 = arith.constant dense<0.000000e+00> : vector<8x128xf32>
    %245 = tpu.matmul %242, %244, %cst_117 {dimension_numbers = #tpu.dot_dimension_numbers<[1], [0], [0], [1], [0, 0, 1, 1], [], []>} : vector<8x32xbf16>, vector<32x128xbf16>, vector<8x128xf32> -> vector<8x128xf32>
    %c1_118 = arith.constant 1 : index
    %c0_119 = arith.constant 0 : index
    %c0_120 = arith.constant 0 : index
    %246 = vector.load %arg13[%c1_118, %c0_119, %c0_120] : memref<2x1x128xf32, #tpu.memory_space<vmem>>, vector<1x1x128xf32>
    %247 = vector.shape_cast %246 : vector<1x1x128xf32> to vector<1x128xf32>
    %248 = vector.broadcast %247 : vector<1x128xf32> to vector<8x128xf32>
    %249 = arith.addf %245, %248 : vector<8x128xf32>
    %cst_121 = arith.constant 5.000000e-01 : f32
    %250 = vector.broadcast %cst_121 : f32 to vector<8x128xf32>
    %251 = arith.mulf %250, %249 : vector<8x128xf32>
    %252 = arith.mulf %249, %249 : vector<8x128xf32>
    %253 = arith.mulf %252, %249 : vector<8x128xf32>
    %cst_122 = arith.constant 4.471500e-02 : f32
    %254 = vector.broadcast %cst_122 : f32 to vector<8x128xf32>
    %255 = arith.mulf %254, %253 : vector<8x128xf32>
    %256 = arith.addf %249, %255 : vector<8x128xf32>
    %cst_123 = arith.constant 0.797884583 : f32
    %257 = vector.broadcast %cst_123 : f32 to vector<8x128xf32>
    %258 = arith.mulf %257, %256 : vector<8x128xf32>
    %259 = math.tanh %258 : vector<8x128xf32>
    %cst_124 = arith.constant 1.000000e+00 : f32
    %260 = vector.broadcast %cst_124 : f32 to vector<8x128xf32>
    %261 = arith.addf %260, %259 : vector<8x128xf32>
    %262 = arith.mulf %251, %261 : vector<8x128xf32>
    %263 = arith.truncf %262 : vector<8x128xf32> to vector<8x128xbf16>
    %c1_125 = arith.constant 1 : index
    %c0_126 = arith.constant 0 : index
    %c0_127 = arith.constant 0 : index
    %264 = vector.load %arg14[%c1_125, %c0_126, %c0_127] : memref<2x128x32xbf16, #tpu.memory_space<vmem>>, vector<1x128x32xbf16>
    %265 = vector.shape_cast %264 : vector<1x128x32xbf16> to vector<128x32xbf16>
    %cst_128 = arith.constant dense<0.000000e+00> : vector<8x32xf32>
    %266 = tpu.matmul %263, %265, %cst_128 {dimension_numbers = #tpu.dot_dimension_numbers<[1], [0], [0], [1], [0, 0, 1, 1], [], []>} : vector<8x128xbf16>, vector<128x32xbf16>, vector<8x32xf32> -> vector<8x32xf32>
    %267 = arith.addf %215, %266 : vector<8x32xf32>
    %c1_129 = arith.constant 1 : index
    %c0_130 = arith.constant 0 : index
    %c0_131 = arith.constant 0 : index
    %268 = vector.load %arg15[%c1_129, %c0_130, %c0_131] : memref<2x1x32xf32, #tpu.memory_space<vmem>>, vector<1x1x32xf32>
    %269 = vector.shape_cast %268 : vector<1x1x32xf32> to vector<1x32xf32>
    %270 = vector.broadcast %269 : vector<1x32xf32> to vector<8x32xf32>
    %271 = arith.addf %267, %270 : vector<8x32xf32>
    %c0_132 = arith.constant 0 : index
    %c0_133 = arith.constant 0 : index
    %272 = vector.load %arg16[%c0_132, %c0_133] : memref<1x32xf32, #tpu.memory_space<vmem>>, vector<1x32xf32>
    %c0_134 = arith.constant 0 : index
    %c0_135 = arith.constant 0 : index
    %273 = vector.load %arg17[%c0_134, %c0_135] : memref<1x32xf32, #tpu.memory_space<vmem>>, vector<1x32xf32>
    %cst_136 = arith.constant dense<0.000000e+00> : vector<8xf32>
    %274 = vector.multi_reduction <add>, %271, %cst_136 [1] : vector<8x32xf32> to vector<8xf32>
    %275 = vector.shape_cast %274 : vector<8xf32> to vector<8x1xf32>
    %cst_137 = arith.constant 3.200000e+01 : f32
    %276 = vector.broadcast %cst_137 : f32 to vector<8x1xf32>
    %277 = arith.divf %275, %276 : vector<8x1xf32>
    %278 = vector.broadcast %277 : vector<8x1xf32> to vector<8x32xf32>
    %279 = arith.subf %271, %278 : vector<8x32xf32>
    %280 = arith.mulf %279, %279 : vector<8x32xf32>
    %cst_138 = arith.constant dense<0.000000e+00> : vector<8xf32>
    %281 = vector.multi_reduction <add>, %280, %cst_138 [1] : vector<8x32xf32> to vector<8xf32>
    %282 = vector.shape_cast %281 : vector<8xf32> to vector<8x1xf32>
    %cst_139 = arith.constant 3.200000e+01 : f32
    %283 = vector.broadcast %cst_139 : f32 to vector<8x1xf32>
    %284 = arith.divf %282, %283 : vector<8x1xf32>
    %285 = vector.broadcast %277 : vector<8x1xf32> to vector<8x32xf32>
    %286 = arith.subf %271, %285 : vector<8x32xf32>
    %cst_140 = arith.constant 9.99999974E-6 : f32
    %287 = vector.broadcast %cst_140 : f32 to vector<8x1xf32>
    %288 = arith.addf %284, %287 : vector<8x1xf32>
    %289 = math.rsqrt %288 : vector<8x1xf32>
    %290 = vector.broadcast %289 : vector<8x1xf32> to vector<8x32xf32>
    %291 = arith.mulf %286, %290 : vector<8x32xf32>
    %292 = vector.broadcast %272 : vector<1x32xf32> to vector<8x32xf32>
    %293 = arith.mulf %291, %292 : vector<8x32xf32>
    %294 = vector.broadcast %273 : vector<1x32xf32> to vector<8x32xf32>
    %295 = arith.addf %293, %294 : vector<8x32xf32>
    %296 = arith.truncf %295 : vector<8x32xf32> to vector<8x32xbf16>
    %c0_141 = arith.constant 0 : index
    %c0_142 = arith.constant 0 : index
    %297 = vector.load %arg18[%c0_141, %c0_142] : memref<32x512xbf16, #tpu.memory_space<vmem>>, vector<32x512xbf16>
    %cst_143 = arith.constant dense<0.000000e+00> : vector<8x512xf32>
    %298 = tpu.matmul %296, %297, %cst_143 {dimension_numbers = #tpu.dot_dimension_numbers<[1], [0], [0], [1], [0, 0, 1, 1], [], []>} : vector<8x32xbf16>, vector<32x512xbf16>, vector<8x512xf32> -> vector<8x512xf32>
    %c0_144 = arith.constant 0 : index
    %c0_145 = arith.constant 0 : index
    %299 = vector.load %arg19[%c0_144, %c0_145] : memref<8x512xf32, #tpu.memory_space<vmem>>, vector<8x512xf32>
    tpu.vector_store %arg19[%c0_144, %c0_145], %298 {strides = array<i32>} : memref<8x512xf32, #tpu.memory_space<vmem>>, vector<8x512xf32>,
    return
  }
  func.func @transform_0(%arg0: i32) -> (i32, i32) {
    %c0_i32 = arith.constant 0 : i32
    %c0_i32_0 = arith.constant 0 : i32
    return %arg0, %c0_i32 : i32, i32
  }
  func.func @transform_1(%arg0: i32) -> (i32, i32) {
    %c0_i32 = arith.constant 0 : i32
    %c0_i32_0 = arith.constant 0 : i32
    %c0_i32_1 = arith.constant 0 : i32
    return %c0_i32, %c0_i32_0 : i32, i32
  }
  func.func @transform_2(%arg0: i32) -> (i32, i32) {
    %c0_i32 = arith.constant 0 : i32
    %c0_i32_0 = arith.constant 0 : i32
    %c0_i32_1 = arith.constant 0 : i32
    return %c0_i32, %c0_i32_0 : i32, i32
  }
  func.func @transform_3(%arg0: i32) -> (i32, i32, i32) {
    %c0_i32 = arith.constant 0 : i32
    %c0_i32_0 = arith.constant 0 : i32
    %c0_i32_1 = arith.constant 0 : i32
    %c0_i32_2 = arith.constant 0 : i32
    return %c0_i32, %c0_i32_0, %c0_i32_1 : i32, i32, i32
  }
  func.func @transform_4(%arg0: i32) -> (i32, i32, i32) {
    %c0_i32 = arith.constant 0 : i32
    %c0_i32_0 = arith.constant 0 : i32
    %c0_i32_1 = arith.constant 0 : i32
    %c0_i32_2 = arith.constant 0 : i32
    return %c0_i32, %c0_i32_0, %c0_i32_1 : i32, i32, i32
  }
  func.func @transform_5(%arg0: i32) -> (i32, i32, i32, i32) {
    %c0_i32 = arith.constant 0 : i32
    %c0_i32_0 = arith.constant 0 : i32
    %c0_i32_1 = arith.constant 0 : i32
    %c0_i32_2 = arith.constant 0 : i32
    %c0_i32_3 = arith.constant 0 : i32
    return %c0_i32, %c0_i32_0, %c0_i32_1, %c0_i32_2 : i32, i32, i32, i32
  }
  func.func @transform_6(%arg0: i32) -> (i32, i32, i32, i32) {
    %c0_i32 = arith.constant 0 : i32
    %c0_i32_0 = arith.constant 0 : i32
    %c0_i32_1 = arith.constant 0 : i32
    %c0_i32_2 = arith.constant 0 : i32
    %c0_i32_3 = arith.constant 0 : i32
    return %c0_i32, %c0_i32_0, %c0_i32_1, %c0_i32_2 : i32, i32, i32, i32
  }
  func.func @transform_7(%arg0: i32) -> (i32, i32, i32, i32) {
    %c0_i32 = arith.constant 0 : i32
    %c0_i32_0 = arith.constant 0 : i32
    %c0_i32_1 = arith.constant 0 : i32
    %c0_i32_2 = arith.constant 0 : i32
    %c0_i32_3 = arith.constant 0 : i32
    return %c0_i32, %c0_i32_0, %c0_i32_1, %c0_i32_2 : i32, i32, i32, i32
  }
  func.func @transform_8(%arg0: i32) -> (i32, i32, i32) {
    %c0_i32 = arith.constant 0 : i32
    %c0_i32_0 = arith.constant 0 : i32
    %c0_i32_1 = arith.constant 0 : i32
    %c0_i32_2 = arith.constant 0 : i32
    return %c0_i32, %c0_i32_0, %c0_i32_1 : i32, i32, i32
  }
  func.func @transform_9(%arg0: i32) -> (i32, i32, i32) {
    %c0_i32 = arith.constant 0 : i32
    %c0_i32_0 = arith.constant 0 : i32
    %c0_i32_1 = arith.constant 0 : i32
    %c0_i32_2 = arith.constant 0 : i32
    return %c0_i32, %c0_i32_0, %c0_i32_1 : i32, i32, i32
  }
  func.func @transform_10(%arg0: i32) -> (i32, i32, i32) {
    %c0_i32 = arith.constant 0 : i32
    %c0_i32_0 = arith.constant 0 : i32
    %c0_i32_1 = arith.constant 0 : i32
    %c0_i32_2 = arith.constant 0 : i32
    return %c0_i32, %c0_i32_0, %c0_i32_1 : i32, i32, i32
  }
  func.func @transform_11(%arg0: i32) -> (i32, i32, i32) {
    %c0_i32 = arith.constant 0 : i32
    %c0_i32_0 = arith.constant 0 : i32
    %c0_i32_1 = arith.constant 0 : i32
    %c0_i32_2 = arith.constant 0 : i32
    return %c0_i32, %c0_i32_0, %c0_i32_1 : i32, i32, i32
  }
  func.func @transform_12(%arg0: i32) -> (i32, i32, i32) {
    %c0_i32 = arith.constant 0 : i32
    %c0_i32_0 = arith.constant 0 : i32
    %c0_i32_1 = arith.constant 0 : i32
    %c0_i32_2 = arith.constant 0 : i32
    return %c0_i32, %c0_i32_0, %c0_i32_1 : i32, i32, i32
  }
  func.func @transform_13(%arg0: i32) -> (i32, i32, i32) {
    %c0_i32 = arith.constant 0 : i32
    %c0_i32_0 = arith.constant 0 : i32
    %c0_i32_1 = arith.constant 0 : i32
    %c0_i32_2 = arith.constant 0 : i32
    return %c0_i32, %c0_i32_0, %c0_i32_1 : i32, i32, i32
  }
  func.func @transform_14(%arg0: i32) -> (i32, i32, i32) {
    %c0_i32 = arith.constant 0 : i32
    %c0_i32_0 = arith.constant 0 : i32
    %c0_i32_1 = arith.constant 0 : i32
    %c0_i32_2 = arith.constant 0 : i32
    return %c0_i32, %c0_i32_0, %c0_i32_1 : i32, i32, i32
  }
  func.func @transform_15(%arg0: i32) -> (i32, i32) {
    %c0_i32 = arith.constant 0 : i32
    %c0_i32_0 = arith.constant 0 : i32
    %c0_i32_1 = arith.constant 0 : i32
    return %c0_i32, %c0_i32_0 : i32, i32
  }
  func.func @transform_16(%arg0: i32) -> (i32, i32) {
    %c0_i32 = arith.constant 0 : i32
    %c0_i32_0 = arith.constant 0 : i32
    %c0_i32_1 = arith.constant 0 : i32
    return %c0_i32, %c0_i32_0 : i32, i32
  }
  func.func @transform_17(%arg0: i32) -> (i32, i32) {
    %c0_i32 = arith.constant 0 : i32
    %c0_i32_0 = arith.constant 0 : i32
    %c0_i32_1 = arith.constant 0 : i32
    return %c0_i32, %c0_i32_0 : i32, i32
  }
  func.func @transform_18(%arg0: i32) -> (i32, i32) {
    %c0_i32 = arith.constant 0 : i32
    %c0_i32_0 = arith.constant 0 : i32
    return %arg0, %c0_i32 : i32, i32
  }
}

</mosaic_0001>

<llo_original>
// kernel: gpt2_forward.1
$region0: #{gpt2_forward.1}
  #allocation0 [shape = 'u32[]', space=smem, size = 0x4, offset = 0x4, fixed_abs, tag = 'smem constant byte address 0x4 - core index']
  #allocation1 [shape = 'u32[144,128]{1,0:T(1,128)}', space=vmem, size = 0x12000, scoped, tag = 'internal scratch']
  %s0 = inlined_call_operand.vmem [shape: s32[16,1], index: 0, kind: input, shape index: {}]
  %s1 = inlined_call_operand.vmem [shape: f32[512,32], index: 1, kind: input, shape index: {}]
  %s2 = inlined_call_operand.vmem [shape: f32[32,32], index: 2, kind: input, shape index: {}]
  %s3 = inlined_call_operand.vmem [shape: f32[2,1,32], index: 3, kind: input, shape index: {}]
  %s4 = inlined_call_operand.vmem [shape: f32[2,1,32], index: 4, kind: input, shape index: {}]
  %s5 = inlined_call_operand.vmem [shape: bf16[2,12,32,8], index: 5, kind: input, shape index: {}]
  %s6 = inlined_call_operand.vmem [shape: f32[2,12,1,8], index: 6, kind: input, shape index: {}]
  %s7 = inlined_call_operand.vmem [shape: bf16[2,4,8,32], index: 7, kind: input, shape index: {}]
  %s8 = inlined_call_operand.vmem [shape: f32[2,1,32], index: 8, kind: input, shape index: {}]
  %s9 = inlined_call_operand.vmem [shape: f32[2,1,32], index: 9, kind: input, shape index: {}]
  %s10 = inlined_call_operand.vmem [shape: f32[2,1,32], index: 10, kind: input, shape index: {}]
  %s11 = inlined_call_operand.vmem [shape: bf16[2,32,128], index: 11, kind: input, shape index: {}]
  %s12 = inlined_call_operand.vmem [shape: f32[2,1,128], index: 12, kind: input, shape index: {}]
  %s13 = inlined_call_operand.vmem [shape: bf16[2,128,32], index: 13, kind: input, shape index: {}]
  %s14 = inlined_call_operand.vmem [shape: f32[2,1,32], index: 14, kind: input, shape index: {}]
  %s15 = inlined_call_operand.vmem [shape: f32[1,32], index: 15, kind: input, shape index: {}]
  %s16 = inlined_call_operand.vmem [shape: f32[1,32], index: 16, kind: input, shape index: {}]
  %s17 = inlined_call_operand.vmem [shape: bf16[32,512], index: 17, kind: input, shape index: {}]
  %s18 = inlined_call_operand.hbm [shape: f32[16,512], index: 18, kind: output, shape index: {}]
  %s19 = sld [smem:[#allocation0]]
  $region105: #{gpt2_forward.1} parent=0
    _
  %s21 = ssub.s32 1, %s19
  %s22 = scalar_select 0, %s21, %s19
  $region1: #{gpt2_forward.1} parent=0
    #allocation2 [shape = 'u8[32768]{0}', space=vmem, size = 0x8000, scoped, tag = 'output window, operand 0']
    #allocation3 [shape = 's32[2]{0}', space=sflag, size = 0x8, scoped, tag = 'scoped memory for gpt2_forward.1']
    %23 = vsyncpa [#allocation3], 0
    %s24 = scalar_lea.sflag [#allocation3], 1
    %25 = vsyncpa %s24, 0
    loop: start=0, step=1, limit=4
    $region2: #{gpt2_forward.1} parent=1 // loop_pre_header
      _
    $region3: #{gpt2_forward.1} parent=1 // loop_header
      %s27 = sphi 0, %s31
      %p28 = scmp.ge.s32.totalorder %s27, 4
      %s37 = sphi 0, %s39
      %s40 = sphi 0, %s37
      %s41 = sphi 0, %s40
      %s57 = sphi 0, %s41
      %s61 = sphi 0, %s61
      %s63 = sphi 0, %s61
      %s64 = sphi 0, %s63
      %s78 = sphi 0, %s64
      %s82 = sphi 0, %s82
      %s84 = sphi 0, %s82
      %s85 = sphi 0, %s84
      %s99 = sphi 0, %s85
      %s103 = sphi 0, %s103
      %s105 = sphi 0, %s103
      %s106 = sphi 0, %s105
      %s120 = sphi 0, %s106
      %s124 = sphi 0, %s124
      %s126 = sphi 0, %s124
      %s127 = sphi 0, %s126
      %s141 = sphi 0, %s127
      %s145 = sphi 0, %s145
      %s147 = sphi 0, %s145
      %s148 = sphi 0, %s147
      %s162 = sphi 0, %s148
      %s166 = sphi 0, %s166
      %s168 = sphi 0, %s166
      %s169 = sphi 0, %s168
      %s183 = sphi 0, %s169
      %s187 = sphi 0, %s187
      %s189 = sphi 0, %s187
      %s190 = sphi 0, %s189
      %s204 = sphi 0, %s190
      %s208 = sphi 0, %s208
      %s210 = sphi 0, %s208
      %s211 = sphi 0, %s210
      %s225 = sphi 0, %s211
      %s229 = sphi 0, %s229
      %s231 = sphi 0, %s229
      %s232 = sphi 0, %s231
      %s246 = sphi 0, %s232
      %s250 = sphi 0, %s250
      %s252 = sphi 0, %s250
      %s253 = sphi 0, %s252
      %s267 = sphi 0, %s253
      %s271 = sphi 0, %s271
      %s273 = sphi 0, %s271
      %s274 = sphi 0, %s273
      %s288 = sphi 0, %s274
      %s292 = sphi 0, %s292
      %s294 = sphi 0, %s292
      %s295 = sphi 0, %s294
      %s309 = sphi 0, %s295
      %s313 = sphi 0, %s313
      %s315 = sphi 0, %s313
      %s316 = sphi 0, %s315
      %s330 = sphi 0, %s316
      %s334 = sphi 0, %s334
      %s336 = sphi 0, %s334
      %s337 = sphi 0, %s336
      %s351 = sphi 0, %s337
      %s355 = sphi 0, %s355
      %s357 = sphi 0, %s355
      %s358 = sphi 0, %s357
      %s372 = sphi 0, %s358
      %s376 = sphi 0, %s376
      %s378 = sphi 0, %s376
      %s379 = sphi 0, %s378
      %s393 = sphi 0, %s379
      %s397 = sphi 0, %s397
      %s399 = sphi 0, %s397
      %s400 = sphi 0, %s399
      %s414 = sphi 0, %s400
      %s420 = sphi 0, %s422
      %s423 = sphi 0, %s420
      %s424 = sphi 0, %s423
      %s440 = sphi 0, %s424
    $region4: #{gpt2_forward.1} parent=1 // loop_header_branch
      %30 = sbr.rel (%p28) target = $region8
    $region5: #{gpt2_forward.1} parent=1 // loop_body
      %s32 = ssub.s32 %s27, 1
      %s33 = ssub.s32 %s27, 2
      %s34 = sadd.s32 %s27, 1
      %s35 = ssub.s32 %s27, %s34
      %p36 = scmp.eq.s32.totalorder %s35, 0
      %s38 = sadd.s32 %s37, 1
      %s39 = scalar_select %p36, %s37, %s38
      %p42 = pneg %p36
      %p43 = scmp.eq.s32.totalorder %s27, 1
      %p44 = por %p42, %p43
      %p45 = scmp.ne.s32.totalorder %s37, %s40
      %p46 = scmp.eq.s32.totalorder %s27, 0
      %p47 = por %p45, %p46
      %p48 = scmp.ne.s32.totalorder %s37, %s40
      %p49 = scmp.eq.s32.totalorder %s32, 1
      %p50 = por %p48, %p49
      %p51 = scmp.ne.s32.totalorder %s40, %s41
      %p52 = scmp.eq.s32.totalorder %s32, 0
      %p53 = por %p51, %p52
      %p54 = scmp.ne.s32.totalorder %s40, %s41
      %p55 = scmp.eq.s32.totalorder %s33, 1
      %p56 = por %p54, %p55
      %p58 = scmp.ne.s32.totalorder %s41, %s57
      %p59 = scmp.eq.s32.totalorder %s33, 0
      %p60 = por %p58, %p59
      %s62 = sadd.s32 %s61, 1
      %p65 = scmp.eq.s32.totalorder %s27, 1
      %p66 = scmp.ne.s32.totalorder %s61, %s63
      %p67 = scmp.eq.s32.totalorder %s27, 0
      %p68 = por %p66, %p67
      %p69 = scmp.ne.s32.totalorder %s61, %s63
      %p70 = scmp.eq.s32.totalorder %s32, 1
      %p71 = por %p69, %p70
      %p72 = scmp.ne.s32.totalorder %s63, %s64
      %p73 = scmp.eq.s32.totalorder %s32, 0
      %p74 = por %p72, %p73
      %p75 = scmp.ne.s32.totalorder %s63, %s64
      %p76 = scmp.eq.s32.totalorder %s33, 1
      %p77 = por %p75, %p76
      %p79 = scmp.ne.s32.totalorder %s64, %s78
      %p80 = scmp.eq.s32.totalorder %s33, 0
      %p81 = por %p79, %p80
      %s83 = sadd.s32 %s82, 1
      %p86 = scmp.eq.s32.totalorder %s27, 1
      %p87 = scmp.ne.s32.totalorder %s82, %s84
      %p88 = scmp.eq.s32.totalorder %s27, 0
      %p89 = por %p87, %p88
      %p90 = scmp.ne.s32.totalorder %s82, %s84
      %p91 = scmp.eq.s32.totalorder %s32, 1
      %p92 = por %p90, %p91
      %p93 = scmp.ne.s32.totalorder %s84, %s85
      %p94 = scmp.eq.s32.totalorder %s32, 0
      %p95 = por %p93, %p94
      %p96 = scmp.ne.s32.totalorder %s84, %s85
      %p97 = scmp.eq.s32.totalorder %s33, 1
      %p98 = por %p96, %p97
      %p100 = scmp.ne.s32.totalorder %s85, %s99
      %p101 = scmp.eq.s32.totalorder %s33, 0
      %p102 = por %p100, %p101
      %s104 = sadd.s32 %s103, 1
      %p107 = scmp.eq.s32.totalorder %s27, 1
      %p108 = scmp.ne.s32.totalorder %s103, %s105
      %p109 = scmp.eq.s32.totalorder %s27, 0
      %p110 = por %p108, %p109
      %p111 = scmp.ne.s32.totalorder %s103, %s105
      %p112 = scmp.eq.s32.totalorder %s32, 1
      %p113 = por %p111, %p112
      %p114 = scmp.ne.s32.totalorder %s105, %s106
      %p115 = scmp.eq.s32.totalorder %s32, 0
      %p116 = por %p114, %p115
      %p117 = scmp.ne.s32.totalorder %s105, %s106
      %p118 = scmp.eq.s32.totalorder %s33, 1
      %p119 = por %p117, %p118
      %p121 = scmp.ne.s32.totalorder %s106, %s120
      %p122 = scmp.eq.s32.totalorder %s33, 0
      %p123 = por %p121, %p122
      %s125 = sadd.s32 %s124, 1
      %p128 = scmp.eq.s32.totalorder %s27, 1
      %p129 = scmp.ne.s32.totalorder %s124, %s126
      %p130 = scmp.eq.s32.totalorder %s27, 0
      %p131 = por %p129, %p130
      %p132 = scmp.ne.s32.totalorder %s124, %s126
      %p133 = scmp.eq.s32.totalorder %s32, 1
      %p134 = por %p132, %p133
      %p135 = scmp.ne.s32.totalorder %s126, %s127
      %p136 = scmp.eq.s32.totalorder %s32, 0
      %p137 = por %p135, %p136
      %p138 = scmp.ne.s32.totalorder %s126, %s127
      %p139 = scmp.eq.s32.totalorder %s33, 1
      %p140 = por %p138, %p139
      %p142 = scmp.ne.s32.totalorder %s127, %s141
      %p143 = scmp.eq.s32.totalorder %s33, 0
      %p144 = por %p142, %p143
      %s146 = sadd.s32 %s145, 1
      %p149 = scmp.eq.s32.totalorder %s27, 1
      %p150 = scmp.ne.s32.totalorder %s145, %s147
      %p151 = scmp.eq.s32.totalorder %s27, 0
      %p152 = por %p150, %p151
      %p153 = scmp.ne.s32.totalorder %s145, %s147
      %p154 = scmp.eq.s32.totalorder %s32, 1
      %p155 = por %p153, %p154
      %p156 = scmp.ne.s32.totalorder %s147, %s148
      %p157 = scmp.eq.s32.totalorder %s32, 0
      %p158 = por %p156, %p157
      %p159 = scmp.ne.s32.totalorder %s147, %s148
      %p160 = scmp.eq.s32.totalorder %s33, 1
      %p161 = por %p159, %p160
      %p163 = scmp.ne.s32.totalorder %s148, %s162
      %p164 = scmp.eq.s32.totalorder %s33, 0
      %p165 = por %p163, %p164
      %s167 = sadd.s32 %s166, 1
      %p170 = scmp.eq.s32.totalorder %s27, 1
      %p171 = scmp.ne.s32.totalorder %s166, %s168
      %p172 = scmp.eq.s32.totalorder %s27, 0
      %p173 = por %p171, %p172
      %p174 = scmp.ne.s32.totalorder %s166, %s168
      %p175 = scmp.eq.s32.totalorder %s32, 1
      %p176 = por %p174, %p175
      %p177 = scmp.ne.s32.totalorder %s168, %s169
      %p178 = scmp.eq.s32.totalorder %s32, 0
      %p179 = por %p177, %p178
      %p180 = scmp.ne.s32.totalorder %s168, %s169
      %p181 = scmp.eq.s32.totalorder %s33, 1
      %p182 = por %p180, %p181
      %p184 = scmp.ne.s32.totalorder %s169, %s183
      %p185 = scmp.eq.s32.totalorder %s33, 0
      %p186 = por %p184, %p185
      %s188 = sadd.s32 %s187, 1
      %p191 = scmp.eq.s32.totalorder %s27, 1
      %p192 = scmp.ne.s32.totalorder %s187, %s189
      %p193 = scmp.eq.s32.totalorder %s27, 0
      %p194 = por %p192, %p193
      %p195 = scmp.ne.s32.totalorder %s187, %s189
      %p196 = scmp.eq.s32.totalorder %s32, 1
      %p197 = por %p195, %p196
      %p198 = scmp.ne.s32.totalorder %s189, %s190
      %p199 = scmp.eq.s32.totalorder %s32, 0
      %p200 = por %p198, %p199
      %p201 = scmp.ne.s32.totalorder %s189, %s190
      %p202 = scmp.eq.s32.totalorder %s33, 1
      %p203 = por %p201, %p202
      %p205 = scmp.ne.s32.totalorder %s190, %s204
      %p206 = scmp.eq.s32.totalorder %s33, 0
      %p207 = por %p205, %p206
      %s209 = sadd.s32 %s208, 1
      %p212 = scmp.eq.s32.totalorder %s27, 1
      %p213 = scmp.ne.s32.totalorder %s208, %s210
      %p214 = scmp.eq.s32.totalorder %s27, 0
      %p215 = por %p213, %p214
      %p216 = scmp.ne.s32.totalorder %s208, %s210
      %p217 = scmp.eq.s32.totalorder %s32, 1
      %p218 = por %p216, %p217
      %p219 = scmp.ne.s32.totalorder %s210, %s211
      %p220 = scmp.eq.s32.totalorder %s32, 0
      %p221 = por %p219, %p220
      %p222 = scmp.ne.s32.totalorder %s210, %s211
      %p223 = scmp.eq.s32.totalorder %s33, 1
      %p224 = por %p222, %p223
      %p226 = scmp.ne.s32.totalorder %s211, %s225
      %p227 = scmp.eq.s32.totalorder %s33, 0
      %p228 = por %p226, %p227
      %s230 = sadd.s32 %s229, 1
      %p233 = scmp.eq.s32.totalorder %s27, 1
      %p234 = scmp.ne.s32.totalorder %s229, %s231
      %p235 = scmp.eq.s32.totalorder %s27, 0
      %p236 = por %p234, %p235
      %p237 = scmp.ne.s32.totalorder %s229, %s231
      %p238 = scmp.eq.s32.totalorder %s32, 1
      %p239 = por %p237, %p238
      %p240 = scmp.ne.s32.totalorder %s231, %s232
      %p241 = scmp.eq.s32.totalorder %s32, 0
      %p242 = por %p240, %p241
      %p243 = scmp.ne.s32.totalorder %s231, %s232
      %p244 = scmp.eq.s32.totalorder %s33, 1
      %p245 = por %p243, %p244
      %p247 = scmp.ne.s32.totalorder %s232, %s246
      %p248 = scmp.eq.s32.totalorder %s33, 0
      %p249 = por %p247, %p248
      %s251 = sadd.s32 %s250, 1
      %p254 = scmp.eq.s32.totalorder %s27, 1
      %p255 = scmp.ne.s32.totalorder %s250, %s252
      %p256 = scmp.eq.s32.totalorder %s27, 0
      %p257 = por %p255, %p256
      %p258 = scmp.ne.s32.totalorder %s250, %s252
      %p259 = scmp.eq.s32.totalorder %s32, 1
      %p260 = por %p258, %p259
      %p261 = scmp.ne.s32.totalorder %s252, %s253
      %p262 = scmp.eq.s32.totalorder %s32, 0
      %p263 = por %p261, %p262
      %p264 = scmp.ne.s32.totalorder %s252, %s253
      %p265 = scmp.eq.s32.totalorder %s33, 1
      %p266 = por %p264, %p265
      %p268 = scmp.ne.s32.totalorder %s253, %s267
      %p269 = scmp.eq.s32.totalorder %s33, 0
      %p270 = por %p268, %p269
      %s272 = sadd.s32 %s271, 1
      %p275 = scmp.eq.s32.totalorder %s27, 1
      %p276 = scmp.ne.s32.totalorder %s271, %s273
      %p277 = scmp.eq.s32.totalorder %s27, 0
      %p278 = por %p276, %p277
      %p279 = scmp.ne.s32.totalorder %s271, %s273
      %p280 = scmp.eq.s32.totalorder %s32, 1
      %p281 = por %p279, %p280
      %p282 = scmp.ne.s32.totalorder %s273, %s274
      %p283 = scmp.eq.s32.totalorder %s32, 0
      %p284 = por %p282, %p283
      %p285 = scmp.ne.s32.totalorder %s273, %s274
      %p286 = scmp.eq.s32.totalorder %s33, 1
      %p287 = por %p285, %p286
      %p289 = scmp.ne.s32.totalorder %s274, %s288
      %p290 = scmp.eq.s32.totalorder %s33, 0
      %p291 = por %p289, %p290
      %s293 = sadd.s32 %s292, 1
      %p296 = scmp.eq.s32.totalorder %s27, 1
      %p297 = scmp.ne.s32.totalorder %s292, %s294
      %p298 = scmp.eq.s32.totalorder %s27, 0
      %p299 = por %p297, %p298
      %p300 = scmp.ne.s32.totalorder %s292, %s294
      %p301 = scmp.eq.s32.totalorder %s32, 1
      %p302 = por %p300, %p301
      %p303 = scmp.ne.s32.totalorder %s294, %s295
      %p304 = scmp.eq.s32.totalorder %s32, 0
      %p305 = por %p303, %p304
      %p306 = scmp.ne.s32.totalorder %s294, %s295
      %p307 = scmp.eq.s32.totalorder %s33, 1
      %p308 = por %p306, %p307
      %p310 = scmp.ne.s32.totalorder %s295, %s309
      %p311 = scmp.eq.s32.totalorder %s33, 0
      %p312 = por %p310, %p311
      %s314 = sadd.s32 %s313, 1
      %p317 = scmp.eq.s32.totalorder %s27, 1
      %p318 = scmp.ne.s32.totalorder %s313, %s315
      %p319 = scmp.eq.s32.totalorder %s27, 0
      %p320 = por %p318, %p319
      %p321 = scmp.ne.s32.totalorder %s313, %s315
      %p322 = scmp.eq.s32.totalorder %s32, 1
      %p323 = por %p321, %p322
      %p324 = scmp.ne.s32.totalorder %s315, %s316
      %p325 = scmp.eq.s32.totalorder %s32, 0
      %p326 = por %p324, %p325
      %p327 = scmp.ne.s32.totalorder %s315, %s316
      %p328 = scmp.eq.s32.totalorder %s33, 1
      %p329 = por %p327, %p328
      %p331 = scmp.ne.s32.totalorder %s316, %s330
      %p332 = scmp.eq.s32.totalorder %s33, 0
      %p333 = por %p331, %p332
      %s335 = sadd.s32 %s334, 1
      %p338 = scmp.eq.s32.totalorder %s27, 1
      %p339 = scmp.ne.s32.totalorder %s334, %s336
      %p340 = scmp.eq.s32.totalorder %s27, 0
      %p341 = por %p339, %p340
      %p342 = scmp.ne.s32.totalorder %s334, %s336
      %p343 = scmp.eq.s32.totalorder %s32, 1
      %p344 = por %p342, %p343
      %p345 = scmp.ne.s32.totalorder %s336, %s337
      %p346 = scmp.eq.s32.totalorder %s32, 0
      %p347 = por %p345, %p346
      %p348 = scmp.ne.s32.totalorder %s336, %s337
      %p349 = scmp.eq.s32.totalorder %s33, 1
      %p350 = por %p348, %p349
      %p352 = scmp.ne.s32.totalorder %s337, %s351
      %p353 = scmp.eq.s32.totalorder %s33, 0
      %p354 = por %p352, %p353
      %s356 = sadd.s32 %s355, 1
      %p359 = scmp.eq.s32.totalorder %s27, 1
      %p360 = scmp.ne.s32.totalorder %s355, %s357
      %p361 = scmp.eq.s32.totalorder %s27, 0
      %p362 = por %p360, %p361
      %p363 = scmp.ne.s32.totalorder %s355, %s357
      %p364 = scmp.eq.s32.totalorder %s32, 1
      %p365 = por %p363, %p364
      %p366 = scmp.ne.s32.totalorder %s357, %s358
      %p367 = scmp.eq.s32.totalorder %s32, 0
      %p368 = por %p366, %p367
      %p369 = scmp.ne.s32.totalorder %s357, %s358
      %p370 = scmp.eq.s32.totalorder %s33, 1
      %p371 = por %p369, %p370
      %p373 = scmp.ne.s32.totalorder %s358, %s372
      %p374 = scmp.eq.s32.totalorder %s33, 0
      %p375 = por %p373, %p374
      %s377 = sadd.s32 %s376, 1
      %p380 = scmp.eq.s32.totalorder %s27, 1
      %p381 = scmp.ne.s32.totalorder %s376, %s378
      %p382 = scmp.eq.s32.totalorder %s27, 0
      %p383 = por %p381, %p382
      %p384 = scmp.ne.s32.totalorder %s376, %s378
      %p385 = scmp.eq.s32.totalorder %s32, 1
      %p386 = por %p384, %p385
      %p387 = scmp.ne.s32.totalorder %s378, %s379
      %p388 = scmp.eq.s32.totalorder %s32, 0
      %p389 = por %p387, %p388
      %p390 = scmp.ne.s32.totalorder %s378, %s379
      %p391 = scmp.eq.s32.totalorder %s33, 1
      %p392 = por %p390, %p391
      %p394 = scmp.ne.s32.totalorder %s379, %s393
      %p395 = scmp.eq.s32.totalorder %s33, 0
      %p396 = por %p394, %p395
      %s398 = sadd.s32 %s397, 1
      %p401 = scmp.eq.s32.totalorder %s27, 1
      %p402 = scmp.ne.s32.totalorder %s397, %s399
      %p403 = scmp.eq.s32.totalorder %s27, 0
      %p404 = por %p402, %p403
      %p405 = scmp.ne.s32.totalorder %s397, %s399
      %p406 = scmp.eq.s32.totalorder %s32, 1
      %p407 = por %p405, %p406
      %p408 = scmp.ne.s32.totalorder %s399, %s400
      %p409 = scmp.eq.s32.totalorder %s32, 0
      %p410 = por %p408, %p409
      %p411 = scmp.ne.s32.totalorder %s399, %s400
      %p412 = scmp.eq.s32.totalorder %s33, 1
      %p413 = por %p411, %p412
      %p415 = scmp.ne.s32.totalorder %s400, %s414
      %p416 = scmp.eq.s32.totalorder %s33, 0
      %p417 = por %p415, %p416
      %s418 = ssub.s32 %s27, %s34
      %p419 = scmp.eq.s32.totalorder %s418, 0
      %s421 = sadd.s32 %s420, 1
      %s422 = scalar_select %p419, %s420, %s421
      %p425 = pneg %p419
      %p426 = scmp.eq.s32.totalorder %s27, 1
      %p427 = por %p425, %p426
      %p428 = scmp.ne.s32.totalorder %s420, %s423
      %p429 = scmp.eq.s32.totalorder %s27, 0
      %p430 = por %p428, %p429
      %p431 = scmp.ne.s32.totalorder %s420, %s423
      %p432 = scmp.eq.s32.totalorder %s32, 1
      %p433 = por %p431, %p432
      %p434 = scmp.ne.s32.totalorder %s423, %s424
      %p435 = scmp.eq.s32.totalorder %s32, 0
      %p436 = por %p434, %p435
      %p437 = scmp.ne.s32.totalorder %s423, %s424
      %p438 = scmp.eq.s32.totalorder %s33, 1
      %p439 = por %p437, %p438
      %p441 = scmp.ne.s32.totalorder %s424, %s440
      %p442 = scmp.eq.s32.totalorder %s33, 0
      %p443 = por %p441, %p442
      %p444 = scmp.le.s32.totalorder 1, %s27
      %p445 = scmp.lt.s32.totalorder %s27, 3
      %p446 = pnand %p444, %p445
      %p447 = pneg %p446
      // Predicated region
      $region9: #{gpt2_forward.1} parent=5 // pred_check
        _
      $region10: #{gpt2_forward.1} parent=5 // pred_check_branch
        %449 = sbr.rel (%p446) target = $region12
      $region11: #{gpt2_forward.1} parent=5 // pred_region
        %s450 = ssub.s32 %s27, 1
        // Predicated region
        $region13: #{gpt2_forward.1} parent=11 // pred_check
          %p451 = pneg %p74
        $region14: #{gpt2_forward.1} parent=11 // pred_check_branch
          %453 = sbr.rel (%p451) target = $region16
        $region15: #{gpt2_forward.1} parent=11 // pred_region
          _
        $region16: #{gpt2_forward.1} parent=11 // pred_fallthru
          _
        // Predicated region
        $region17: #{gpt2_forward.1} parent=11 // pred_check
          %p454 = pneg %p95
        $region18: #{gpt2_forward.1} parent=11 // pred_check_branch
          %456 = sbr.rel (%p454) target = $region20
        $region19: #{gpt2_forward.1} parent=11 // pred_region
          _
        $region20: #{gpt2_forward.1} parent=11 // pred_fallthru
          _
        // Predicated region
        $region21: #{gpt2_forward.1} parent=11 // pred_check
          %p457 = pneg %p116
        $region22: #{gpt2_forward.1} parent=11 // pred_check_branch
          %459 = sbr.rel (%p457) target = $region24
        $region23: #{gpt2_forward.1} parent=11 // pred_region
          _
        $region24: #{gpt2_forward.1} parent=11 // pred_fallthru
          _
        // Predicated region
        $region25: #{gpt2_forward.1} parent=11 // pred_check
          %p460 = pneg %p137
        $region26: #{gpt2_forward.1} parent=11 // pred_check_branch
          %462 = sbr.rel (%p460) target = $region28
        $region27: #{gpt2_forward.1} parent=11 // pred_region
          _
        $region28: #{gpt2_forward.1} parent=11 // pred_fallthru
          _
        // Predicated region
        $region29: #{gpt2_forward.1} parent=11 // pred_check
          %p463 = pneg %p158
        $region30: #{gpt2_forward.1} parent=11 // pred_check_branch
          %465 = sbr.rel (%p463) target = $region32
        $region31: #{gpt2_forward.1} parent=11 // pred_region
          _
        $region32: #{gpt2_forward.1} parent=11 // pred_fallthru
          _
        // Predicated region
        $region33: #{gpt2_forward.1} parent=11 // pred_check
          %p466 = pneg %p179
        $region34: #{gpt2_forward.1} parent=11 // pred_check_branch
          %468 = sbr.rel (%p466) target = $region36
        $region35: #{gpt2_forward.1} parent=11 // pred_region
          _
        $region36: #{gpt2_forward.1} parent=11 // pred_fallthru
          _
        // Predicated region
        $region37: #{gpt2_forward.1} parent=11 // pred_check
          %p469 = pneg %p200
        $region38: #{gpt2_forward.1} parent=11 // pred_check_branch
          %471 = sbr.rel (%p469) target = $region40
        $region39: #{gpt2_forward.1} parent=11 // pred_region
          _
        $region40: #{gpt2_forward.1} parent=11 // pred_fallthru
          _
        // Predicated region
        $region41: #{gpt2_forward.1} parent=11 // pred_check
          %p472 = pneg %p221
        $region42: #{gpt2_forward.1} parent=11 // pred_check_branch
          %474 = sbr.rel (%p472) target = $region44
        $region43: #{gpt2_forward.1} parent=11 // pred_region
          _
        $region44: #{gpt2_forward.1} parent=11 // pred_fallthru
          _
        // Predicated region
        $region45: #{gpt2_forward.1} parent=11 // pred_check
          %p475 = pneg %p242
        $region46: #{gpt2_forward.1} parent=11 // pred_check_branch
          %477 = sbr.rel (%p475) target = $region48
        $region47: #{gpt2_forward.1} parent=11 // pred_region
          _
        $region48: #{gpt2_forward.1} parent=11 // pred_fallthru
          _
        // Predicated region
        $region49: #{gpt2_forward.1} parent=11 // pred_check
          %p478 = pneg %p263
        $region50: #{gpt2_forward.1} parent=11 // pred_check_branch
          %480 = sbr.rel (%p478) target = $region52
        $region51: #{gpt2_forward.1} parent=11 // pred_region
          _
        $region52: #{gpt2_forward.1} parent=11 // pred_fallthru
          _
        // Predicated region
        $region53: #{gpt2_forward.1} parent=11 // pred_check
          %p481 = pneg %p284
        $region54: #{gpt2_forward.1} parent=11 // pred_check_branch
          %483 = sbr.rel (%p481) target = $region56
        $region55: #{gpt2_forward.1} parent=11 // pred_region
          _
        $region56: #{gpt2_forward.1} parent=11 // pred_fallthru
          _
        // Predicated region
        $region57: #{gpt2_forward.1} parent=11 // pred_check
          %p484 = pneg %p305
        $region58: #{gpt2_forward.1} parent=11 // pred_check_branch
          %486 = sbr.rel (%p484) target = $region60
        $region59: #{gpt2_forward.1} parent=11 // pred_region
          _
        $region60: #{gpt2_forward.1} parent=11 // pred_fallthru
          _
        // Predicated region
        $region61: #{gpt2_forward.1} parent=11 // pred_check
          %p487 = pneg %p326
        $region62: #{gpt2_forward.1} parent=11 // pred_check_branch
          %489 = sbr.rel (%p487) target = $region64
        $region63: #{gpt2_forward.1} parent=11 // pred_region
          _
        $region64: #{gpt2_forward.1} parent=11 // pred_fallthru
          _
        // Predicated region
        $region65: #{gpt2_forward.1} parent=11 // pred_check
          %p490 = pneg %p347
        $region66: #{gpt2_forward.1} parent=11 // pred_check_branch
          %492 = sbr.rel (%p490) target = $region68
        $region67: #{gpt2_forward.1} parent=11 // pred_region
          _
        $region68: #{gpt2_forward.1} parent=11 // pred_fallthru
          _
        // Predicated region
        $region69: #{gpt2_forward.1} parent=11 // pred_check
          %p493 = pneg %p368
        $region70: #{gpt2_forward.1} parent=11 // pred_check_branch
          %495 = sbr.rel (%p493) target = $region72
        $region71: #{gpt2_forward.1} parent=11 // pred_region
          _
        $region72: #{gpt2_forward.1} parent=11 // pred_fallthru
          _
        // Predicated region
        $region73: #{gpt2_forward.1} parent=11 // pred_check
          %p496 = pneg %p389
        $region74: #{gpt2_forward.1} parent=11 // pred_check_branch
          %498 = sbr.rel (%p496) target = $region76
        $region75: #{gpt2_forward.1} parent=11 // pred_region
          _
        $region76: #{gpt2_forward.1} parent=11 // pred_fallthru
          _
        // Predicated region
        $region77: #{gpt2_forward.1} parent=11 // pred_check
          %p499 = pneg %p410
        $region78: #{gpt2_forward.1} parent=11 // pred_check_branch
          %501 = sbr.rel (%p499) target = $region80
        $region79: #{gpt2_forward.1} parent=11 // pred_region
          _
        $region80: #{gpt2_forward.1} parent=11 // pred_fallthru
          _
      $region12: #{gpt2_forward.1} parent=5 // pred_fallthru
        _
      %p502 = scmp.lt.s32.totalorder %s27, 2
      // Predicated region
      $region81: #{gpt2_forward.1} parent=5 // pred_check
        %p503 = pneg %p502
      $region82: #{gpt2_forward.1} parent=5 // pred_check_branch
        %505 = sbr.rel (%p503) target = $region84
      $region83: #{gpt2_forward.1} parent=5 // pred_region
        // Predicated region
        $region85: #{gpt2_forward.1} parent=83 // pred_check
          %p506 = pneg %p47
        $region86: #{gpt2_forward.1} parent=83 // pred_check_branch
          %508 = sbr.rel (%p506) target = $region88
        $region87: #{gpt2_forward.1} parent=83 // pred_region
          %p509 = scmp.lt.s32.totalorder %s27, 1
          %s510 = scalar_select %p509, %s27, 1
          %s511 = smul.addr %s510, 8
          %s512 = scalar_lea.vmem %s0, %s511
        $region88: #{gpt2_forward.1} parent=83 // pred_fallthru
          _
      $region84: #{gpt2_forward.1} parent=5 // pred_fallthru
        _
      %p513 = scmp.le.s32.totalorder 1, %s27
      %p514 = scmp.lt.s32.totalorder %s27, 3
      %p515 = pnand %p513, %p514
      %p516 = pneg %p515
      // Predicated region
      $region89: #{gpt2_forward.1} parent=5 // pred_check
        _
      $region90: #{gpt2_forward.1} parent=5 // pred_check_branch
        %518 = sbr.rel (%p515) target = $region92
      $region91: #{gpt2_forward.1} parent=5 // pred_region
        %s519 = ssub.s32 %s27, 1
        %p520 = scmp.lt.s32.totalorder %s32, 1
        %s521 = scalar_select %p520, %s32, 1
        %s522 = smul.addr %s521, 8
        %s523 = scalar_lea.vmem %s0, %s522
        %p524 = pneg %p53
        %p525 = pneg %p50
        %p526 = pneg %p74
        %p527 = pneg %p71
        %p528 = pneg %p95
        %p529 = pneg %p92
        %p530 = pneg %p116
        %p531 = pneg %p113
        %p532 = pneg %p137
        %p533 = pneg %p134
        %p534 = pneg %p158
        %p535 = pneg %p155
        %p536 = pneg %p179
        %p537 = pneg %p176
        %p538 = pneg %p200
        %p539 = pneg %p197
        %p540 = pneg %p221
        %p541 = pneg %p218
        %p542 = pneg %p242
        %p543 = pneg %p239
        %p544 = pneg %p263
        %p545 = pneg %p260
        %p546 = pneg %p284
        %p547 = pneg %p281
        %p548 = pneg %p305
        %p549 = pneg %p302
        %p550 = pneg %p326
        %p551 = pneg %p323
        %p552 = pneg %p347
        %p553 = pneg %p344
        %p554 = pneg %p368
        %p555 = pneg %p365
        %p556 = pneg %p389
        %p557 = pneg %p386
        %p558 = pneg %p410
        %p559 = pneg %p407
        %p560 = pneg %p436
        %p561 = pneg %p433
        %s562 = sand.u32 %s423, 1
        %s563 = scalar_lea.sflag [#allocation3], %s562
        %s564 = sand.u32 %s423, 1
        %s565 = smul.addr %s564, 32
        %s566 = scalar_lea.vmem [#allocation2], %s565
        %p567 = scmp.lt.s32.totalorder %s32, 1
        %s568 = scalar_select %p567, %s32, 1
        %s569 = smul.addr %s568, 8
        %s570 = scalar_lea.vmem %s0, %s569
        %v572 = vld [vmem:[%s570] sm:$0xff]
        %v573 = vlaneseq
        %v574 = vand.u32 %v573, 127
        %v575 = vadd.s32 %v574, 128
        %v576 = vadd.s32 %v574, 256
        %v577 = vadd.s32 %v574, 384
        %578 = vset.pattern.permute.xlu0 0
        %579 = vperm.xlu0 %578, %v572
        %v580 = vpop.permute.xlu0 %579
        %vm581 = vcmp.eq.s32.totalorder %v574, %v580
        %vm582 = vcmp.eq.s32.totalorder %v575, %v580
        %vm583 = vcmp.eq.s32.totalorder %v576, %v580
        %vm584 = vcmp.eq.s32.totalorder %v577, %v580
        %v585 = vsel %vm581, 1, 0
        %v586 = vsel %vm582, 1, 0
        %v587 = vsel %vm583, 1, 0
        %v588 = vsel %vm584, 1, 0
        %v589 = vcvt.s32.f32 %v585
        %v590 = vcvt.s32.f32 %v586
        %v591 = vcvt.s32.f32 %v587
        %v592 = vcvt.s32.f32 %v588
        %v593 = vpack.c.bf16 %v589, %v589
        %v594 = vpack.c.bf16 %v590, %v590
        %v595 = vpack.c.bf16 %v591, %v591
        %v596 = vpack.c.bf16 %v592, %v592
        %v597 = vld [vmem:[%s1] sm:$0xff]
        %v598 = vld [vmem:[%s1 + $0x8] sm:$0xff]
        %v599 = vld [vmem:[%s1 + $0x10] sm:$0xff]
        %v600 = vld [vmem:[%s1 + $0x18] sm:$0xff]
        %v601 = vld [vmem:[%s1 + $0x20] sm:$0xff]
        %v602 = vld [vmem:[%s1 + $0x28] sm:$0xff]
        %v603 = vld [vmem:[%s1 + $0x30] sm:$0xff]
        %v604 = vld [vmem:[%s1 + $0x38] sm:$0xff]
        %v605 = vld [vmem:[%s1 + $0x40] sm:$0xff]
        %v606 = vld [vmem:[%s1 + $0x48] sm:$0xff]
        %v607 = vld [vmem:[%s1 + $0x50] sm:$0xff]
        %v608 = vld [vmem:[%s1 + $0x58] sm:$0xff]
        %v609 = vld [vmem:[%s1 + $0x60] sm:$0xff]
        %v610 = vld [vmem:[%s1 + $0x68] sm:$0xff]
        %v611 = vld [vmem:[%s1 + $0x70] sm:$0xff]
        %v612 = vld [vmem:[%s1 + $0x78] sm:$0xff]
        %v613 = vld [vmem:[%s1 + $0x80] sm:$0xff]
        %v614 = vld [vmem:[%s1 + $0x88] sm:$0xff]
        %v615 = vld [vmem:[%s1 + $0x90] sm:$0xff]
        %v616 = vld [vmem:[%s1 + $0x98] sm:$0xff]
        %v617 = vld [vmem:[%s1 + $0xa0] sm:$0xff]
        %v618 = vld [vmem:[%s1 + $0xa8] sm:$0xff]
        %v619 = vld [vmem:[%s1 + $0xb0] sm:$0xff]
        %v620 = vld [vmem:[%s1 + $0xb8] sm:$0xff]
        %v621 = vld [vmem:[%s1 + $0xc0] sm:$0xff]
        %v622 = vld [vmem:[%s1 + $0xc8] sm:$0xff]
        %v623 = vld [vmem:[%s1 + $0xd0] sm:$0xff]
        %v624 = vld [vmem:[%s1 + $0xd8] sm:$0xff]
        %v625 = vld [vmem:[%s1 + $0xe0] sm:$0xff]
        %v626 = vld [vmem:[%s1 + $0xe8] sm:$0xff]
        %v627 = vld [vmem:[%s1 + $0xf0] sm:$0xff]
        %v628 = vld [vmem:[%s1 + $0xf8] sm:$0xff]
        %v629 = vld [vmem:[%s1 + $0x100] sm:$0xff]
        %v630 = vld [vmem:[%s1 + $0x108] sm:$0xff]
        %v631 = vld [vmem:[%s1 + $0x110] sm:$0xff]
        %v632 = vld [vmem:[%s1 + $0x118] sm:$0xff]
        %v633 = vld [vmem:[%s1 + $0x120] sm:$0xff]
        %v634 = vld [vmem:[%s1 + $0x128] sm:$0xff]
        %v635 = vld [vmem:[%s1 + $0x130] sm:$0xff]
        %v636 = vld [vmem:[%s1 + $0x138] sm:$0xff]
        %v637 = vld [vmem:[%s1 + $0x140] sm:$0xff]
        %v638 = vld [vmem:[%s1 + $0x148] sm:$0xff]
        %v639 = vld [vmem:[%s1 + $0x150] sm:$0xff]
        %v640 = vld [vmem:[%s1 + $0x158] sm:$0xff]
        %v641 = vld [vmem:[%s1 + $0x160] sm:$0xff]
        %v642 = vld [vmem:[%s1 + $0x168] sm:$0xff]
        %v643 = vld [vmem:[%s1 + $0x170] sm:$0xff]
        %v644 = vld [vmem:[%s1 + $0x178] sm:$0xff]
        %v645 = vld [vmem:[%s1 + $0x180] sm:$0xff]
        %v646 = vld [vmem:[%s1 + $0x188] sm:$0xff]
        %v647 = vld [vmem:[%s1 + $0x190] sm:$0xff]
        %v648 = vld [vmem:[%s1 + $0x198] sm:$0xff]
        %v649 = vld [vmem:[%s1 + $0x1a0] sm:$0xff]
        %v650 = vld [vmem:[%s1 + $0x1a8] sm:$0xff]
        %v651 = vld [vmem:[%s1 + $0x1b0] sm:$0xff]
        %v652 = vld [vmem:[%s1 + $0x1b8] sm:$0xff]
        %v653 = vld [vmem:[%s1 + $0x1c0] sm:$0xff]
        %v654 = vld [vmem:[%s1 + $0x1c8] sm:$0xff]
        %v655 = vld [vmem:[%s1 + $0x1d0] sm:$0xff]
        %v656 = vld [vmem:[%s1 + $0x1d8] sm:$0xff]
        %v657 = vld [vmem:[%s1 + $0x1e0] sm:$0xff]
        %v658 = vld [vmem:[%s1 + $0x1e8] sm:$0xff]
        %v659 = vld [vmem:[%s1 + $0x1f0] sm:$0xff]
        %v660 = vld [vmem:[%s1 + $0x1f8] sm:$0xff]
        %v661 = vpack.c.bf16 %v598, %v597
        %v662 = vpack.c.bf16 %v600, %v599
        %v663 = vpack.c.bf16 %v602, %v601
        %v664 = vpack.c.bf16 %v604, %v603
        %v665 = vpack.c.bf16 %v606, %v605
        %v666 = vpack.c.bf16 %v608, %v607
        %v667 = vpack.c.bf16 %v610, %v609
        %v668 = vpack.c.bf16 %v612, %v611
        %v669 = vpack.c.bf16 %v614, %v613
        %v670 = vpack.c.bf16 %v616, %v615
        %v671 = vpack.c.bf16 %v618, %v617
        %v672 = vpack.c.bf16 %v620, %v619
        %v673 = vpack.c.bf16 %v622, %v621
        %v674 = vpack.c.bf16 %v624, %v623
        %v675 = vpack.c.bf16 %v626, %v625
        %v676 = vpack.c.bf16 %v628, %v627
        %v677 = vpack.c.bf16 %v630, %v629
        %v678 = vpack.c.bf16 %v632, %v631
        %v679 = vpack.c.bf16 %v634, %v633
        %v680 = vpack.c.bf16 %v636, %v635
        %v681 = vpack.c.bf16 %v638, %v637
        %v682 = vpack.c.bf16 %v640, %v639
        %v683 = vpack.c.bf16 %v642, %v641
        %v684 = vpack.c.bf16 %v644, %v643
        %v685 = vpack.c.bf16 %v646, %v645
        %v686 = vpack.c.bf16 %v648, %v647
        %v687 = vpack.c.bf16 %v650, %v649
        %v688 = vpack.c.bf16 %v652, %v651
        %v689 = vpack.c.bf16 %v654, %v653
        %v690 = vpack.c.bf16 %v656, %v655
        %v691 = vpack.c.bf16 %v658, %v657
        %v692 = vpack.c.bf16 %v660, %v659
        %v693 = vld [vmem:[%s2] sm:$0xff]
        %694 = vmatprep.subr.bf16.mxu0 0
        %695 = vmatpush1.bf16.msra.mxu0 %v668
        %696 = vmatprep.subr.bf16.mxu0 0
        %697 = vmatpush1.bf16.msra.mxu0 %v667
        %698 = vmatprep.subr.bf16.mxu0 0
        %699 = vmatpush1.bf16.msra.mxu0 %v666
        %700 = vmatprep.subr.bf16.mxu0 0
        %701 = vmatpush1.bf16.msra.mxu0 %v665
        %702 = vmatprep.subr.bf16.mxu0 0
        %703 = vmatpush1.bf16.msra.mxu0 %v664
        %704 = vmatprep.subr.bf16.mxu0 0
        %705 = vmatpush1.bf16.msra.mxu0 %v663
        %706 = vmatprep.subr.bf16.mxu0 0
        %707 = vmatpush1.bf16.msra.mxu0 %v662
        %708 = vmatprep.subr.bf16.mxu0 0
        %709 = vmatpush1.bf16.msra.mxu0 %v661
        %710 = vmatprep.subr.bf16.mxu0 0
        %711 = vmatpush2.bf16.msra.mxu0 %v676
        %712 = vmatprep.subr.bf16.mxu0 0
        %713 = vmatpush2.bf16.msra.mxu0 %v675
        %714 = vmatprep.subr.bf16.mxu0 0
        %715 = vmatpush2.bf16.msra.mxu0 %v674
        %716 = vmatprep.subr.bf16.mxu0 0
        %717 = vmatpush2.bf16.msra.mxu0 %v673
        %718 = vmatprep.subr.bf16.mxu0 0
        %719 = vmatpush2.bf16.msra.mxu0 %v672
        %720 = vmatprep.subr.bf16.mxu0 0
        %721 = vmatpush2.bf16.msra.mxu0 %v671
        %722 = vmatprep.subr.bf16.mxu0 0
        %723 = vmatpush2.bf16.msra.mxu0 %v670
        %724 = vmatprep.subr.bf16.mxu0 0
        %725 = vmatpush2.bf16.msra.mxu0 %v669
        %726 = vmatprep.mubr.bf16.mxu0 %v594
        %727 = vmatmul.mubr.bf16.gmra.mxu0 %v593
        %v728 = vpop.f32.mrf.mxu0
        %v729 = vadd.f32 %v693, %v728
        %v730 = vpop.f32.mrf.mxu0
        %v731 = vpop.f32.mrf.mxu0
        %v732 = vpop.f32.mrf.mxu0
        %733 = vdwg.mxu0
        %734 = vmatprep.subr.bf16.mxu0 0
        %735 = vmatpush1.bf16.msra.mxu0 %v684
        %736 = vmatprep.subr.bf16.mxu0 0
        %737 = vmatpush1.bf16.msra.mxu0 %v683
        %738 = vmatprep.subr.bf16.mxu0 0
        %739 = vmatpush1.bf16.msra.mxu0 %v682
        %740 = vmatprep.subr.bf16.mxu0 0
        %741 = vmatpush1.bf16.msra.mxu0 %v681
        %742 = vmatprep.subr.bf16.mxu0 0
        %743 = vmatpush1.bf16.msra.mxu0 %v680
        %744 = vmatprep.subr.bf16.mxu0 0
        %745 = vmatpush1.bf16.msra.mxu0 %v679
        %746 = vmatprep.subr.bf16.mxu0 0
        %747 = vmatpush1.bf16.msra.mxu0 %v678
        %748 = vmatprep.subr.bf16.mxu0 0
        %749 = vmatpush1.bf16.msra.mxu0 %v677
        %750 = vmatprep.subr.bf16.mxu0 0
        %751 = vmatpush2.bf16.msra.mxu0 %v692
        %752 = vmatprep.subr.bf16.mxu0 0
        %753 = vmatpush2.bf16.msra.mxu0 %v691
        %754 = vmatprep.subr.bf16.mxu0 0
        %755 = vmatpush2.bf16.msra.mxu0 %v690
        %756 = vmatprep.subr.bf16.mxu0 0
        %757 = vmatpush2.bf16.msra.mxu0 %v689
        %758 = vmatprep.subr.bf16.mxu0 0
        %759 = vmatpush2.bf16.msra.mxu0 %v688
        %760 = vmatprep.subr.bf16.mxu0 0
        %761 = vmatpush2.bf16.msra.mxu0 %v687
        %762 = vmatprep.subr.bf16.mxu0 0
        %763 = vmatpush2.bf16.msra.mxu0 %v686
        %764 = vmatprep.subr.bf16.mxu0 0
        %765 = vmatpush2.bf16.msra.mxu0 %v685
        %766 = vmatprep.mubr.bf16.mxu0 %v596
        %767 = vmatmul.mubr.bf16.gmra.mxu0 %v595
        %v768 = vpop.f32.mrf.mxu0
        %v769 = vadd.f32 %v729, %v768
        %v770 = vpop.f32.mrf.mxu0
        %v771 = vpop.f32.mrf.mxu0
        %v772 = vpop.f32.mrf.mxu0
        %773 = vdwg.mxu0
        %v774 = vlaneseq
        %v775 = vshrl.u32 %v774, 7
        %vm776 = vcmp.ge.s32.totalorder %v775, %v574
        %v777 = vsel %vm776, 0.0, -1e+30
        %v778 = vld [vmem:[%s3] sm:$0x1]
        %v779 = vld [vmem:[%s4] sm:$0x1]
        %vm780 = vcmask 261120
        %v781 = vsel %vm780, %v769, 0.0
        %782 = vadd.xlane.f32.xlu0 %v781
        %v783 = vpop.xlane.xlu0 %782
        %v784 = vrcp.pop 32.0
        %v785 = vmul.f32 %v783, %v784
        %v786 = vsub.f32 %v769, %v785
        %v787 = vmul.f32 %v786, %v786
        %v788 = vsel %vm780, %v787, 0.0
        %789 = vadd.xlane.f32.xlu0 %v788
        %v790 = vpop.xlane.xlu0 %789
        %v791 = vmul.f32 %v790, %v784
        %v792 = vadd.f32 %v791, 1e-05
        %v793 = vrsqrt.pop %v792
        %v794 = vmul.f32 %v786, %v793
        %v796 = vlaneseq
        %v797 = vshrl.u32 %v796, 7
        %v798 = vsub.s32 0, %v797
        %v799 = vrot.slane %v778, %v798
        %v801 = vmul.f32 %v794, %v799
        %v803 = vlaneseq
        %v804 = vshrl.u32 %v803, 7
        %v805 = vsub.s32 0, %v804
        %v806 = vrot.slane %v779, %v805
        %v808 = vadd.f32 %v801, %v806
        %v809 = vpack.c.bf16 %v808, %v808
        %v810 = vld [vmem:[%s5] sm:$0xf]
        %v811 = vld [vmem:[%s5 + $0x4] sm:$0xf]
        %v812 = vld [vmem:[%s5 + $0x8] sm:$0xf]
        %v813 = vld [vmem:[%s5 + $0xc] sm:$0xf]
        %v814 = vld [vmem:[%s5 + $0x10] sm:$0xf]
        %v815 = vld [vmem:[%s5 + $0x14] sm:$0xf]
        %v816 = vld [vmem:[%s5 + $0x18] sm:$0xf]
        %v817 = vld [vmem:[%s5 + $0x1c] sm:$0xf]
        %v818 = vld [vmem:[%s5 + $0x20] sm:$0xf]
        %v819 = vld [vmem:[%s5 + $0x24] sm:$0xf]
        %v820 = vld [vmem:[%s5 + $0x28] sm:$0xf]
        %v821 = vld [vmem:[%s5 + $0x2c] sm:$0xf]
        %v822 = vld [vmem:[%s5 + $0x30] sm:$0xf]
        %v823 = vld [vmem:[%s5 + $0x34] sm:$0xf]
        %v824 = vld [vmem:[%s5 + $0x38] sm:$0xf]
        %v825 = vld [vmem:[%s5 + $0x3c] sm:$0xf]
        %v826 = vld [vmem:[%s5 + $0x40] sm:$0xf]
        %v827 = vld [vmem:[%s5 + $0x44] sm:$0xf]
        %v828 = vld [vmem:[%s5 + $0x48] sm:$0xf]
        %v829 = vld [vmem:[%s5 + $0x4c] sm:$0xf]
        %v830 = vld [vmem:[%s5 + $0x50] sm:$0xf]
        %v831 = vld [vmem:[%s5 + $0x54] sm:$0xf]
        %v832 = vld [vmem:[%s5 + $0x58] sm:$0xf]
        %v833 = vld [vmem:[%s5 + $0x5c] sm:$0xf]
        %v834 = vld [vmem:[%s5 + $0x60] sm:$0xf]
        %v835 = vld [vmem:[%s5 + $0x64] sm:$0xf]
        %v836 = vld [vmem:[%s5 + $0x68] sm:$0xf]
        %v837 = vld [vmem:[%s5 + $0x6c] sm:$0xf]
        %v838 = vld [vmem:[%s5 + $0x70] sm:$0xf]
        %v839 = vld [vmem:[%s5 + $0x74] sm:$0xf]
        %v840 = vld [vmem:[%s5 + $0x78] sm:$0xf]
        %v841 = vld [vmem:[%s5 + $0x7c] sm:$0xf]
        %v842 = vld [vmem:[%s5 + $0x80] sm:$0xf]
        %v843 = vld [vmem:[%s5 + $0x84] sm:$0xf]
        %v844 = vld [vmem:[%s5 + $0x88] sm:$0xf]
        %v845 = vld [vmem:[%s5 + $0x8c] sm:$0xf]
        %v846 = vld [vmem:[%s5 + $0x90] sm:$0xf]
        %v847 = vld [vmem:[%s5 + $0x94] sm:$0xf]
        %v848 = vld [vmem:[%s5 + $0x98] sm:$0xf]
        %v849 = vld [vmem:[%s5 + $0x9c] sm:$0xf]
        %v850 = vld [vmem:[%s5 + $0xa0] sm:$0xf]
        %v851 = vld [vmem:[%s5 + $0xa4] sm:$0xf]
        %v852 = vld [vmem:[%s5 + $0xa8] sm:$0xf]
        %v853 = vld [vmem:[%s5 + $0xac] sm:$0xf]
        %v854 = vld [vmem:[%s5 + $0xb0] sm:$0xf]
        %v855 = vld [vmem:[%s5 + $0xb4] sm:$0xf]
        %v856 = vld [vmem:[%s5 + $0xb8] sm:$0xf]
        %v857 = vld [vmem:[%s5 + $0xbc] sm:$0xf]
        %v858 = vld [vmem:[%s6] sm:$0x1]
        %v859 = vld [vmem:[%s6 + $0x1] sm:$0x1]
        %v860 = vld [vmem:[%s6 + $0x2] sm:$0x1]
        %v861 = vld [vmem:[%s6 + $0x3] sm:$0x1]
        %v862 = vld [vmem:[%s6 + $0x4] sm:$0x1]
        %v863 = vld [vmem:[%s6 + $0x5] sm:$0x1]
        %v864 = vld [vmem:[%s6 + $0x6] sm:$0x1]
        %v865 = vld [vmem:[%s6 + $0x7] sm:$0x1]
        %v866 = vld [vmem:[%s6 + $0x8] sm:$0x1]
        %v867 = vld [vmem:[%s6 + $0x9] sm:$0x1]
        %v868 = vld [vmem:[%s6 + $0xa] sm:$0x1]
        %v869 = vld [vmem:[%s6 + $0xb] sm:$0x1]
        %v882 = vlaneseq
        %v883 = vshrl.u32 %v882, 7
        %v884 = vsub.s32 0, %v883
        %v885 = vrot.slane %v858, %v884
        %v886 = vlaneseq
        %v887 = vshrl.u32 %v886, 7
        %v888 = vsub.s32 0, %v887
        %v889 = vrot.slane %v859, %v888
        %v890 = vlaneseq
        %v891 = vshrl.u32 %v890, 7
        %v892 = vsub.s32 0, %v891
        %v893 = vrot.slane %v860, %v892
        %v894 = vlaneseq
        %v895 = vshrl.u32 %v894, 7
        %v896 = vsub.s32 0, %v895
        %v897 = vrot.slane %v861, %v896
        %v898 = vlaneseq
        %v899 = vshrl.u32 %v898, 7
        %v900 = vsub.s32 0, %v899
        %v901 = vrot.slane %v862, %v900
        %v902 = vlaneseq
        %v903 = vshrl.u32 %v902, 7
        %v904 = vsub.s32 0, %v903
        %v905 = vrot.slane %v863, %v904
        %v906 = vlaneseq
        %v907 = vshrl.u32 %v906, 7
        %v908 = vsub.s32 0, %v907
        %v909 = vrot.slane %v864, %v908
        %v910 = vlaneseq
        %v911 = vshrl.u32 %v910, 7
        %v912 = vsub.s32 0, %v911
        %v913 = vrot.slane %v865, %v912
        %v914 = vlaneseq
        %v915 = vshrl.u32 %v914, 7
        %v916 = vsub.s32 0, %v915
        %v917 = vrot.slane %v866, %v916
        %v918 = vlaneseq
        %v919 = vshrl.u32 %v918, 7
        %v920 = vsub.s32 0, %v919
        %v921 = vrot.slane %v867, %v920
        %v922 = vlaneseq
        %v923 = vshrl.u32 %v922, 7
        %v924 = vsub.s32 0, %v923
        %v925 = vrot.slane %v868, %v924
        %v926 = vlaneseq
        %v927 = vshrl.u32 %v926, 7
        %v928 = vsub.s32 0, %v927
        %v929 = vrot.slane %v869, %v928
        %v946 = vunpack.c.l.b16 %v810
        %v947 = vunpack.c.l.b16 %v811
        %v948 = vunpack.c.l.b16 %v812
        %v949 = vunpack.c.l.b16 %v813
        %v950 = vpack.c.b16 %v947, %v946
        %v951 = vpack.c.b16 %v949, %v948
        %v955 = vsel %vm780, %v809, 0
        %957 = vmatprep.subr.bf16.mxu0 0
        %958 = vmatpush1.bf16.msra.mxu0 0
        %959 = vmatprep.subr.bf16.mxu0 0
        %960 = vmatpush1.bf16.msra.mxu0 0
        %961 = vmatprep.subr.bf16.mxu0 0
        %962 = vmatpush1.bf16.msra.mxu0 0
        %963 = vmatprep.subr.bf16.mxu0 0
        %964 = vmatpush1.bf16.msra.mxu0 0
        %965 = vmatprep.subr.bf16.mxu0 0
        %966 = vmatpush1.bf16.msra.mxu0 0
        %967 = vmatprep.subr.bf16.mxu0 0
        %968 = vmatpush1.bf16.msra.mxu0 0
        %969 = vmatprep.subr.bf16.mxu0 0
        %970 = vmatpush1.bf16.msra.mxu0 %v951
        %971 = vmatprep.subr.bf16.mxu0 0
        %972 = vmatpush1.bf16.msra.mxu0 %v950
        %973 = vmatprep.subr.bf16.mxu0 0
        %974 = vmatpush2.bf16.msra.mxu0 0
        %975 = vmatprep.subr.bf16.mxu0 0
        %976 = vmatpush2.bf16.msra.mxu0 0
        %977 = vmatprep.subr.bf16.mxu0 0
        %978 = vmatpush2.bf16.msra.mxu0 0
        %979 = vmatprep.subr.bf16.mxu0 0
        %980 = vmatpush2.bf16.msra.mxu0 0
        %981 = vmatprep.subr.bf16.mxu0 0
        %982 = vmatpush2.bf16.msra.mxu0 0
        %983 = vmatprep.subr.bf16.mxu0 0
        %984 = vmatpush2.bf16.msra.mxu0 0
        %985 = vmatprep.subr.bf16.mxu0 0
        %986 = vmatpush2.bf16.msra.mxu0 0
        %987 = vmatprep.subr.bf16.mxu0 0
        %988 = vmatpush2.bf16.msra.mxu0 0
        %989 = vmatprep.mubr.bf16.mxu0 0
        %990 = vmatmul.mubr.bf16.gmra.mxu0 %v955
        %v991 = vpop.f32.mrf.mxu0
        %v992 = vadd.f32 %v885, %v991
        %v993 = vpop.f32.mrf.mxu0
        %v994 = vpop.f32.mrf.mxu0
        %v995 = vpop.f32.mrf.mxu0
        %996 = vdwg.mxu0
        %v1001 = vunpack.c.l.b16 %v814
        %v1002 = vunpack.c.l.b16 %v815
        %v1003 = vunpack.c.l.b16 %v816
        %v1004 = vunpack.c.l.b16 %v817
        %v1005 = vpack.c.b16 %v1002, %v1001
        %v1006 = vpack.c.b16 %v1004, %v1003
        %1009 = vmatprep.subr.bf16.mxu0 0
        %1010 = vmatpush1.bf16.msra.mxu0 0
        %1011 = vmatprep.subr.bf16.mxu0 0
        %1012 = vmatpush1.bf16.msra.mxu0 0
        %1013 = vmatprep.subr.bf16.mxu0 0
        %1014 = vmatpush1.bf16.msra.mxu0 0
        %1015 = vmatprep.subr.bf16.mxu0 0
        %1016 = vmatpush1.bf16.msra.mxu0 0
        %1017 = vmatprep.subr.bf16.mxu0 0
        %1018 = vmatpush1.bf16.msra.mxu0 0
        %1019 = vmatprep.subr.bf16.mxu0 0
        %1020 = vmatpush1.bf16.msra.mxu0 0
        %1021 = vmatprep.subr.bf16.mxu0 0
        %1022 = vmatpush1.bf16.msra.mxu0 %v1006
        %1023 = vmatprep.subr.bf16.mxu0 0
        %1024 = vmatpush1.bf16.msra.mxu0 %v1005
        %1025 = vmatprep.subr.bf16.mxu0 0
        %1026 = vmatpush2.bf16.msra.mxu0 0
        %1027 = vmatprep.subr.bf16.mxu0 0
        %1028 = vmatpush2.bf16.msra.mxu0 0
        %1029 = vmatprep.subr.bf16.mxu0 0
        %1030 = vmatpush2.bf16.msra.mxu0 0
        %1031 = vmatprep.subr.bf16.mxu0 0
        %1032 = vmatpush2.bf16.msra.mxu0 0
        %1033 = vmatprep.subr.bf16.mxu0 0
        %1034 = vmatpush2.bf16.msra.mxu0 0
        %1035 = vmatprep.subr.bf16.mxu0 0
        %1036 = vmatpush2.bf16.msra.mxu0 0
        %1037 = vmatprep.subr.bf16.mxu0 0
        %1038 = vmatpush2.bf16.msra.mxu0 0
        %1039 = vmatprep.subr.bf16.mxu0 0
        %1040 = vmatpush2.bf16.msra.mxu0 0
        %1041 = vmatprep.mubr.bf16.mxu0 0
        %1042 = vmatmul.mubr.bf16.gmra.mxu0 %v955
        %v1043 = vpop.f32.mrf.mxu0
        %v1044 = vadd.f32 %v889, %v1043
        %v1045 = vpop.f32.mrf.mxu0
        %v1046 = vpop.f32.mrf.mxu0
        %v1047 = vpop.f32.mrf.mxu0
        %1048 = vdwg.mxu0
        %v1053 = vunpack.c.l.b16 %v818
        %v1054 = vunpack.c.l.b16 %v819
        %v1055 = vunpack.c.l.b16 %v820
        %v1056 = vunpack.c.l.b16 %v821
        %v1057 = vpack.c.b16 %v1054, %v1053
        %v1058 = vpack.c.b16 %v1056, %v1055
        %1061 = vmatprep.subr.bf16.mxu0 0
        %1062 = vmatpush1.bf16.msra.mxu0 0
        %1063 = vmatprep.subr.bf16.mxu0 0
        %1064 = vmatpush1.bf16.msra.mxu0 0
        %1065 = vmatprep.subr.bf16.mxu0 0
        %1066 = vmatpush1.bf16.msra.mxu0 0
        %1067 = vmatprep.subr.bf16.mxu0 0
        %1068 = vmatpush1.bf16.msra.mxu0 0
        %1069 = vmatprep.subr.bf16.mxu0 0
        %1070 = vmatpush1.bf16.msra.mxu0 0
        %1071 = vmatprep.subr.bf16.mxu0 0
        %1072 = vmatpush1.bf16.msra.mxu0 0
        %1073 = vmatprep.subr.bf16.mxu0 0
        %1074 = vmatpush1.bf16.msra.mxu0 %v1058
        %1075 = vmatprep.subr.bf16.mxu0 0
        %1076 = vmatpush1.bf16.msra.mxu0 %v1057
        %1077 = vmatprep.subr.bf16.mxu0 0
        %1078 = vmatpush2.bf16.msra.mxu0 0
        %1079 = vmatprep.subr.bf16.mxu0 0
        %1080 = vmatpush2.bf16.msra.mxu0 0
        %1081 = vmatprep.subr.bf16.mxu0 0
        %1082 = vmatpush2.bf16.msra.mxu0 0
        %1083 = vmatprep.subr.bf16.mxu0 0
        %1084 = vmatpush2.bf16.msra.mxu0 0
        %1085 = vmatprep.subr.bf16.mxu0 0
        %1086 = vmatpush2.bf16.msra.mxu0 0
        %1087 = vmatprep.subr.bf16.mxu0 0
        %1088 = vmatpush2.bf16.msra.mxu0 0
        %1089 = vmatprep.subr.bf16.mxu0 0
        %1090 = vmatpush2.bf16.msra.mxu0 0
        %1091 = vmatprep.subr.bf16.mxu0 0
        %1092 = vmatpush2.bf16.msra.mxu0 0
        %1093 = vmatprep.mubr.bf16.mxu0 0
        %1094 = vmatmul.mubr.bf16.gmra.mxu0 %v955
        %v1095 = vpop.f32.mrf.mxu0
        %v1096 = vadd.f32 %v893, %v1095
        %v1097 = vpop.f32.mrf.mxu0
        %v1098 = vpop.f32.mrf.mxu0
        %v1099 = vpop.f32.mrf.mxu0
        %1100 = vdwg.mxu0
        %v1105 = vunpack.c.l.b16 %v822
        %v1106 = vunpack.c.l.b16 %v823
        %v1107 = vunpack.c.l.b16 %v824
        %v1108 = vunpack.c.l.b16 %v825
        %v1109 = vpack.c.b16 %v1106, %v1105
        %v1110 = vpack.c.b16 %v1108, %v1107
        %1113 = vmatprep.subr.bf16.mxu0 0
        %1114 = vmatpush1.bf16.msra.mxu0 0
        %1115 = vmatprep.subr.bf16.mxu0 0
        %1116 = vmatpush1.bf16.msra.mxu0 0
        %1117 = vmatprep.subr.bf16.mxu0 0
        %1118 = vmatpush1.bf16.msra.mxu0 0
        %1119 = vmatprep.subr.bf16.mxu0 0
        %1120 = vmatpush1.bf16.msra.mxu0 0
        %1121 = vmatprep.subr.bf16.mxu0 0
        %1122 = vmatpush1.bf16.msra.mxu0 0
        %1123 = vmatprep.subr.bf16.mxu0 0
        %1124 = vmatpush1.bf16.msra.mxu0 0
        %1125 = vmatprep.subr.bf16.mxu0 0
        %1126 = vmatpush1.bf16.msra.mxu0 %v1110
        %1127 = vmatprep.subr.bf16.mxu0 0
        %1128 = vmatpush1.bf16.msra.mxu0 %v1109
        %1129 = vmatprep.subr.bf16.mxu0 0
        %1130 = vmatpush2.bf16.msra.mxu0 0
        %1131 = vmatprep.subr.bf16.mxu0 0
        %1132 = vmatpush2.bf16.msra.mxu0 0
        %1133 = vmatprep.subr.bf16.mxu0 0
        %1134 = vmatpush2.bf16.msra.mxu0 0
        %1135 = vmatprep.subr.bf16.mxu0 0
        %1136 = vmatpush2.bf16.msra.mxu0 0
        %1137 = vmatprep.subr.bf16.mxu0 0
        %1138 = vmatpush2.bf16.msra.mxu0 0
        %1139 = vmatprep.subr.bf16.mxu0 0
        %1140 = vmatpush2.bf16.msra.mxu0 0
        %1141 = vmatprep.subr.bf16.mxu0 0
        %1142 = vmatpush2.bf16.msra.mxu0 0
        %1143 = vmatprep.subr.bf16.mxu0 0
        %1144 = vmatpush2.bf16.msra.mxu0 0
        %1145 = vmatprep.mubr.bf16.mxu0 0
        %1146 = vmatmul.mubr.bf16.gmra.mxu0 %v955
        %v1147 = vpop.f32.mrf.mxu0
        %v1148 = vadd.f32 %v897, %v1147
        %v1149 = vpop.f32.mrf.mxu0
        %v1150 = vpop.f32.mrf.mxu0
        %v1151 = vpop.f32.mrf.mxu0
        %1152 = vdwg.mxu0
        %v1157 = vunpack.c.l.b16 %v826
        %v1158 = vunpack.c.l.b16 %v827
        %v1159 = vunpack.c.l.b16 %v828
        %v1160 = vunpack.c.l.b16 %v829
        %v1161 = vpack.c.b16 %v1158, %v1157
        %v1162 = vpack.c.b16 %v1160, %v1159
        %1165 = vmatprep.subr.bf16.mxu0 0
        %1166 = vmatpush1.bf16.msra.mxu0 0
        %1167 = vmatprep.subr.bf16.mxu0 0
        %1168 = vmatpush1.bf16.msra.mxu0 0
        %1169 = vmatprep.subr.bf16.mxu0 0
        %1170 = vmatpush1.bf16.msra.mxu0 0
        %1171 = vmatprep.subr.bf16.mxu0 0
        %1172 = vmatpush1.bf16.msra.mxu0 0
        %1173 = vmatprep.subr.bf16.mxu0 0
        %1174 = vmatpush1.bf16.msra.mxu0 0
        %1175 = vmatprep.subr.bf16.mxu0 0
        %1176 = vmatpush1.bf16.msra.mxu0 0
        %1177 = vmatprep.subr.bf16.mxu0 0
        %1178 = vmatpush1.bf16.msra.mxu0 %v1162
        %1179 = vmatprep.subr.bf16.mxu0 0
        %1180 = vmatpush1.bf16.msra.mxu0 %v1161
        %1181 = vmatprep.subr.bf16.mxu0 0
        %1182 = vmatpush2.bf16.msra.mxu0 0
        %1183 = vmatprep.subr.bf16.mxu0 0
        %1184 = vmatpush2.bf16.msra.mxu0 0
        %1185 = vmatprep.subr.bf16.mxu0 0
        %1186 = vmatpush2.bf16.msra.mxu0 0
        %1187 = vmatprep.subr.bf16.mxu0 0
        %1188 = vmatpush2.bf16.msra.mxu0 0
        %1189 = vmatprep.subr.bf16.mxu0 0
        %1190 = vmatpush2.bf16.msra.mxu0 0
        %1191 = vmatprep.subr.bf16.mxu0 0
        %1192 = vmatpush2.bf16.msra.mxu0 0
        %1193 = vmatprep.subr.bf16.mxu0 0
        %1194 = vmatpush2.bf16.msra.mxu0 0
        %1195 = vmatprep.subr.bf16.mxu0 0
        %1196 = vmatpush2.bf16.msra.mxu0 0
        %1197 = vmatprep.mubr.bf16.mxu0 0
        %1198 = vmatmul.mubr.bf16.gmra.mxu0 %v955
        %v1199 = vpop.f32.mrf.mxu0
        %v1200 = vadd.f32 %v901, %v1199
        %v1201 = vpop.f32.mrf.mxu0
        %v1202 = vpop.f32.mrf.mxu0
        %v1203 = vpop.f32.mrf.mxu0
        %1204 = vdwg.mxu0
        %v1209 = vunpack.c.l.b16 %v830
        %v1210 = vunpack.c.l.b16 %v831
        %v1211 = vunpack.c.l.b16 %v832
        %v1212 = vunpack.c.l.b16 %v833
        %v1213 = vpack.c.b16 %v1210, %v1209
        %v1214 = vpack.c.b16 %v1212, %v1211
        %1217 = vmatprep.subr.bf16.mxu0 0
        %1218 = vmatpush1.bf16.msra.mxu0 0
        %1219 = vmatprep.subr.bf16.mxu0 0
        %1220 = vmatpush1.bf16.msra.mxu0 0
        %1221 = vmatprep.subr.bf16.mxu0 0
        %1222 = vmatpush1.bf16.msra.mxu0 0
        %1223 = vmatprep.subr.bf16.mxu0 0
        %1224 = vmatpush1.bf16.msra.mxu0 0
        %1225 = vmatprep.subr.bf16.mxu0 0
        %1226 = vmatpush1.bf16.msra.mxu0 0
        %1227 = vmatprep.subr.bf16.mxu0 0
        %1228 = vmatpush1.bf16.msra.mxu0 0
        %1229 = vmatprep.subr.bf16.mxu0 0
        %1230 = vmatpush1.bf16.msra.mxu0 %v1214
        %1231 = vmatprep.subr.bf16.mxu0 0
        %1232 = vmatpush1.bf16.msra.mxu0 %v1213
        %1233 = vmatprep.subr.bf16.mxu0 0
        %1234 = vmatpush2.bf16.msra.mxu0 0
        %1235 = vmatprep.subr.bf16.mxu0 0
        %1236 = vmatpush2.bf16.msra.mxu0 0
        %1237 = vmatprep.subr.bf16.mxu0 0
        %1238 = vmatpush2.bf16.msra.mxu0 0
        %1239 = vmatprep.subr.bf16.mxu0 0
        %1240 = vmatpush2.bf16.msra.mxu0 0
        %1241 = vmatprep.subr.bf16.mxu0 0
        %1242 = vmatpush2.bf16.msra.mxu0 0
        %1243 = vmatprep.subr.bf16.mxu0 0
        %1244 = vmatpush2.bf16.msra.mxu0 0
        %1245 = vmatprep.subr.bf16.mxu0 0
        %1246 = vmatpush2.bf16.msra.mxu0 0
        %1247 = vmatprep.subr.bf16.mxu0 0
        %1248 = vmatpush2.bf16.msra.mxu0 0
        %1249 = vmatprep.mubr.bf16.mxu0 0
        %1250 = vmatmul.mubr.bf16.gmra.mxu0 %v955
        %v1251 = vpop.f32.mrf.mxu0
        %v1252 = vadd.f32 %v905, %v1251
        %v1253 = vpop.f32.mrf.mxu0
        %v1254 = vpop.f32.mrf.mxu0
        %v1255 = vpop.f32.mrf.mxu0
        %1256 = vdwg.mxu0
        %v1261 = vunpack.c.l.b16 %v834
        %v1262 = vunpack.c.l.b16 %v835
        %v1263 = vunpack.c.l.b16 %v836
        %v1264 = vunpack.c.l.b16 %v837
        %v1265 = vpack.c.b16 %v1262, %v1261
        %v1266 = vpack.c.b16 %v1264, %v1263
        %1269 = vmatprep.subr.bf16.mxu0 0
        %1270 = vmatpush1.bf16.msra.mxu0 0
        %1271 = vmatprep.subr.bf16.mxu0 0
        %1272 = vmatpush1.bf16.msra.mxu0 0
        %1273 = vmatprep.subr.bf16.mxu0 0
        %1274 = vmatpush1.bf16.msra.mxu0 0
        %1275 = vmatprep.subr.bf16.mxu0 0
        %1276 = vmatpush1.bf16.msra.mxu0 0
        %1277 = vmatprep.subr.bf16.mxu0 0
        %1278 = vmatpush1.bf16.msra.mxu0 0
        %1279 = vmatprep.subr.bf16.mxu0 0
        %1280 = vmatpush1.bf16.msra.mxu0 0
        %1281 = vmatprep.subr.bf16.mxu0 0
        %1282 = vmatpush1.bf16.msra.mxu0 %v1266
        %1283 = vmatprep.subr.bf16.mxu0 0
        %1284 = vmatpush1.bf16.msra.mxu0 %v1265
        %1285 = vmatprep.subr.bf16.mxu0 0
        %1286 = vmatpush2.bf16.msra.mxu0 0
        %1287 = vmatprep.subr.bf16.mxu0 0
        %1288 = vmatpush2.bf16.msra.mxu0 0
        %1289 = vmatprep.subr.bf16.mxu0 0
        %1290 = vmatpush2.bf16.msra.mxu0 0
        %1291 = vmatprep.subr.bf16.mxu0 0
        %1292 = vmatpush2.bf16.msra.mxu0 0
        %1293 = vmatprep.subr.bf16.mxu0 0
        %1294 = vmatpush2.bf16.msra.mxu0 0
        %1295 = vmatprep.subr.bf16.mxu0 0
        %1296 = vmatpush2.bf16.msra.mxu0 0
        %1297 = vmatprep.subr.bf16.mxu0 0
        %1298 = vmatpush2.bf16.msra.mxu0 0
        %1299 = vmatprep.subr.bf16.mxu0 0
        %1300 = vmatpush2.bf16.msra.mxu0 0
        %1301 = vmatprep.mubr.bf16.mxu0 0
        %1302 = vmatmul.mubr.bf16.gmra.mxu0 %v955
        %v1303 = vpop.f32.mrf.mxu0
        %v1304 = vadd.f32 %v909, %v1303
        %v1305 = vpop.f32.mrf.mxu0
        %v1306 = vpop.f32.mrf.mxu0
        %v1307 = vpop.f32.mrf.mxu0
        %1308 = vdwg.mxu0
        %v1313 = vunpack.c.l.b16 %v838
        %v1314 = vunpack.c.l.b16 %v839
        %v1315 = vunpack.c.l.b16 %v840
        %v1316 = vunpack.c.l.b16 %v841
        %v1317 = vpack.c.b16 %v1314, %v1313
        %v1318 = vpack.c.b16 %v1316, %v1315
        %1321 = vmatprep.subr.bf16.mxu0 0
        %1322 = vmatpush1.bf16.msra.mxu0 0
        %1323 = vmatprep.subr.bf16.mxu0 0
        %1324 = vmatpush1.bf16.msra.mxu0 0
        %1325 = vmatprep.subr.bf16.mxu0 0
        %1326 = vmatpush1.bf16.msra.mxu0 0
        %1327 = vmatprep.subr.bf16.mxu0 0
        %1328 = vmatpush1.bf16.msra.mxu0 0
        %1329 = vmatprep.subr.bf16.mxu0 0
        %1330 = vmatpush1.bf16.msra.mxu0 0
        %1331 = vmatprep.subr.bf16.mxu0 0
        %1332 = vmatpush1.bf16.msra.mxu0 0
        %1333 = vmatprep.subr.bf16.mxu0 0
        %1334 = vmatpush1.bf16.msra.mxu0 %v1318
        %1335 = vmatprep.subr.bf16.mxu0 0
        %1336 = vmatpush1.bf16.msra.mxu0 %v1317
        %1337 = vmatprep.subr.bf16.mxu0 0
        %1338 = vmatpush2.bf16.msra.mxu0 0
        %1339 = vmatprep.subr.bf16.mxu0 0
        %1340 = vmatpush2.bf16.msra.mxu0 0
        %1341 = vmatprep.subr.bf16.mxu0 0
        %1342 = vmatpush2.bf16.msra.mxu0 0
        %1343 = vmatprep.subr.bf16.mxu0 0
        %1344 = vmatpush2.bf16.msra.mxu0 0
        %1345 = vmatprep.subr.bf16.mxu0 0
        %1346 = vmatpush2.bf16.msra.mxu0 0
        %1347 = vmatprep.subr.bf16.mxu0 0
        %1348 = vmatpush2.bf16.msra.mxu0 0
        %1349 = vmatprep.subr.bf16.mxu0 0
        %1350 = vmatpush2.bf16.msra.mxu0 0
        %1351 = vmatprep.subr.bf16.mxu0 0
        %1352 = vmatpush2.bf16.msra.mxu0 0
        %1353 = vmatprep.mubr.bf16.mxu0 0
        %1354 = vmatmul.mubr.bf16.gmra.mxu0 %v955
        %v1355 = vpop.f32.mrf.mxu0
        %v1356 = vadd.f32 %v913, %v1355
        %v1357 = vpop.f32.mrf.mxu0
        %v1358 = vpop.f32.mrf.mxu0
        %v1359 = vpop.f32.mrf.mxu0
        %1360 = vdwg.mxu0
        %v1365 = vunpack.c.l.b16 %v842
        %v1366 = vunpack.c.l.b16 %v843
        %v1367 = vunpack.c.l.b16 %v844
        %v1368 = vunpack.c.l.b16 %v845
        %v1369 = vpack.c.b16 %v1366, %v1365
        %v1370 = vpack.c.b16 %v1368, %v1367
        %1373 = vmatprep.subr.bf16.mxu0 0
        %1374 = vmatpush1.bf16.msra.mxu0 0
        %1375 = vmatprep.subr.bf16.mxu0 0
        %1376 = vmatpush1.bf16.msra.mxu0 0
        %1377 = vmatprep.subr.bf16.mxu0 0
        %1378 = vmatpush1.bf16.msra.mxu0 0
        %1379 = vmatprep.subr.bf16.mxu0 0
        %1380 = vmatpush1.bf16.msra.mxu0 0
        %1381 = vmatprep.subr.bf16.mxu0 0
        %1382 = vmatpush1.bf16.msra.mxu0 0
        %1383 = vmatprep.subr.bf16.mxu0 0
        %1384 = vmatpush1.bf16.msra.mxu0 0
        %1385 = vmatprep.subr.bf16.mxu0 0
        %1386 = vmatpush1.bf16.msra.mxu0 %v1370
        %1387 = vmatprep.subr.bf16.mxu0 0
        %1388 = vmatpush1.bf16.msra.mxu0 %v1369
        %1389 = vmatprep.subr.bf16.mxu0 0
        %1390 = vmatpush2.bf16.msra.mxu0 0
        %1391 = vmatprep.subr.bf16.mxu0 0
        %1392 = vmatpush2.bf16.msra.mxu0 0
        %1393 = vmatprep.subr.bf16.mxu0 0
        %1394 = vmatpush2.bf16.msra.mxu0 0
        %1395 = vmatprep.subr.bf16.mxu0 0
        %1396 = vmatpush2.bf16.msra.mxu0 0
        %1397 = vmatprep.subr.bf16.mxu0 0
        %1398 = vmatpush2.bf16.msra.mxu0 0
        %1399 = vmatprep.subr.bf16.mxu0 0
        %1400 = vmatpush2.bf16.msra.mxu0 0
        %1401 = vmatprep.subr.bf16.mxu0 0
        %1402 = vmatpush2.bf16.msra.mxu0 0
        %1403 = vmatprep.subr.bf16.mxu0 0
        %1404 = vmatpush2.bf16.msra.mxu0 0
        %1405 = vmatprep.mubr.bf16.mxu0 0
        %1406 = vmatmul.mubr.bf16.gmra.mxu0 %v955
        %v1407 = vpop.f32.mrf.mxu0
        %v1408 = vadd.f32 %v917, %v1407
        %v1409 = vpop.f32.mrf.mxu0
        %v1410 = vpop.f32.mrf.mxu0
        %v1411 = vpop.f32.mrf.mxu0
        %1412 = vdwg.mxu0
        %v1417 = vunpack.c.l.b16 %v846
        %v1418 = vunpack.c.l.b16 %v847
        %v1419 = vunpack.c.l.b16 %v848
        %v1420 = vunpack.c.l.b16 %v849
        %v1421 = vpack.c.b16 %v1418, %v1417
        %v1422 = vpack.c.b16 %v1420, %v1419
        %1425 = vmatprep.subr.bf16.mxu0 0
        %1426 = vmatpush1.bf16.msra.mxu0 0
        %1427 = vmatprep.subr.bf16.mxu0 0
        %1428 = vmatpush1.bf16.msra.mxu0 0
        %1429 = vmatprep.subr.bf16.mxu0 0
        %1430 = vmatpush1.bf16.msra.mxu0 0
        %1431 = vmatprep.subr.bf16.mxu0 0
        %1432 = vmatpush1.bf16.msra.mxu0 0
        %1433 = vmatprep.subr.bf16.mxu0 0
        %1434 = vmatpush1.bf16.msra.mxu0 0
        %1435 = vmatprep.subr.bf16.mxu0 0
        %1436 = vmatpush1.bf16.msra.mxu0 0
        %1437 = vmatprep.subr.bf16.mxu0 0
        %1438 = vmatpush1.bf16.msra.mxu0 %v1422
        %1439 = vmatprep.subr.bf16.mxu0 0
        %1440 = vmatpush1.bf16.msra.mxu0 %v1421
        %1441 = vmatprep.subr.bf16.mxu0 0
        %1442 = vmatpush2.bf16.msra.mxu0 0
        %1443 = vmatprep.subr.bf16.mxu0 0
        %1444 = vmatpush2.bf16.msra.mxu0 0
        %1445 = vmatprep.subr.bf16.mxu0 0
        %1446 = vmatpush2.bf16.msra.mxu0 0
        %1447 = vmatprep.subr.bf16.mxu0 0
        %1448 = vmatpush2.bf16.msra.mxu0 0
        %1449 = vmatprep.subr.bf16.mxu0 0
        %1450 = vmatpush2.bf16.msra.mxu0 0
        %1451 = vmatprep.subr.bf16.mxu0 0
        %1452 = vmatpush2.bf16.msra.mxu0 0
        %1453 = vmatprep.subr.bf16.mxu0 0
        %1454 = vmatpush2.bf16.msra.mxu0 0
        %1455 = vmatprep.subr.bf16.mxu0 0
        %1456 = vmatpush2.bf16.msra.mxu0 0
        %1457 = vmatprep.mubr.bf16.mxu0 0
        %1458 = vmatmul.mubr.bf16.gmra.mxu0 %v955
        %v1459 = vpop.f32.mrf.mxu0
        %v1460 = vadd.f32 %v921, %v1459
        %v1461 = vpop.f32.mrf.mxu0
        %v1462 = vpop.f32.mrf.mxu0
        %v1463 = vpop.f32.mrf.mxu0
        %1464 = vdwg.mxu0
        %v1469 = vunpack.c.l.b16 %v850
        %v1470 = vunpack.c.l.b16 %v851
        %v1471 = vunpack.c.l.b16 %v852
        %v1472 = vunpack.c.l.b16 %v853
        %v1473 = vpack.c.b16 %v1470, %v1469
        %v1474 = vpack.c.b16 %v1472, %v1471
        %1477 = vmatprep.subr.bf16.mxu0 0
        %1478 = vmatpush1.bf16.msra.mxu0 0
        %1479 = vmatprep.subr.bf16.mxu0 0
        %1480 = vmatpush1.bf16.msra.mxu0 0
        %1481 = vmatprep.subr.bf16.mxu0 0
        %1482 = vmatpush1.bf16.msra.mxu0 0
        %1483 = vmatprep.subr.bf16.mxu0 0
        %1484 = vmatpush1.bf16.msra.mxu0 0
        %1485 = vmatprep.subr.bf16.mxu0 0
        %1486 = vmatpush1.bf16.msra.mxu0 0
        %1487 = vmatprep.subr.bf16.mxu0 0
        %1488 = vmatpush1.bf16.msra.mxu0 0
        %1489 = vmatprep.subr.bf16.mxu0 0
        %1490 = vmatpush1.bf16.msra.mxu0 %v1474
        %1491 = vmatprep.subr.bf16.mxu0 0
        %1492 = vmatpush1.bf16.msra.mxu0 %v1473
        %1493 = vmatprep.subr.bf16.mxu0 0
        %1494 = vmatpush2.bf16.msra.mxu0 0
        %1495 = vmatprep.subr.bf16.mxu0 0
        %1496 = vmatpush2.bf16.msra.mxu0 0
        %1497 = vmatprep.subr.bf16.mxu0 0
        %1498 = vmatpush2.bf16.msra.mxu0 0
        %1499 = vmatprep.subr.bf16.mxu0 0
        %1500 = vmatpush2.bf16.msra.mxu0 0
        %1501 = vmatprep.subr.bf16.mxu0 0
        %1502 = vmatpush2.bf16.msra.mxu0 0
        %1503 = vmatprep.subr.bf16.mxu0 0
        %1504 = vmatpush2.bf16.msra.mxu0 0
        %1505 = vmatprep.subr.bf16.mxu0 0
        %1506 = vmatpush2.bf16.msra.mxu0 0
        %1507 = vmatprep.subr.bf16.mxu0 0
        %1508 = vmatpush2.bf16.msra.mxu0 0
        %1509 = vmatprep.mubr.bf16.mxu0 0
        %1510 = vmatmul.mubr.bf16.gmra.mxu0 %v955
        %v1511 = vpop.f32.mrf.mxu0
        %v1512 = vadd.f32 %v925, %v1511
        %v1513 = vpop.f32.mrf.mxu0
        %v1514 = vpop.f32.mrf.mxu0
        %v1515 = vpop.f32.mrf.mxu0
        %1516 = vdwg.mxu0
        %v1521 = vunpack.c.l.b16 %v854
        %v1522 = vunpack.c.l.b16 %v855
        %v1523 = vunpack.c.l.b16 %v856
        %v1524 = vunpack.c.l.b16 %v857
        %v1525 = vpack.c.b16 %v1522, %v1521
        %v1526 = vpack.c.b16 %v1524, %v1523
        %1529 = vmatprep.subr.bf16.mxu0 0
        %1530 = vmatpush1.bf16.msra.mxu0 0
        %1531 = vmatprep.subr.bf16.mxu0 0
        %1532 = vmatpush1.bf16.msra.mxu0 0
        %1533 = vmatprep.subr.bf16.mxu0 0
        %1534 = vmatpush1.bf16.msra.mxu0 0
        %1535 = vmatprep.subr.bf16.mxu0 0
        %1536 = vmatpush1.bf16.msra.mxu0 0
        %1537 = vmatprep.subr.bf16.mxu0 0
        %1538 = vmatpush1.bf16.msra.mxu0 0
        %1539 = vmatprep.subr.bf16.mxu0 0
        %1540 = vmatpush1.bf16.msra.mxu0 0
        %1541 = vmatprep.subr.bf16.mxu0 0
        %1542 = vmatpush1.bf16.msra.mxu0 %v1526
        %1543 = vmatprep.subr.bf16.mxu0 0
        %1544 = vmatpush1.bf16.msra.mxu0 %v1525
        %1545 = vmatprep.subr.bf16.mxu0 0
        %1546 = vmatpush2.bf16.msra.mxu0 0
        %1547 = vmatprep.subr.bf16.mxu0 0
        %1548 = vmatpush2.bf16.msra.mxu0 0
        %1549 = vmatprep.subr.bf16.mxu0 0
        %1550 = vmatpush2.bf16.msra.mxu0 0
        %1551 = vmatprep.subr.bf16.mxu0 0
        %1552 = vmatpush2.bf16.msra.mxu0 0
        %1553 = vmatprep.subr.bf16.mxu0 0
        %1554 = vmatpush2.bf16.msra.mxu0 0
        %1555 = vmatprep.subr.bf16.mxu0 0
        %1556 = vmatpush2.bf16.msra.mxu0 0
        %1557 = vmatprep.subr.bf16.mxu0 0
        %1558 = vmatpush2.bf16.msra.mxu0 0
        %1559 = vmatprep.subr.bf16.mxu0 0
        %1560 = vmatpush2.bf16.msra.mxu0 0
        %1561 = vmatprep.mubr.bf16.mxu0 0
        %1562 = vmatmul.mubr.bf16.gmra.mxu0 %v955
        %v1563 = vpop.f32.mrf.mxu0
        %v1564 = vadd.f32 %v929, %v1563
        %v1565 = vpop.f32.mrf.mxu0
        %v1566 = vpop.f32.mrf.mxu0
        %v1567 = vpop.f32.mrf.mxu0
        %1568 = vdwg.mxu0
        %v1569 = vmul.f32 %v992, 0.35355338
        %v1570 = vmul.f32 %v1044, 0.35355338
        %v1571 = vmul.f32 %v1096, 0.35355338
        %v1572 = vmul.f32 %v1148, 0.35355338
        %v1573 = vpack.c.bf16 %v1569, %v1569
        %v1574 = vpack.c.bf16 %v1570, %v1570
        %v1575 = vpack.c.bf16 %v1571, %v1571
        %v1576 = vpack.c.bf16 %v1572, %v1572
        %v1577 = vpack.c.bf16 %v1200, %v1200
        %v1578 = vpack.c.bf16 %v1252, %v1252
        %v1579 = vpack.c.bf16 %v1304, %v1304
        %v1580 = vpack.c.bf16 %v1356, %v1356
        %vm1581 = vcmask 64512
        %v1583 = vsel %vm1581, %v1573, 0
        %v1586 = vsel %vm1581, %v1577, 0
        %1588 = vmatprep.subr.bf16.mxu0 0
        %1589 = vmatpush1.bf16.xpose.msra.mxu0 0
        %1590 = vmatprep.subr.bf16.mxu0 0
        %1591 = vmatpush1.bf16.xpose.msra.mxu0 0
        %1592 = vmatprep.subr.bf16.mxu0 0
        %1593 = vmatpush1.bf16.xpose.msra.mxu0 0
        %1594 = vmatprep.subr.bf16.mxu0 0
        %1595 = vmatpush1.bf16.xpose.msra.mxu0 0
        %1596 = vmatprep.subr.bf16.mxu0 0
        %1597 = vmatpush1.bf16.xpose.msra.mxu0 0
        %1598 = vmatprep.subr.bf16.mxu0 0
        %1599 = vmatpush1.bf16.xpose.msra.mxu0 0
        %1600 = vmatprep.subr.bf16.mxu0 0
        %1601 = vmatpush1.bf16.xpose.msra.mxu0 0
        %1602 = vmatprep.subr.bf16.mxu0 0
        %1603 = vmatpush1.bf16.xpose.msra.mxu0 %v1586
        %1604 = vmatprep.subr.bf16.mxu0 0
        %1605 = vmatpush2.bf16.xpose.msra.mxu0 0
        %1606 = vmatprep.subr.bf16.mxu0 0
        %1607 = vmatpush2.bf16.xpose.msra.mxu0 0
        %1608 = vmatprep.subr.bf16.mxu0 0
        %1609 = vmatpush2.bf16.xpose.msra.mxu0 0
        %1610 = vmatprep.subr.bf16.mxu0 0
        %1611 = vmatpush2.bf16.xpose.msra.mxu0 0
        %1612 = vmatprep.subr.bf16.mxu0 0
        %1613 = vmatpush2.bf16.xpose.msra.mxu0 0
        %1614 = vmatprep.subr.bf16.mxu0 0
        %1615 = vmatpush2.bf16.xpose.msra.mxu0 0
        %1616 = vmatprep.subr.bf16.mxu0 0
        %1617 = vmatpush2.bf16.xpose.msra.mxu0 0
        %1618 = vmatprep.subr.bf16.mxu0 0
        %1619 = vmatpush2.bf16.xpose.msra.mxu0 0
        %1620 = vmatprep.mubr.bf16.mxu0 0
        %1621 = vmatmul.mubr.bf16.gmra.mxu0 %v1583
        %v1622 = vpop.f32.mrf.mxu0
        %v1623 = vadd.f32 %v777, %v1622
        %v1624 = vpop.f32.mrf.mxu0
        %v1625 = vpop.f32.mrf.mxu0
        %v1626 = vpop.f32.mrf.mxu0
        %1627 = vdwg.mxu0
        %v1629 = vsel %vm1581, %v1574, 0
        %v1632 = vsel %vm1581, %v1578, 0
        %1634 = vmatprep.subr.bf16.mxu0 0
        %1635 = vmatpush1.bf16.xpose.msra.mxu0 0
        %1636 = vmatprep.subr.bf16.mxu0 0
        %1637 = vmatpush1.bf16.xpose.msra.mxu0 0
        %1638 = vmatprep.subr.bf16.mxu0 0
        %1639 = vmatpush1.bf16.xpose.msra.mxu0 0
        %1640 = vmatprep.subr.bf16.mxu0 0
        %1641 = vmatpush1.bf16.xpose.msra.mxu0 0
        %1642 = vmatprep.subr.bf16.mxu0 0
        %1643 = vmatpush1.bf16.xpose.msra.mxu0 0
        %1644 = vmatprep.subr.bf16.mxu0 0
        %1645 = vmatpush1.bf16.xpose.msra.mxu0 0
        %1646 = vmatprep.subr.bf16.mxu0 0
        %1647 = vmatpush1.bf16.xpose.msra.mxu0 0
        %1648 = vmatprep.subr.bf16.mxu0 0
        %1649 = vmatpush1.bf16.xpose.msra.mxu0 %v1632
        %1650 = vmatprep.subr.bf16.mxu0 0
        %1651 = vmatpush2.bf16.xpose.msra.mxu0 0
        %1652 = vmatprep.subr.bf16.mxu0 0
        %1653 = vmatpush2.bf16.xpose.msra.mxu0 0
        %1654 = vmatprep.subr.bf16.mxu0 0
        %1655 = vmatpush2.bf16.xpose.msra.mxu0 0
        %1656 = vmatprep.subr.bf16.mxu0 0
        %1657 = vmatpush2.bf16.xpose.msra.mxu0 0
        %1658 = vmatprep.subr.bf16.mxu0 0
        %1659 = vmatpush2.bf16.xpose.msra.mxu0 0
        %1660 = vmatprep.subr.bf16.mxu0 0
        %1661 = vmatpush2.bf16.xpose.msra.mxu0 0
        %1662 = vmatprep.subr.bf16.mxu0 0
        %1663 = vmatpush2.bf16.xpose.msra.mxu0 0
        %1664 = vmatprep.subr.bf16.mxu0 0
        %1665 = vmatpush2.bf16.xpose.msra.mxu0 0
        %1666 = vmatprep.mubr.bf16.mxu0 0
        %1667 = vmatmul.mubr.bf16.gmra.mxu0 %v1629
        %v1668 = vpop.f32.mrf.mxu0
        %v1669 = vadd.f32 %v777, %v1668
        %v1670 = vpop.f32.mrf.mxu0
        %v1671 = vpop.f32.mrf.mxu0
        %v1672 = vpop.f32.mrf.mxu0
        %1673 = vdwg.mxu0
        %v1675 = vsel %vm1581, %v1575, 0
        %v1678 = vsel %vm1581, %v1579, 0
        %1680 = vmatprep.subr.bf16.mxu0 0
        %1681 = vmatpush1.bf16.xpose.msra.mxu0 0
        %1682 = vmatprep.subr.bf16.mxu0 0
        %1683 = vmatpush1.bf16.xpose.msra.mxu0 0
        %1684 = vmatprep.subr.bf16.mxu0 0
        %1685 = vmatpush1.bf16.xpose.msra.mxu0 0
        %1686 = vmatprep.subr.bf16.mxu0 0
        %1687 = vmatpush1.bf16.xpose.msra.mxu0 0
        %1688 = vmatprep.subr.bf16.mxu0 0
        %1689 = vmatpush1.bf16.xpose.msra.mxu0 0
        %1690 = vmatprep.subr.bf16.mxu0 0
        %1691 = vmatpush1.bf16.xpose.msra.mxu0 0
        %1692 = vmatprep.subr.bf16.mxu0 0
        %1693 = vmatpush1.bf16.xpose.msra.mxu0 0
        %1694 = vmatprep.subr.bf16.mxu0 0
        %1695 = vmatpush1.bf16.xpose.msra.mxu0 %v1678
        %1696 = vmatprep.subr.bf16.mxu0 0
        %1697 = vmatpush2.bf16.xpose.msra.mxu0 0
        %1698 = vmatprep.subr.bf16.mxu0 0
        %1699 = vmatpush2.bf16.xpose.msra.mxu0 0
        %1700 = vmatprep.subr.bf16.mxu0 0
        %1701 = vmatpush2.bf16.xpose.msra.mxu0 0
        %1702 = vmatprep.subr.bf16.mxu0 0
        %1703 = vmatpush2.bf16.xpose.msra.mxu0 0
        %1704 = vmatprep.subr.bf16.mxu0 0
        %1705 = vmatpush2.bf16.xpose.msra.mxu0 0
        %1706 = vmatprep.subr.bf16.mxu0 0
        %1707 = vmatpush2.bf16.xpose.msra.mxu0 0
        %1708 = vmatprep.subr.bf16.mxu0 0
        %1709 = vmatpush2.bf16.xpose.msra.mxu0 0
        %1710 = vmatprep.subr.bf16.mxu0 0
        %1711 = vmatpush2.bf16.xpose.msra.mxu0 0
        %1712 = vmatprep.mubr.bf16.mxu0 0
        %1713 = vmatmul.mubr.bf16.gmra.mxu0 %v1675
        %v1714 = vpop.f32.mrf.mxu0
        %v1715 = vadd.f32 %v777, %v1714
        %v1716 = vpop.f32.mrf.mxu0
        %v1717 = vpop.f32.mrf.mxu0
        %v1718 = vpop.f32.mrf.mxu0
        %1719 = vdwg.mxu0
        %v1721 = vsel %vm1581, %v1576, 0
        %v1724 = vsel %vm1581, %v1580, 0
        %1726 = vmatprep.subr.bf16.mxu0 0
        %1727 = vmatpush1.bf16.xpose.msra.mxu0 0
        %1728 = vmatprep.subr.bf16.mxu0 0
        %1729 = vmatpush1.bf16.xpose.msra.mxu0 0
        %1730 = vmatprep.subr.bf16.mxu0 0
        %1731 = vmatpush1.bf16.xpose.msra.mxu0 0
        %1732 = vmatprep.subr.bf16.mxu0 0
        %1733 = vmatpush1.bf16.xpose.msra.mxu0 0
        %1734 = vmatprep.subr.bf16.mxu0 0
        %1735 = vmatpush1.bf16.xpose.msra.mxu0 0
        %1736 = vmatprep.subr.bf16.mxu0 0
        %1737 = vmatpush1.bf16.xpose.msra.mxu0 0
        %1738 = vmatprep.subr.bf16.mxu0 0
        %1739 = vmatpush1.bf16.xpose.msra.mxu0 0
        %1740 = vmatprep.subr.bf16.mxu0 0
        %1741 = vmatpush1.bf16.xpose.msra.mxu0 %v1724
        %1742 = vmatprep.subr.bf16.mxu0 0
        %1743 = vmatpush2.bf16.xpose.msra.mxu0 0
        %1744 = vmatprep.subr.bf16.mxu0 0
        %1745 = vmatpush2.bf16.xpose.msra.mxu0 0
        %1746 = vmatprep.subr.bf16.mxu0 0
        %1747 = vmatpush2.bf16.xpose.msra.mxu0 0
        %1748 = vmatprep.subr.bf16.mxu0 0
        %1749 = vmatpush2.bf16.xpose.msra.mxu0 0
        %1750 = vmatprep.subr.bf16.mxu0 0
        %1751 = vmatpush2.bf16.xpose.msra.mxu0 0
        %1752 = vmatprep.subr.bf16.mxu0 0
        %1753 = vmatpush2.bf16.xpose.msra.mxu0 0
        %1754 = vmatprep.subr.bf16.mxu0 0
        %1755 = vmatpush2.bf16.xpose.msra.mxu0 0
        %1756 = vmatprep.subr.bf16.mxu0 0
        %1757 = vmatpush2.bf16.xpose.msra.mxu0 0
        %1758 = vmatprep.mubr.bf16.mxu0 0
        %1759 = vmatmul.mubr.bf16.gmra.mxu0 %v1721
        %v1760 = vpop.f32.mrf.mxu0
        %v1761 = vadd.f32 %v777, %v1760
        %v1762 = vpop.f32.mrf.mxu0
        %v1763 = vpop.f32.mrf.mxu0
        %v1764 = vpop.f32.mrf.mxu0
        %1765 = vdwg.mxu0
        %v1766 = vsel %vm1581, %v1623, -inf
        %1767 = vmax.xlane.f32.xlu0 %v1766
        %v1768 = vpop.xlane.xlu0 %1767
        %v1769 = vsel %vm1581, %v1669, -inf
        %1770 = vmax.xlane.f32.xlu0 %v1769
        %v1771 = vpop.xlane.xlu0 %1770
        %v1772 = vsel %vm1581, %v1715, -inf
        %1773 = vmax.xlane.f32.xlu0 %v1772
        %v1774 = vpop.xlane.xlu0 %1773
        %v1775 = vsel %vm1581, %v1761, -inf
        %1776 = vmax.xlane.f32.xlu0 %v1775
        %v1777 = vpop.xlane.xlu0 %1776
        %v1778 = vsub.f32 %v1623, %v1768
        %v1779 = vsub.f32 %v1669, %v1771
        %v1780 = vsub.f32 %v1715, %v1774
        %v1781 = vsub.f32 %v1761, %v1777
        %v1782 = vmul.f32 %v1778, 1.442695
        %v1783 = vpow.pop %v1782
        %v1784 = vmul.f32 %v1779, 1.442695
        %v1785 = vpow.pop %v1784
        %v1786 = vmul.f32 %v1780, 1.442695
        %v1787 = vpow.pop %v1786
        %v1788 = vmul.f32 %v1781, 1.442695
        %v1789 = vpow.pop %v1788
        %v1790 = vsel %vm1581, %v1783, 0.0
        %1791 = vadd.xlane.f32.xlu0 %v1790
        %v1792 = vpop.xlane.xlu0 %1791
        %v1793 = vsel %vm1581, %v1785, 0.0
        %1794 = vadd.xlane.f32.xlu0 %v1793
        %v1795 = vpop.xlane.xlu0 %1794
        %v1796 = vsel %vm1581, %v1787, 0.0
        %1797 = vadd.xlane.f32.xlu0 %v1796
        %v1798 = vpop.xlane.xlu0 %1797
        %v1799 = vsel %vm1581, %v1789, 0.0
        %1800 = vadd.xlane.f32.xlu0 %v1799
        %v1801 = vpop.xlane.xlu0 %1800
        %v1802 = vrcp.pop %v1792
        %v1803 = vrcp.pop %v1795
        %v1804 = vrcp.pop %v1798
        %v1805 = vrcp.pop %v1801
        %v1806 = vmul.f32 %v1783, %v1802
        %v1807 = vmul.f32 %v1785, %v1803
        %v1808 = vmul.f32 %v1787, %v1804
        %v1809 = vmul.f32 %v1789, %v1805
        %v1810 = vpack.c.bf16 %v1806, %v1806
        %v1811 = vpack.c.bf16 %v1807, %v1807
        %v1812 = vpack.c.bf16 %v1808, %v1808
        %v1813 = vpack.c.bf16 %v1809, %v1809
        %v1814 = vpack.c.bf16 %v1408, %v1408
        %v1815 = vpack.c.bf16 %v1460, %v1460
        %v1816 = vpack.c.bf16 %v1512, %v1512
        %v1817 = vpack.c.bf16 %v1564, %v1564
        %v1819 = vsel %vm1581, %v1810, 0
        %vm1821 = vcmask 1043456
        %v1823 = vsel %vm1821, %v1814, 0
        %1825 = vmatprep.subr.bf16.mxu0 0
        %1826 = vmatpush1.bf16.msra.mxu0 0
        %1827 = vmatprep.subr.bf16.mxu0 0
        %1828 = vmatpush1.bf16.msra.mxu0 0
        %1829 = vmatprep.subr.bf16.mxu0 0
        %1830 = vmatpush1.bf16.msra.mxu0 0
        %1831 = vmatprep.subr.bf16.mxu0 0
        %1832 = vmatpush1.bf16.msra.mxu0 0
        %1833 = vmatprep.subr.bf16.mxu0 0
        %1834 = vmatpush1.bf16.msra.mxu0 0
        %1835 = vmatprep.subr.bf16.mxu0 0
        %1836 = vmatpush1.bf16.msra.mxu0 0
        %1837 = vmatprep.subr.bf16.mxu0 0
        %1838 = vmatpush1.bf16.msra.mxu0 0
        %1839 = vmatprep.subr.bf16.mxu0 0
        %1840 = vmatpush1.bf16.msra.mxu0 %v1823
        %1841 = vmatprep.subr.bf16.mxu0 0
        %1842 = vmatpush2.bf16.msra.mxu0 0
        %1843 = vmatprep.subr.bf16.mxu0 0
        %1844 = vmatpush2.bf16.msra.mxu0 0
        %1845 = vmatprep.subr.bf16.mxu0 0
        %1846 = vmatpush2.bf16.msra.mxu0 0
        %1847 = vmatprep.subr.bf16.mxu0 0
        %1848 = vmatpush2.bf16.msra.mxu0 0
        %1849 = vmatprep.subr.bf16.mxu0 0
        %1850 = vmatpush2.bf16.msra.mxu0 0
        %1851 = vmatprep.subr.bf16.mxu0 0
        %1852 = vmatpush2.bf16.msra.mxu0 0
        %1853 = vmatprep.subr.bf16.mxu0 0
        %1854 = vmatpush2.bf16.msra.mxu0 0
        %1855 = vmatprep.subr.bf16.mxu0 0
        %1856 = vmatpush2.bf16.msra.mxu0 0
        %1857 = vmatprep.mubr.bf16.mxu0 0
        %1858 = vmatmul.mubr.bf16.gmra.mxu0 %v1819
        %v1859 = vpop.f32.mrf.mxu0
        %v1860 = vadd.f32 0.0, %v1859
        %v1861 = vpop.f32.mrf.mxu0
        %v1862 = vpop.f32.mrf.mxu0
        %v1863 = vpop.f32.mrf.mxu0
        %1864 = vdwg.mxu0
        %v1866 = vsel %vm1581, %v1811, 0
        %v1869 = vsel %vm1821, %v1815, 0
        %1871 = vmatprep.subr.bf16.mxu0 0
        %1872 = vmatpush1.bf16.msra.mxu0 0
        %1873 = vmatprep.subr.bf16.mxu0 0
        %1874 = vmatpush1.bf16.msra.mxu0 0
        %1875 = vmatprep.subr.bf16.mxu0 0
        %1876 = vmatpush1.bf16.msra.mxu0 0
        %1877 = vmatprep.subr.bf16.mxu0 0
        %1878 = vmatpush1.bf16.msra.mxu0 0
        %1879 = vmatprep.subr.bf16.mxu0 0
        %1880 = vmatpush1.bf16.msra.mxu0 0
        %1881 = vmatprep.subr.bf16.mxu0 0
        %1882 = vmatpush1.bf16.msra.mxu0 0
        %1883 = vmatprep.subr.bf16.mxu0 0
        %1884 = vmatpush1.bf16.msra.mxu0 0
        %1885 = vmatprep.subr.bf16.mxu0 0
        %1886 = vmatpush1.bf16.msra.mxu0 %v1869
        %1887 = vmatprep.subr.bf16.mxu0 0
        %1888 = vmatpush2.bf16.msra.mxu0 0
        %1889 = vmatprep.subr.bf16.mxu0 0
        %1890 = vmatpush2.bf16.msra.mxu0 0
        %1891 = vmatprep.subr.bf16.mxu0 0
        %1892 = vmatpush2.bf16.msra.mxu0 0
        %1893 = vmatprep.subr.bf16.mxu0 0
        %1894 = vmatpush2.bf16.msra.mxu0 0
        %1895 = vmatprep.subr.bf16.mxu0 0
        %1896 = vmatpush2.bf16.msra.mxu0 0
        %1897 = vmatprep.subr.bf16.mxu0 0
        %1898 = vmatpush2.bf16.msra.mxu0 0
        %1899 = vmatprep.subr.bf16.mxu0 0
        %1900 = vmatpush2.bf16.msra.mxu0 0
        %1901 = vmatprep.subr.bf16.mxu0 0
        %1902 = vmatpush2.bf16.msra.mxu0 0
        %1903 = vmatprep.mubr.bf16.mxu0 0
        %1904 = vmatmul.mubr.bf16.gmra.mxu0 %v1866
        %v1905 = vpop.f32.mrf.mxu0
        %v1906 = vadd.f32 0.0, %v1905
        %v1907 = vpop.f32.mrf.mxu0
        %v1908 = vpop.f32.mrf.mxu0
        %v1909 = vpop.f32.mrf.mxu0
        %1910 = vdwg.mxu0
        %v1912 = vsel %vm1581, %v1812, 0
        %v1915 = vsel %vm1821, %v1816, 0
        %1917 = vmatprep.subr.bf16.mxu0 0
        %1918 = vmatpush1.bf16.msra.mxu0 0
        %1919 = vmatprep.subr.bf16.mxu0 0
        %1920 = vmatpush1.bf16.msra.mxu0 0
        %1921 = vmatprep.subr.bf16.mxu0 0
        %1922 = vmatpush1.bf16.msra.mxu0 0
        %1923 = vmatprep.subr.bf16.mxu0 0
        %1924 = vmatpush1.bf16.msra.mxu0 0
        %1925 = vmatprep.subr.bf16.mxu0 0
        %1926 = vmatpush1.bf16.msra.mxu0 0
        %1927 = vmatprep.subr.bf16.mxu0 0
        %1928 = vmatpush1.bf16.msra.mxu0 0
        %1929 = vmatprep.subr.bf16.mxu0 0
        %1930 = vmatpush1.bf16.msra.mxu0 0
        %1931 = vmatprep.subr.bf16.mxu0 0
        %1932 = vmatpush1.bf16.msra.mxu0 %v1915
        %1933 = vmatprep.subr.bf16.mxu0 0
        %1934 = vmatpush2.bf16.msra.mxu0 0
        %1935 = vmatprep.subr.bf16.mxu0 0
        %1936 = vmatpush2.bf16.msra.mxu0 0
        %1937 = vmatprep.subr.bf16.mxu0 0
        %1938 = vmatpush2.bf16.msra.mxu0 0
        %1939 = vmatprep.subr.bf16.mxu0 0
        %1940 = vmatpush2.bf16.msra.mxu0 0
        %1941 = vmatprep.subr.bf16.mxu0 0
        %1942 = vmatpush2.bf16.msra.mxu0 0
        %1943 = vmatprep.subr.bf16.mxu0 0
        %1944 = vmatpush2.bf16.msra.mxu0 0
        %1945 = vmatprep.subr.bf16.mxu0 0
        %1946 = vmatpush2.bf16.msra.mxu0 0
        %1947 = vmatprep.subr.bf16.mxu0 0
        %1948 = vmatpush2.bf16.msra.mxu0 0
        %1949 = vmatprep.mubr.bf16.mxu0 0
        %1950 = vmatmul.mubr.bf16.gmra.mxu0 %v1912
        %v1951 = vpop.f32.mrf.mxu0
        %v1952 = vadd.f32 0.0, %v1951
        %v1953 = vpop.f32.mrf.mxu0
        %v1954 = vpop.f32.mrf.mxu0
        %v1955 = vpop.f32.mrf.mxu0
        %1956 = vdwg.mxu0
        %v1958 = vsel %vm1581, %v1813, 0
        %v1961 = vsel %vm1821, %v1817, 0
        %1963 = vmatprep.subr.bf16.mxu0 0
        %1964 = vmatpush1.bf16.msra.mxu0 0
        %1965 = vmatprep.subr.bf16.mxu0 0
        %1966 = vmatpush1.bf16.msra.mxu0 0
        %1967 = vmatprep.subr.bf16.mxu0 0
        %1968 = vmatpush1.bf16.msra.mxu0 0
        %1969 = vmatprep.subr.bf16.mxu0 0
        %1970 = vmatpush1.bf16.msra.mxu0 0
        %1971 = vmatprep.subr.bf16.mxu0 0
        %1972 = vmatpush1.bf16.msra.mxu0 0
        %1973 = vmatprep.subr.bf16.mxu0 0
        %1974 = vmatpush1.bf16.msra.mxu0 0
        %1975 = vmatprep.subr.bf16.mxu0 0
        %1976 = vmatpush1.bf16.msra.mxu0 0
        %1977 = vmatprep.subr.bf16.mxu0 0
        %1978 = vmatpush1.bf16.msra.mxu0 %v1961
        %1979 = vmatprep.subr.bf16.mxu0 0
        %1980 = vmatpush2.bf16.msra.mxu0 0
        %1981 = vmatprep.subr.bf16.mxu0 0
        %1982 = vmatpush2.bf16.msra.mxu0 0
        %1983 = vmatprep.subr.bf16.mxu0 0
        %1984 = vmatpush2.bf16.msra.mxu0 0
        %1985 = vmatprep.subr.bf16.mxu0 0
        %1986 = vmatpush2.bf16.msra.mxu0 0
        %1987 = vmatprep.subr.bf16.mxu0 0
        %1988 = vmatpush2.bf16.msra.mxu0 0
        %1989 = vmatprep.subr.bf16.mxu0 0
        %1990 = vmatpush2.bf16.msra.mxu0 0
        %1991 = vmatprep.subr.bf16.mxu0 0
        %1992 = vmatpush2.bf16.msra.mxu0 0
        %1993 = vmatprep.subr.bf16.mxu0 0
        %1994 = vmatpush2.bf16.msra.mxu0 0
        %1995 = vmatprep.mubr.bf16.mxu0 0
        %1996 = vmatmul.mubr.bf16.gmra.mxu0 %v1958
        %v1997 = vpop.f32.mrf.mxu0
        %v1998 = vadd.f32 0.0, %v1997
        %v1999 = vpop.f32.mrf.mxu0
        %v2000 = vpop.f32.mrf.mxu0
        %v2001 = vpop.f32.mrf.mxu0
        %2002 = vdwg.mxu0
        %v2003 = vpack.c.bf16 %v1860, %v1860
        %v2004 = vpack.c.bf16 %v1906, %v1906
        %v2005 = vpack.c.bf16 %v1952, %v1952
        %v2006 = vpack.c.bf16 %v1998, %v1998
        %v2007 = vld [vmem:[%s7] sm:$0xf]
        %v2008 = vld [vmem:[%s7 + $0x4] sm:$0xf]
        %v2009 = vld [vmem:[%s7 + $0x8] sm:$0xf]
        %v2010 = vld [vmem:[%s7 + $0xc] sm:$0xf]
        %v2012 = vsel %vm1581, %v2003, 0
        %v2015 = vsel %vm1821, %v2007, 0
        %2017 = vmatprep.subr.bf16.mxu0 0
        %2018 = vmatpush1.bf16.msra.mxu0 0
        %2019 = vmatprep.subr.bf16.mxu0 0
        %2020 = vmatpush1.bf16.msra.mxu0 0
        %2021 = vmatprep.subr.bf16.mxu0 0
        %2022 = vmatpush1.bf16.msra.mxu0 0
        %2023 = vmatprep.subr.bf16.mxu0 0
        %2024 = vmatpush1.bf16.msra.mxu0 0
        %2025 = vmatprep.subr.bf16.mxu0 0
        %2026 = vmatpush1.bf16.msra.mxu0 0
        %2027 = vmatprep.subr.bf16.mxu0 0
        %2028 = vmatpush1.bf16.msra.mxu0 0
        %2029 = vmatprep.subr.bf16.mxu0 0
        %2030 = vmatpush1.bf16.msra.mxu0 0
        %2031 = vmatprep.subr.bf16.mxu0 0
        %2032 = vmatpush1.bf16.msra.mxu0 %v2015
        %2033 = vmatprep.subr.bf16.mxu0 0
        %2034 = vmatpush2.bf16.msra.mxu0 0
        %2035 = vmatprep.subr.bf16.mxu0 0
        %2036 = vmatpush2.bf16.msra.mxu0 0
        %2037 = vmatprep.subr.bf16.mxu0 0
        %2038 = vmatpush2.bf16.msra.mxu0 0
        %2039 = vmatprep.subr.bf16.mxu0 0
        %2040 = vmatpush2.bf16.msra.mxu0 0
        %2041 = vmatprep.subr.bf16.mxu0 0
        %2042 = vmatpush2.bf16.msra.mxu0 0
        %2043 = vmatprep.subr.bf16.mxu0 0
        %2044 = vmatpush2.bf16.msra.mxu0 0
        %2045 = vmatprep.subr.bf16.mxu0 0
        %2046 = vmatpush2.bf16.msra.mxu0 0
        %2047 = vmatprep.subr.bf16.mxu0 0
        %2048 = vmatpush2.bf16.msra.mxu0 0
        %2049 = vmatprep.mubr.bf16.mxu0 0
        %2050 = vmatmul.mubr.bf16.gmra.mxu0 %v2012
        %v2051 = vpop.f32.mrf.mxu0
        %v2052 = vadd.f32 0.0, %v2051
        %v2053 = vpop.f32.mrf.mxu0
        %v2054 = vpop.f32.mrf.mxu0
        %v2055 = vpop.f32.mrf.mxu0
        %2056 = vdwg.mxu0
        %v2058 = vsel %vm1581, %v2004, 0
        %v2061 = vsel %vm1821, %v2008, 0
        %2063 = vmatprep.subr.bf16.mxu0 0
        %2064 = vmatpush1.bf16.msra.mxu0 0
        %2065 = vmatprep.subr.bf16.mxu0 0
        %2066 = vmatpush1.bf16.msra.mxu0 0
        %2067 = vmatprep.subr.bf16.mxu0 0
        %2068 = vmatpush1.bf16.msra.mxu0 0
        %2069 = vmatprep.subr.bf16.mxu0 0
        %2070 = vmatpush1.bf16.msra.mxu0 0
        %2071 = vmatprep.subr.bf16.mxu0 0
        %2072 = vmatpush1.bf16.msra.mxu0 0
        %2073 = vmatprep.subr.bf16.mxu0 0
        %2074 = vmatpush1.bf16.msra.mxu0 0
        %2075 = vmatprep.subr.bf16.mxu0 0
        %2076 = vmatpush1.bf16.msra.mxu0 0
        %2077 = vmatprep.subr.bf16.mxu0 0
        %2078 = vmatpush1.bf16.msra.mxu0 %v2061
        %2079 = vmatprep.subr.bf16.mxu0 0
        %2080 = vmatpush2.bf16.msra.mxu0 0
        %2081 = vmatprep.subr.bf16.mxu0 0
        %2082 = vmatpush2.bf16.msra.mxu0 0
        %2083 = vmatprep.subr.bf16.mxu0 0
        %2084 = vmatpush2.bf16.msra.mxu0 0
        %2085 = vmatprep.subr.bf16.mxu0 0
        %2086 = vmatpush2.bf16.msra.mxu0 0
        %2087 = vmatprep.subr.bf16.mxu0 0
        %2088 = vmatpush2.bf16.msra.mxu0 0
        %2089 = vmatprep.subr.bf16.mxu0 0
        %2090 = vmatpush2.bf16.msra.mxu0 0
        %2091 = vmatprep.subr.bf16.mxu0 0
        %2092 = vmatpush2.bf16.msra.mxu0 0
        %2093 = vmatprep.subr.bf16.mxu0 0
        %2094 = vmatpush2.bf16.msra.mxu0 0
        %2095 = vmatprep.mubr.bf16.mxu0 0
        %2096 = vmatmul.mubr.bf16.gmra.mxu0 %v2058
        %v2097 = vpop.f32.mrf.mxu0
        %v2098 = vadd.f32 0.0, %v2097
        %v2099 = vpop.f32.mrf.mxu0
        %v2100 = vpop.f32.mrf.mxu0
        %v2101 = vpop.f32.mrf.mxu0
        %2102 = vdwg.mxu0
        %v2104 = vsel %vm1581, %v2005, 0
        %v2107 = vsel %vm1821, %v2009, 0
        %2109 = vmatprep.subr.bf16.mxu0 0
        %2110 = vmatpush1.bf16.msra.mxu0 0
        %2111 = vmatprep.subr.bf16.mxu0 0
        %2112 = vmatpush1.bf16.msra.mxu0 0
        %2113 = vmatprep.subr.bf16.mxu0 0
        %2114 = vmatpush1.bf16.msra.mxu0 0
        %2115 = vmatprep.subr.bf16.mxu0 0
        %2116 = vmatpush1.bf16.msra.mxu0 0
        %2117 = vmatprep.subr.bf16.mxu0 0
        %2118 = vmatpush1.bf16.msra.mxu0 0
        %2119 = vmatprep.subr.bf16.mxu0 0
        %2120 = vmatpush1.bf16.msra.mxu0 0
        %2121 = vmatprep.subr.bf16.mxu0 0
        %2122 = vmatpush1.bf16.msra.mxu0 0
        %2123 = vmatprep.subr.bf16.mxu0 0
        %2124 = vmatpush1.bf16.msra.mxu0 %v2107
        %2125 = vmatprep.subr.bf16.mxu0 0
        %2126 = vmatpush2.bf16.msra.mxu0 0
        %2127 = vmatprep.subr.bf16.mxu0 0
        %2128 = vmatpush2.bf16.msra.mxu0 0
        %2129 = vmatprep.subr.bf16.mxu0 0
        %2130 = vmatpush2.bf16.msra.mxu0 0
        %2131 = vmatprep.subr.bf16.mxu0 0
        %2132 = vmatpush2.bf16.msra.mxu0 0
        %2133 = vmatprep.subr.bf16.mxu0 0
        %2134 = vmatpush2.bf16.msra.mxu0 0
        %2135 = vmatprep.subr.bf16.mxu0 0
        %2136 = vmatpush2.bf16.msra.mxu0 0
        %2137 = vmatprep.subr.bf16.mxu0 0
        %2138 = vmatpush2.bf16.msra.mxu0 0
        %2139 = vmatprep.subr.bf16.mxu0 0
        %2140 = vmatpush2.bf16.msra.mxu0 0
        %2141 = vmatprep.mubr.bf16.mxu0 0
        %2142 = vmatmul.mubr.bf16.gmra.mxu0 %v2104
        %v2143 = vpop.f32.mrf.mxu0
        %v2144 = vadd.f32 0.0, %v2143
        %v2145 = vpop.f32.mrf.mxu0
        %v2146 = vpop.f32.mrf.mxu0
        %v2147 = vpop.f32.mrf.mxu0
        %2148 = vdwg.mxu0
        %v2150 = vsel %vm1581, %v2006, 0
        %v2153 = vsel %vm1821, %v2010, 0
        %2155 = vmatprep.subr.bf16.mxu0 0
        %2156 = vmatpush1.bf16.msra.mxu0 0
        %2157 = vmatprep.subr.bf16.mxu0 0
        %2158 = vmatpush1.bf16.msra.mxu0 0
        %2159 = vmatprep.subr.bf16.mxu0 0
        %2160 = vmatpush1.bf16.msra.mxu0 0
        %2161 = vmatprep.subr.bf16.mxu0 0
        %2162 = vmatpush1.bf16.msra.mxu0 0
        %2163 = vmatprep.subr.bf16.mxu0 0
        %2164 = vmatpush1.bf16.msra.mxu0 0
        %2165 = vmatprep.subr.bf16.mxu0 0
        %2166 = vmatpush1.bf16.msra.mxu0 0
        %2167 = vmatprep.subr.bf16.mxu0 0
        %2168 = vmatpush1.bf16.msra.mxu0 0
        %2169 = vmatprep.subr.bf16.mxu0 0
        %2170 = vmatpush1.bf16.msra.mxu0 %v2153
        %2171 = vmatprep.subr.bf16.mxu0 0
        %2172 = vmatpush2.bf16.msra.mxu0 0
        %2173 = vmatprep.subr.bf16.mxu0 0
        %2174 = vmatpush2.bf16.msra.mxu0 0
        %2175 = vmatprep.subr.bf16.mxu0 0
        %2176 = vmatpush2.bf16.msra.mxu0 0
        %2177 = vmatprep.subr.bf16.mxu0 0
        %2178 = vmatpush2.bf16.msra.mxu0 0
        %2179 = vmatprep.subr.bf16.mxu0 0
        %2180 = vmatpush2.bf16.msra.mxu0 0
        %2181 = vmatprep.subr.bf16.mxu0 0
        %2182 = vmatpush2.bf16.msra.mxu0 0
        %2183 = vmatprep.subr.bf16.mxu0 0
        %2184 = vmatpush2.bf16.msra.mxu0 0
        %2185 = vmatprep.subr.bf16.mxu0 0
        %2186 = vmatpush2.bf16.msra.mxu0 0
        %2187 = vmatprep.mubr.bf16.mxu0 0
        %2188 = vmatmul.mubr.bf16.gmra.mxu0 %v2150
        %v2189 = vpop.f32.mrf.mxu0
        %v2190 = vadd.f32 0.0, %v2189
        %v2191 = vpop.f32.mrf.mxu0
        %v2192 = vpop.f32.mrf.mxu0
        %v2193 = vpop.f32.mrf.mxu0
        %2194 = vdwg.mxu0
        %v2195 = vsel %vm780, %v2052, 0.0
        %v2196 = vsel %vm780, %v2098, 0.0
        %v2197 = vadd.f32 %v2195, %v2196
        %v2198 = vsel %vm780, %v2144, 0.0
        %v2199 = vadd.f32 %v2197, %v2198
        %v2200 = vsel %vm780, %v2190, 0.0
        %v2201 = vadd.f32 %v2199, %v2200
        %v2202 = vadd.f32 %v769, %v2201
        %v2203 = vld [vmem:[%s8] sm:$0x1]
        %v2205 = vlaneseq
        %v2206 = vshrl.u32 %v2205, 7
        %v2207 = vsub.s32 0, %v2206
        %v2208 = vrot.slane %v2203, %v2207
        %v2210 = vadd.f32 %v2202, %v2208
        %v2211 = vld [vmem:[%s9] sm:$0x1]
        %v2212 = vld [vmem:[%s10] sm:$0x1]
        %v2213 = vsel %vm780, %v2210, 0.0
        %2214 = vadd.xlane.f32.xlu0 %v2213
        %v2215 = vpop.xlane.xlu0 %2214
        %v2216 = vmul.f32 %v2215, %v784
        %v2217 = vsub.f32 %v2210, %v2216
        %v2218 = vmul.f32 %v2217, %v2217
        %v2219 = vsel %vm780, %v2218, 0.0
        %2220 = vadd.xlane.f32.xlu0 %v2219
        %v2221 = vpop.xlane.xlu0 %2220
        %v2222 = vmul.f32 %v2221, %v784
        %v2223 = vadd.f32 %v2222, 1e-05
        %v2224 = vrsqrt.pop %v2223
        %v2225 = vmul.f32 %v2217, %v2224
        %v2227 = vlaneseq
        %v2228 = vshrl.u32 %v2227, 7
        %v2229 = vsub.s32 0, %v2228
        %v2230 = vrot.slane %v2211, %v2229
        %v2232 = vmul.f32 %v2225, %v2230
        %v2234 = vlaneseq
        %v2235 = vshrl.u32 %v2234, 7
        %v2236 = vsub.s32 0, %v2235
        %v2237 = vrot.slane %v2212, %v2236
        %v2239 = vadd.f32 %v2232, %v2237
        %v2240 = vpack.c.bf16 %v2239, %v2239
        %v2241 = vld [vmem:[%s11] sm:$0xf]
        %v2242 = vld [vmem:[%s11 + $0x4] sm:$0xf]
        %v2243 = vld [vmem:[%s11 + $0x8] sm:$0xf]
        %v2244 = vld [vmem:[%s11 + $0xc] sm:$0xf]
        %v2245 = vld [vmem:[%s12] sm:$0x1]
        %v2247 = vlaneseq
        %v2248 = vshrl.u32 %v2247, 7
        %v2249 = vsub.s32 0, %v2248
        %v2250 = vrot.slane %v2245, %v2249
        %v2256 = vunpack.c.l.b16 %v2241
        %v2257 = vunpack.c.l.b16 %v2242
        %v2258 = vunpack.c.l.b16 %v2243
        %v2259 = vunpack.c.l.b16 %v2244
        %v2260 = vpack.c.b16 %v2257, %v2256
        %v2261 = vpack.c.b16 %v2259, %v2258
        %v2265 = vsel %vm780, %v2240, 0
        %2267 = vmatprep.subr.bf16.mxu0 0
        %2268 = vmatpush1.bf16.msra.mxu0 0
        %2269 = vmatprep.subr.bf16.mxu0 0
        %2270 = vmatpush1.bf16.msra.mxu0 0
        %2271 = vmatprep.subr.bf16.mxu0 0
        %2272 = vmatpush1.bf16.msra.mxu0 0
        %2273 = vmatprep.subr.bf16.mxu0 0
        %2274 = vmatpush1.bf16.msra.mxu0 0
        %2275 = vmatprep.subr.bf16.mxu0 0
        %2276 = vmatpush1.bf16.msra.mxu0 0
        %2277 = vmatprep.subr.bf16.mxu0 0
        %2278 = vmatpush1.bf16.msra.mxu0 0
        %2279 = vmatprep.subr.bf16.mxu0 0
        %2280 = vmatpush1.bf16.msra.mxu0 %v2261
        %2281 = vmatprep.subr.bf16.mxu0 0
        %2282 = vmatpush1.bf16.msra.mxu0 %v2260
        %2283 = vmatprep.subr.bf16.mxu0 0
        %2284 = vmatpush2.bf16.msra.mxu0 0
        %2285 = vmatprep.subr.bf16.mxu0 0
        %2286 = vmatpush2.bf16.msra.mxu0 0
        %2287 = vmatprep.subr.bf16.mxu0 0
        %2288 = vmatpush2.bf16.msra.mxu0 0
        %2289 = vmatprep.subr.bf16.mxu0 0
        %2290 = vmatpush2.bf16.msra.mxu0 0
        %2291 = vmatprep.subr.bf16.mxu0 0
        %2292 = vmatpush2.bf16.msra.mxu0 0
        %2293 = vmatprep.subr.bf16.mxu0 0
        %2294 = vmatpush2.bf16.msra.mxu0 0
        %2295 = vmatprep.subr.bf16.mxu0 0
        %2296 = vmatpush2.bf16.msra.mxu0 0
        %2297 = vmatprep.subr.bf16.mxu0 0
        %2298 = vmatpush2.bf16.msra.mxu0 0
        %2299 = vmatprep.mubr.bf16.mxu0 0
        %2300 = vmatmul.mubr.bf16.gmra.mxu0 %v2265
        %v2301 = vpop.f32.mrf.mxu0
        %v2302 = vadd.f32 %v2250, %v2301
        %v2303 = vpop.f32.mrf.mxu0
        %v2304 = vpop.f32.mrf.mxu0
        %v2305 = vpop.f32.mrf.mxu0
        %2306 = vdwg.mxu0
        %v2307 = vmul.f32 %v2302, 0.5
        %v2308 = vmul.f32 %v2302, %v2302
        %v2309 = vmul.f32 %v2308, %v2302
        %v2310 = vmul.f32 %v2309, 0.044715
        %v2311 = vadd.f32 %v2302, %v2310
        %v2312 = vmul.f32 %v2311, 0.7978846
        %v2313 = vtanh.pop %v2312
        %v2314 = vadd.f32 %v2313, 1.0
        %v2315 = vmul.f32 %v2307, %v2314
        %v2316 = vpack.c.bf16 %v2315, %v2315
        %v2317 = vld [vmem:[%s13] sm:$0xf]
        %v2318 = vld [vmem:[%s13 + $0x4] sm:$0xf]
        %v2319 = vld [vmem:[%s13 + $0x8] sm:$0xf]
        %v2320 = vld [vmem:[%s13 + $0xc] sm:$0xf]
        %v2321 = vld [vmem:[%s13 + $0x10] sm:$0xf]
        %v2322 = vld [vmem:[%s13 + $0x14] sm:$0xf]
        %v2323 = vld [vmem:[%s13 + $0x18] sm:$0xf]
        %v2324 = vld [vmem:[%s13 + $0x1c] sm:$0xf]
        %v2325 = vld [vmem:[%s13 + $0x20] sm:$0xf]
        %v2326 = vld [vmem:[%s13 + $0x24] sm:$0xf]
        %v2327 = vld [vmem:[%s13 + $0x28] sm:$0xf]
        %v2328 = vld [vmem:[%s13 + $0x2c] sm:$0xf]
        %v2329 = vld [vmem:[%s13 + $0x30] sm:$0xf]
        %v2330 = vld [vmem:[%s13 + $0x34] sm:$0xf]
        %v2331 = vld [vmem:[%s13 + $0x38] sm:$0xf]
        %v2332 = vld [vmem:[%s13 + $0x3c] sm:$0xf]
        %v2349 = vunpack.c.l.b16 %v2317
        %v2350 = vunpack.c.l.b16 %v2318
        %v2351 = vunpack.c.l.b16 %v2319
        %v2352 = vunpack.c.l.b16 %v2320
        %v2353 = vunpack.c.l.b16 %v2321
        %v2354 = vunpack.c.l.b16 %v2322
        %v2355 = vunpack.c.l.b16 %v2323
        %v2356 = vunpack.c.l.b16 %v2324
        %v2357 = vunpack.c.l.b16 %v2325
        %v2358 = vunpack.c.l.b16 %v2326
        %v2359 = vunpack.c.l.b16 %v2327
        %v2360 = vunpack.c.l.b16 %v2328
        %v2361 = vunpack.c.l.b16 %v2329
        %v2362 = vunpack.c.l.b16 %v2330
        %v2363 = vunpack.c.l.b16 %v2331
        %v2364 = vunpack.c.l.b16 %v2332
        %v2365 = vpack.c.b16 %v2350, %v2349
        %v2366 = vpack.c.b16 %v2352, %v2351
        %v2367 = vpack.c.b16 %v2354, %v2353
        %v2368 = vpack.c.b16 %v2356, %v2355
        %v2369 = vpack.c.b16 %v2358, %v2357
        %v2370 = vpack.c.b16 %v2360, %v2359
        %v2371 = vpack.c.b16 %v2362, %v2361
        %v2372 = vpack.c.b16 %v2364, %v2363
        %2381 = vmatprep.subr.bf16.mxu0 0
        %2382 = vmatpush1.bf16.msra.mxu0 %v2372
        %2383 = vmatprep.subr.bf16.mxu0 0
        %2384 = vmatpush1.bf16.msra.mxu0 %v2371
        %2385 = vmatprep.subr.bf16.mxu0 0
        %2386 = vmatpush1.bf16.msra.mxu0 %v2370
        %2387 = vmatprep.subr.bf16.mxu0 0
        %2388 = vmatpush1.bf16.msra.mxu0 %v2369
        %2389 = vmatprep.subr.bf16.mxu0 0
        %2390 = vmatpush1.bf16.msra.mxu0 %v2368
        %2391 = vmatprep.subr.bf16.mxu0 0
        %2392 = vmatpush1.bf16.msra.mxu0 %v2367
        %2393 = vmatprep.subr.bf16.mxu0 0
        %2394 = vmatpush1.bf16.msra.mxu0 %v2366
        %2395 = vmatprep.subr.bf16.mxu0 0
        %2396 = vmatpush1.bf16.msra.mxu0 %v2365
        %2397 = vmatprep.subr.bf16.mxu0 0
        %2398 = vmatpush2.bf16.msra.mxu0 0
        %2399 = vmatprep.subr.bf16.mxu0 0
        %2400 = vmatpush2.bf16.msra.mxu0 0
        %2401 = vmatprep.subr.bf16.mxu0 0
        %2402 = vmatpush2.bf16.msra.mxu0 0
        %2403 = vmatprep.subr.bf16.mxu0 0
        %2404 = vmatpush2.bf16.msra.mxu0 0
        %2405 = vmatprep.subr.bf16.mxu0 0
        %2406 = vmatpush2.bf16.msra.mxu0 0
        %2407 = vmatprep.subr.bf16.mxu0 0
        %2408 = vmatpush2.bf16.msra.mxu0 0
        %2409 = vmatprep.subr.bf16.mxu0 0
        %2410 = vmatpush2.bf16.msra.mxu0 0
        %2411 = vmatprep.subr.bf16.mxu0 0
        %2412 = vmatpush2.bf16.msra.mxu0 0
        %2413 = vmatprep.mubr.bf16.mxu0 0
        %2414 = vmatmul.mubr.bf16.gmra.mxu0 %v2316
        %v2415 = vpop.f32.mrf.mxu0
        %v2416 = vadd.f32 0.0, %v2415
        %v2417 = vpop.f32.mrf.mxu0
        %v2418 = vpop.f32.mrf.mxu0
        %v2419 = vpop.f32.mrf.mxu0
        %2420 = vdwg.mxu0
        %v2421 = vadd.f32 %v2210, %v2416
        %v2422 = vld [vmem:[%s14] sm:$0x1]
        %v2424 = vlaneseq
        %v2425 = vshrl.u32 %v2424, 7
        %v2426 = vsub.s32 0, %v2425
        %v2427 = vrot.slane %v2422, %v2426
        %v2429 = vadd.f32 %v2421, %v2427
        %s2430 = scalar_lea.vmem %s3, 1
        %v2431 = vld [vmem:[%s2430] sm:$0x1]
        %s2432 = scalar_lea.vmem %s4, 1
        %v2433 = vld [vmem:[%s2432] sm:$0x1]
        %v2434 = vsel %vm780, %v2429, 0.0
        %2435 = vadd.xlane.f32.xlu0 %v2434
        %v2436 = vpop.xlane.xlu0 %2435
        %v2437 = vmul.f32 %v2436, %v784
        %v2438 = vsub.f32 %v2429, %v2437
        %v2439 = vmul.f32 %v2438, %v2438
        %v2440 = vsel %vm780, %v2439, 0.0
        %2441 = vadd.xlane.f32.xlu0 %v2440
        %v2442 = vpop.xlane.xlu0 %2441
        %v2443 = vmul.f32 %v2442, %v784
        %v2444 = vadd.f32 %v2443, 1e-05
        %v2445 = vrsqrt.pop %v2444
        %v2446 = vmul.f32 %v2438, %v2445
        %v2448 = vlaneseq
        %v2449 = vshrl.u32 %v2448, 7
        %v2450 = vsub.s32 0, %v2449
        %v2451 = vrot.slane %v2431, %v2450
        %v2453 = vmul.f32 %v2446, %v2451
        %v2455 = vlaneseq
        %v2456 = vshrl.u32 %v2455, 7
        %v2457 = vsub.s32 0, %v2456
        %v2458 = vrot.slane %v2433, %v2457
        %v2460 = vadd.f32 %v2453, %v2458
        %v2461 = vpack.c.bf16 %v2460, %v2460
        %s2462 = scalar_lea.vmem %s5, 192
        %v2463 = vld [vmem:[%s2462] sm:$0xf]
        %v2464 = vld [vmem:[%s2462 + $0x4] sm:$0xf]
        %v2465 = vld [vmem:[%s2462 + $0x8] sm:$0xf]
        %v2466 = vld [vmem:[%s2462 + $0xc] sm:$0xf]
        %v2467 = vld [vmem:[%s2462 + $0x10] sm:$0xf]
        %v2468 = vld [vmem:[%s2462 + $0x14] sm:$0xf]
        %v2469 = vld [vmem:[%s2462 + $0x18] sm:$0xf]
        %v2470 = vld [vmem:[%s2462 + $0x1c] sm:$0xf]
        %v2471 = vld [vmem:[%s2462 + $0x20] sm:$0xf]
        %v2472 = vld [vmem:[%s2462 + $0x24] sm:$0xf]
        %v2473 = vld [vmem:[%s2462 + $0x28] sm:$0xf]
        %v2474 = vld [vmem:[%s2462 + $0x2c] sm:$0xf]
        %v2475 = vld [vmem:[%s2462 + $0x30] sm:$0xf]
        %v2476 = vld [vmem:[%s2462 + $0x34] sm:$0xf]
        %v2477 = vld [vmem:[%s2462 + $0x38] sm:$0xf]
        %v2478 = vld [vmem:[%s2462 + $0x3c] sm:$0xf]
        %v2479 = vld [vmem:[%s2462 + $0x40] sm:$0xf]
        %v2480 = vld [vmem:[%s2462 + $0x44] sm:$0xf]
        %v2481 = vld [vmem:[%s2462 + $0x48] sm:$0xf]
        %v2482 = vld [vmem:[%s2462 + $0x4c] sm:$0xf]
        %v2483 = vld [vmem:[%s2462 + $0x50] sm:$0xf]
        %v2484 = vld [vmem:[%s2462 + $0x54] sm:$0xf]
        %v2485 = vld [vmem:[%s2462 + $0x58] sm:$0xf]
        %v2486 = vld [vmem:[%s2462 + $0x5c] sm:$0xf]
        %v2487 = vld [vmem:[%s2462 + $0x60] sm:$0xf]
        %v2488 = vld [vmem:[%s2462 + $0x64] sm:$0xf]
        %v2489 = vld [vmem:[%s2462 + $0x68] sm:$0xf]
        %v2490 = vld [vmem:[%s2462 + $0x6c] sm:$0xf]
        %v2491 = vld [vmem:[%s2462 + $0x70] sm:$0xf]
        %v2492 = vld [vmem:[%s2462 + $0x74] sm:$0xf]
        %v2493 = vld [vmem:[%s2462 + $0x78] sm:$0xf]
        %v2494 = vld [vmem:[%s2462 + $0x7c] sm:$0xf]
        %v2495 = vld [vmem:[%s2462 + $0x80] sm:$0xf]
        %v2496 = vld [vmem:[%s2462 + $0x84] sm:$0xf]
        %v2497 = vld [vmem:[%s2462 + $0x88] sm:$0xf]
        %v2498 = vld [vmem:[%s2462 + $0x8c] sm:$0xf]
        %v2499 = vld [vmem:[%s2462 + $0x90] sm:$0xf]
        %v2500 = vld [vmem:[%s2462 + $0x94] sm:$0xf]
        %v2501 = vld [vmem:[%s2462 + $0x98] sm:$0xf]
        %v2502 = vld [vmem:[%s2462 + $0x9c] sm:$0xf]
        %v2503 = vld [vmem:[%s2462 + $0xa0] sm:$0xf]
        %v2504 = vld [vmem:[%s2462 + $0xa4] sm:$0xf]
        %v2505 = vld [vmem:[%s2462 + $0xa8] sm:$0xf]
        %v2506 = vld [vmem:[%s2462 + $0xac] sm:$0xf]
        %v2507 = vld [vmem:[%s2462 + $0xb0] sm:$0xf]
        %v2508 = vld [vmem:[%s2462 + $0xb4] sm:$0xf]
        %v2509 = vld [vmem:[%s2462 + $0xb8] sm:$0xf]
        %v2510 = vld [vmem:[%s2462 + $0xbc] sm:$0xf]
        %s2511 = scalar_lea.vmem %s6, 12
        %v2512 = vld [vmem:[%s2511] sm:$0x1]
        %v2513 = vld [vmem:[%s2511 + $0x1] sm:$0x1]
        %v2514 = vld [vmem:[%s2511 + $0x2] sm:$0x1]
        %v2515 = vld [vmem:[%s2511 + $0x3] sm:$0x1]
        %v2516 = vld [vmem:[%s2511 + $0x4] sm:$0x1]
        %v2517 = vld [vmem:[%s2511 + $0x5] sm:$0x1]
        %v2518 = vld [vmem:[%s2511 + $0x6] sm:$0x1]
        %v2519 = vld [vmem:[%s2511 + $0x7] sm:$0x1]
        %v2520 = vld [vmem:[%s2511 + $0x8] sm:$0x1]
        %v2521 = vld [vmem:[%s2511 + $0x9] sm:$0x1]
        %v2522 = vld [vmem:[%s2511 + $0xa] sm:$0x1]
        %v2523 = vld [vmem:[%s2511 + $0xb] sm:$0x1]
        %v2536 = vlaneseq
        %v2537 = vshrl.u32 %v2536, 7
        %v2538 = vsub.s32 0, %v2537
        %v2539 = vrot.slane %v2512, %v2538
        %v2540 = vlaneseq
        %v2541 = vshrl.u32 %v2540, 7
        %v2542 = vsub.s32 0, %v2541
        %v2543 = vrot.slane %v2513, %v2542
        %v2544 = vlaneseq
        %v2545 = vshrl.u32 %v2544, 7
        %v2546 = vsub.s32 0, %v2545
        %v2547 = vrot.slane %v2514, %v2546
        %v2548 = vlaneseq
        %v2549 = vshrl.u32 %v2548, 7
        %v2550 = vsub.s32 0, %v2549
        %v2551 = vrot.slane %v2515, %v2550
        %v2552 = vlaneseq
        %v2553 = vshrl.u32 %v2552, 7
        %v2554 = vsub.s32 0, %v2553
        %v2555 = vrot.slane %v2516, %v2554
        %v2556 = vlaneseq
        %v2557 = vshrl.u32 %v2556, 7
        %v2558 = vsub.s32 0, %v2557
        %v2559 = vrot.slane %v2517, %v2558
        %v2560 = vlaneseq
        %v2561 = vshrl.u32 %v2560, 7
        %v2562 = vsub.s32 0, %v2561
        %v2563 = vrot.slane %v2518, %v2562
        %v2564 = vlaneseq
        %v2565 = vshrl.u32 %v2564, 7
        %v2566 = vsub.s32 0, %v2565
        %v2567 = vrot.slane %v2519, %v2566
        %v2568 = vlaneseq
        %v2569 = vshrl.u32 %v2568, 7
        %v2570 = vsub.s32 0, %v2569
        %v2571 = vrot.slane %v2520, %v2570
        %v2572 = vlaneseq
        %v2573 = vshrl.u32 %v2572, 7
        %v2574 = vsub.s32 0, %v2573
        %v2575 = vrot.slane %v2521, %v2574
        %v2576 = vlaneseq
        %v2577 = vshrl.u32 %v2576, 7
        %v2578 = vsub.s32 0, %v2577
        %v2579 = vrot.slane %v2522, %v2578
        %v2580 = vlaneseq
        %v2581 = vshrl.u32 %v2580, 7
        %v2582 = vsub.s32 0, %v2581
        %v2583 = vrot.slane %v2523, %v2582
        %v2600 = vunpack.c.l.b16 %v2463
        %v2601 = vunpack.c.l.b16 %v2464
        %v2602 = vunpack.c.l.b16 %v2465
        %v2603 = vunpack.c.l.b16 %v2466
        %v2604 = vpack.c.b16 %v2601, %v2600
        %v2605 = vpack.c.b16 %v2603, %v2602
        %v2609 = vsel %vm780, %v2461, 0
        %2611 = vmatprep.subr.bf16.mxu0 0
        %2612 = vmatpush1.bf16.msra.mxu0 0
        %2613 = vmatprep.subr.bf16.mxu0 0
        %2614 = vmatpush1.bf16.msra.mxu0 0
        %2615 = vmatprep.subr.bf16.mxu0 0
        %2616 = vmatpush1.bf16.msra.mxu0 0
        %2617 = vmatprep.subr.bf16.mxu0 0
        %2618 = vmatpush1.bf16.msra.mxu0 0
        %2619 = vmatprep.subr.bf16.mxu0 0
        %2620 = vmatpush1.bf16.msra.mxu0 0
        %2621 = vmatprep.subr.bf16.mxu0 0
        %2622 = vmatpush1.bf16.msra.mxu0 0
        %2623 = vmatprep.subr.bf16.mxu0 0
        %2624 = vmatpush1.bf16.msra.mxu0 %v2605
        %2625 = vmatprep.subr.bf16.mxu0 0
        %2626 = vmatpush1.bf16.msra.mxu0 %v2604
        %2627 = vmatprep.subr.bf16.mxu0 0
        %2628 = vmatpush2.bf16.msra.mxu0 0
        %2629 = vmatprep.subr.bf16.mxu0 0
        %2630 = vmatpush2.bf16.msra.mxu0 0
        %2631 = vmatprep.subr.bf16.mxu0 0
        %2632 = vmatpush2.bf16.msra.mxu0 0
        %2633 = vmatprep.subr.bf16.mxu0 0
        %2634 = vmatpush2.bf16.msra.mxu0 0
        %2635 = vmatprep.subr.bf16.mxu0 0
        %2636 = vmatpush2.bf16.msra.mxu0 0
        %2637 = vmatprep.subr.bf16.mxu0 0
        %2638 = vmatpush2.bf16.msra.mxu0 0
        %2639 = vmatprep.subr.bf16.mxu0 0
        %2640 = vmatpush2.bf16.msra.mxu0 0
        %2641 = vmatprep.subr.bf16.mxu0 0
        %2642 = vmatpush2.bf16.msra.mxu0 0
        %2643 = vmatprep.mubr.bf16.mxu0 0
        %2644 = vmatmul.mubr.bf16.gmra.mxu0 %v2609
        %v2645 = vpop.f32.mrf.mxu0
        %v2646 = vadd.f32 %v2539, %v2645
        %v2647 = vpop.f32.mrf.mxu0
        %v2648 = vpop.f32.mrf.mxu0
        %v2649 = vpop.f32.mrf.mxu0
        %2650 = vdwg.mxu0
        %v2655 = vunpack.c.l.b16 %v2467
        %v2656 = vunpack.c.l.b16 %v2468
        %v2657 = vunpack.c.l.b16 %v2469
        %v2658 = vunpack.c.l.b16 %v2470
        %v2659 = vpack.c.b16 %v2656, %v2655
        %v2660 = vpack.c.b16 %v2658, %v2657
        %2663 = vmatprep.subr.bf16.mxu0 0
        %2664 = vmatpush1.bf16.msra.mxu0 0
        %2665 = vmatprep.subr.bf16.mxu0 0
        %2666 = vmatpush1.bf16.msra.mxu0 0
        %2667 = vmatprep.subr.bf16.mxu0 0
        %2668 = vmatpush1.bf16.msra.mxu0 0
        %2669 = vmatprep.subr.bf16.mxu0 0
        %2670 = vmatpush1.bf16.msra.mxu0 0
        %2671 = vmatprep.subr.bf16.mxu0 0
        %2672 = vmatpush1.bf16.msra.mxu0 0
        %2673 = vmatprep.subr.bf16.mxu0 0
        %2674 = vmatpush1.bf16.msra.mxu0 0
        %2675 = vmatprep.subr.bf16.mxu0 0
        %2676 = vmatpush1.bf16.msra.mxu0 %v2660
        %2677 = vmatprep.subr.bf16.mxu0 0
        %2678 = vmatpush1.bf16.msra.mxu0 %v2659
        %2679 = vmatprep.subr.bf16.mxu0 0
        %2680 = vmatpush2.bf16.msra.mxu0 0
        %2681 = vmatprep.subr.bf16.mxu0 0
        %2682 = vmatpush2.bf16.msra.mxu0 0
        %2683 = vmatprep.subr.bf16.mxu0 0
        %2684 = vmatpush2.bf16.msra.mxu0 0
        %2685 = vmatprep.subr.bf16.mxu0 0
        %2686 = vmatpush2.bf16.msra.mxu0 0
        %2687 = vmatprep.subr.bf16.mxu0 0
        %2688 = vmatpush2.bf16.msra.mxu0 0
        %2689 = vmatprep.subr.bf16.mxu0 0
        %2690 = vmatpush2.bf16.msra.mxu0 0
        %2691 = vmatprep.subr.bf16.mxu0 0
        %2692 = vmatpush2.bf16.msra.mxu0 0
        %2693 = vmatprep.subr.bf16.mxu0 0
        %2694 = vmatpush2.bf16.msra.mxu0 0
        %2695 = vmatprep.mubr.bf16.mxu0 0
        %2696 = vmatmul.mubr.bf16.gmra.mxu0 %v2609
        %v2697 = vpop.f32.mrf.mxu0
        %v2698 = vadd.f32 %v2543, %v2697
        %v2699 = vpop.f32.mrf.mxu0
        %v2700 = vpop.f32.mrf.mxu0
        %v2701 = vpop.f32.mrf.mxu0
        %2702 = vdwg.mxu0
        %v2707 = vunpack.c.l.b16 %v2471
        %v2708 = vunpack.c.l.b16 %v2472
        %v2709 = vunpack.c.l.b16 %v2473
        %v2710 = vunpack.c.l.b16 %v2474
        %v2711 = vpack.c.b16 %v2708, %v2707
        %v2712 = vpack.c.b16 %v2710, %v2709
        %2715 = vmatprep.subr.bf16.mxu0 0
        %2716 = vmatpush1.bf16.msra.mxu0 0
        %2717 = vmatprep.subr.bf16.mxu0 0
        %2718 = vmatpush1.bf16.msra.mxu0 0
        %2719 = vmatprep.subr.bf16.mxu0 0
        %2720 = vmatpush1.bf16.msra.mxu0 0
        %2721 = vmatprep.subr.bf16.mxu0 0
        %2722 = vmatpush1.bf16.msra.mxu0 0
        %2723 = vmatprep.subr.bf16.mxu0 0
        %2724 = vmatpush1.bf16.msra.mxu0 0
        %2725 = vmatprep.subr.bf16.mxu0 0
        %2726 = vmatpush1.bf16.msra.mxu0 0
        %2727 = vmatprep.subr.bf16.mxu0 0
        %2728 = vmatpush1.bf16.msra.mxu0 %v2712
        %2729 = vmatprep.subr.bf16.mxu0 0
        %2730 = vmatpush1.bf16.msra.mxu0 %v2711
        %2731 = vmatprep.subr.bf16.mxu0 0
        %2732 = vmatpush2.bf16.msra.mxu0 0
        %2733 = vmatprep.subr.bf16.mxu0 0
        %2734 = vmatpush2.bf16.msra.mxu0 0
        %2735 = vmatprep.subr.bf16.mxu0 0
        %2736 = vmatpush2.bf16.msra.mxu0 0
        %2737 = vmatprep.subr.bf16.mxu0 0
        %2738 = vmatpush2.bf16.msra.mxu0 0
        %2739 = vmatprep.subr.bf16.mxu0 0
        %2740 = vmatpush2.bf16.msra.mxu0 0
        %2741 = vmatprep.subr.bf16.mxu0 0
        %2742 = vmatpush2.bf16.msra.mxu0 0
        %2743 = vmatprep.subr.bf16.mxu0 0
        %2744 = vmatpush2.bf16.msra.mxu0 0
        %2745 = vmatprep.subr.bf16.mxu0 0
        %2746 = vmatpush2.bf16.msra.mxu0 0
        %2747 = vmatprep.mubr.bf16.mxu0 0
        %2748 = vmatmul.mubr.bf16.gmra.mxu0 %v2609
        %v2749 = vpop.f32.mrf.mxu0
        %v2750 = vadd.f32 %v2547, %v2749
        %v2751 = vpop.f32.mrf.mxu0
        %v2752 = vpop.f32.mrf.mxu0
        %v2753 = vpop.f32.mrf.mxu0
        %2754 = vdwg.mxu0
        %v2759 = vunpack.c.l.b16 %v2475
        %v2760 = vunpack.c.l.b16 %v2476
        %v2761 = vunpack.c.l.b16 %v2477
        %v2762 = vunpack.c.l.b16 %v2478
        %v2763 = vpack.c.b16 %v2760, %v2759
        %v2764 = vpack.c.b16 %v2762, %v2761
        %2767 = vmatprep.subr.bf16.mxu0 0
        %2768 = vmatpush1.bf16.msra.mxu0 0
        %2769 = vmatprep.subr.bf16.mxu0 0
        %2770 = vmatpush1.bf16.msra.mxu0 0
        %2771 = vmatprep.subr.bf16.mxu0 0
        %2772 = vmatpush1.bf16.msra.mxu0 0
        %2773 = vmatprep.subr.bf16.mxu0 0
        %2774 = vmatpush1.bf16.msra.mxu0 0
        %2775 = vmatprep.subr.bf16.mxu0 0
        %2776 = vmatpush1.bf16.msra.mxu0 0
        %2777 = vmatprep.subr.bf16.mxu0 0
        %2778 = vmatpush1.bf16.msra.mxu0 0
        %2779 = vmatprep.subr.bf16.mxu0 0
        %2780 = vmatpush1.bf16.msra.mxu0 %v2764
        %2781 = vmatprep.subr.bf16.mxu0 0
        %2782 = vmatpush1.bf16.msra.mxu0 %v2763
        %2783 = vmatprep.subr.bf16.mxu0 0
        %2784 = vmatpush2.bf16.msra.mxu0 0
        %2785 = vmatprep.subr.bf16.mxu0 0
        %2786 = vmatpush2.bf16.msra.mxu0 0
        %2787 = vmatprep.subr.bf16.mxu0 0
        %2788 = vmatpush2.bf16.msra.mxu0 0
        %2789 = vmatprep.subr.bf16.mxu0 0
        %2790 = vmatpush2.bf16.msra.mxu0 0
        %2791 = vmatprep.subr.bf16.mxu0 0
        %2792 = vmatpush2.bf16.msra.mxu0 0
        %2793 = vmatprep.subr.bf16.mxu0 0
        %2794 = vmatpush2.bf16.msra.mxu0 0
        %2795 = vmatprep.subr.bf16.mxu0 0
        %2796 = vmatpush2.bf16.msra.mxu0 0
        %2797 = vmatprep.subr.bf16.mxu0 0
        %2798 = vmatpush2.bf16.msra.mxu0 0
        %2799 = vmatprep.mubr.bf16.mxu0 0
        %2800 = vmatmul.mubr.bf16.gmra.mxu0 %v2609
        %v2801 = vpop.f32.mrf.mxu0
        %v2802 = vadd.f32 %v2551, %v2801
        %v2803 = vpop.f32.mrf.mxu0
        %v2804 = vpop.f32.mrf.mxu0
        %v2805 = vpop.f32.mrf.mxu0
        %2806 = vdwg.mxu0
        %v2811 = vunpack.c.l.b16 %v2479
        %v2812 = vunpack.c.l.b16 %v2480
        %v2813 = vunpack.c.l.b16 %v2481
        %v2814 = vunpack.c.l.b16 %v2482
        %v2815 = vpack.c.b16 %v2812, %v2811
        %v2816 = vpack.c.b16 %v2814, %v2813
        %2819 = vmatprep.subr.bf16.mxu0 0
        %2820 = vmatpush1.bf16.msra.mxu0 0
        %2821 = vmatprep.subr.bf16.mxu0 0
        %2822 = vmatpush1.bf16.msra.mxu0 0
        %2823 = vmatprep.subr.bf16.mxu0 0
        %2824 = vmatpush1.bf16.msra.mxu0 0
        %2825 = vmatprep.subr.bf16.mxu0 0
        %2826 = vmatpush1.bf16.msra.mxu0 0
        %2827 = vmatprep.subr.bf16.mxu0 0
        %2828 = vmatpush1.bf16.msra.mxu0 0
        %2829 = vmatprep.subr.bf16.mxu0 0
        %2830 = vmatpush1.bf16.msra.mxu0 0
        %2831 = vmatprep.subr.bf16.mxu0 0
        %2832 = vmatpush1.bf16.msra.mxu0 %v2816
        %2833 = vmatprep.subr.bf16.mxu0 0
        %2834 = vmatpush1.bf16.msra.mxu0 %v2815
        %2835 = vmatprep.subr.bf16.mxu0 0
        %2836 = vmatpush2.bf16.msra.mxu0 0
        %2837 = vmatprep.subr.bf16.mxu0 0
        %2838 = vmatpush2.bf16.msra.mxu0 0
        %2839 = vmatprep.subr.bf16.mxu0 0
        %2840 = vmatpush2.bf16.msra.mxu0 0
        %2841 = vmatprep.subr.bf16.mxu0 0
        %2842 = vmatpush2.bf16.msra.mxu0 0
        %2843 = vmatprep.subr.bf16.mxu0 0
        %2844 = vmatpush2.bf16.msra.mxu0 0
        %2845 = vmatprep.subr.bf16.mxu0 0
        %2846 = vmatpush2.bf16.msra.mxu0 0
        %2847 = vmatprep.subr.bf16.mxu0 0
        %2848 = vmatpush2.bf16.msra.mxu0 0
        %2849 = vmatprep.subr.bf16.mxu0 0
        %2850 = vmatpush2.bf16.msra.mxu0 0
        %2851 = vmatprep.mubr.bf16.mxu0 0
        %2852 = vmatmul.mubr.bf16.gmra.mxu0 %v2609
        %v2853 = vpop.f32.mrf.mxu0
        %v2854 = vadd.f32 %v2555, %v2853
        %v2855 = vpop.f32.mrf.mxu0
        %v2856 = vpop.f32.mrf.mxu0
        %v2857 = vpop.f32.mrf.mxu0
        %2858 = vdwg.mxu0
        %v2863 = vunpack.c.l.b16 %v2483
        %v2864 = vunpack.c.l.b16 %v2484
        %v2865 = vunpack.c.l.b16 %v2485
        %v2866 = vunpack.c.l.b16 %v2486
        %v2867 = vpack.c.b16 %v2864, %v2863
        %v2868 = vpack.c.b16 %v2866, %v2865
        %2871 = vmatprep.subr.bf16.mxu0 0
        %2872 = vmatpush1.bf16.msra.mxu0 0
        %2873 = vmatprep.subr.bf16.mxu0 0
        %2874 = vmatpush1.bf16.msra.mxu0 0
        %2875 = vmatprep.subr.bf16.mxu0 0
        %2876 = vmatpush1.bf16.msra.mxu0 0
        %2877 = vmatprep.subr.bf16.mxu0 0
        %2878 = vmatpush1.bf16.msra.mxu0 0
        %2879 = vmatprep.subr.bf16.mxu0 0
        %2880 = vmatpush1.bf16.msra.mxu0 0
        %2881 = vmatprep.subr.bf16.mxu0 0
        %2882 = vmatpush1.bf16.msra.mxu0 0
        %2883 = vmatprep.subr.bf16.mxu0 0
        %2884 = vmatpush1.bf16.msra.mxu0 %v2868
        %2885 = vmatprep.subr.bf16.mxu0 0
        %2886 = vmatpush1.bf16.msra.mxu0 %v2867
        %2887 = vmatprep.subr.bf16.mxu0 0
        %2888 = vmatpush2.bf16.msra.mxu0 0
        %2889 = vmatprep.subr.bf16.mxu0 0
        %2890 = vmatpush2.bf16.msra.mxu0 0
        %2891 = vmatprep.subr.bf16.mxu0 0
        %2892 = vmatpush2.bf16.msra.mxu0 0
        %2893 = vmatprep.subr.bf16.mxu0 0
        %2894 = vmatpush2.bf16.msra.mxu0 0
        %2895 = vmatprep.subr.bf16.mxu0 0
        %2896 = vmatpush2.bf16.msra.mxu0 0
        %2897 = vmatprep.subr.bf16.mxu0 0
        %2898 = vmatpush2.bf16.msra.mxu0 0
        %2899 = vmatprep.subr.bf16.mxu0 0
        %2900 = vmatpush2.bf16.msra.mxu0 0
        %2901 = vmatprep.subr.bf16.mxu0 0
        %2902 = vmatpush2.bf16.msra.mxu0 0
        %2903 = vmatprep.mubr.bf16.mxu0 0
        %2904 = vmatmul.mubr.bf16.gmra.mxu0 %v2609
        %v2905 = vpop.f32.mrf.mxu0
        %v2906 = vadd.f32 %v2559, %v2905
        %v2907 = vpop.f32.mrf.mxu0
        %v2908 = vpop.f32.mrf.mxu0
        %v2909 = vpop.f32.mrf.mxu0
        %2910 = vdwg.mxu0
        %v2915 = vunpack.c.l.b16 %v2487
        %v2916 = vunpack.c.l.b16 %v2488
        %v2917 = vunpack.c.l.b16 %v2489
        %v2918 = vunpack.c.l.b16 %v2490
        %v2919 = vpack.c.b16 %v2916, %v2915
        %v2920 = vpack.c.b16 %v2918, %v2917
        %2923 = vmatprep.subr.bf16.mxu0 0
        %2924 = vmatpush1.bf16.msra.mxu0 0
        %2925 = vmatprep.subr.bf16.mxu0 0
        %2926 = vmatpush1.bf16.msra.mxu0 0
        %2927 = vmatprep.subr.bf16.mxu0 0
        %2928 = vmatpush1.bf16.msra.mxu0 0
        %2929 = vmatprep.subr.bf16.mxu0 0
        %2930 = vmatpush1.bf16.msra.mxu0 0
        %2931 = vmatprep.subr.bf16.mxu0 0
        %2932 = vmatpush1.bf16.msra.mxu0 0
        %2933 = vmatprep.subr.bf16.mxu0 0
        %2934 = vmatpush1.bf16.msra.mxu0 0
        %2935 = vmatprep.subr.bf16.mxu0 0
        %2936 = vmatpush1.bf16.msra.mxu0 %v2920
        %2937 = vmatprep.subr.bf16.mxu0 0
        %2938 = vmatpush1.bf16.msra.mxu0 %v2919
        %2939 = vmatprep.subr.bf16.mxu0 0
        %2940 = vmatpush2.bf16.msra.mxu0 0
        %2941 = vmatprep.subr.bf16.mxu0 0
        %2942 = vmatpush2.bf16.msra.mxu0 0
        %2943 = vmatprep.subr.bf16.mxu0 0
        %2944 = vmatpush2.bf16.msra.mxu0 0
        %2945 = vmatprep.subr.bf16.mxu0 0
        %2946 = vmatpush2.bf16.msra.mxu0 0
        %2947 = vmatprep.subr.bf16.mxu0 0
        %2948 = vmatpush2.bf16.msra.mxu0 0
        %2949 = vmatprep.subr.bf16.mxu0 0
        %2950 = vmatpush2.bf16.msra.mxu0 0
        %2951 = vmatprep.subr.bf16.mxu0 0
        %2952 = vmatpush2.bf16.msra.mxu0 0
        %2953 = vmatprep.subr.bf16.mxu0 0
        %2954 = vmatpush2.bf16.msra.mxu0 0
        %2955 = vmatprep.mubr.bf16.mxu0 0
        %2956 = vmatmul.mubr.bf16.gmra.mxu0 %v2609
        %v2957 = vpop.f32.mrf.mxu0
        %v2958 = vadd.f32 %v2563, %v2957
        %v2959 = vpop.f32.mrf.mxu0
        %v2960 = vpop.f32.mrf.mxu0
        %v2961 = vpop.f32.mrf.mxu0
        %2962 = vdwg.mxu0
        %v2967 = vunpack.c.l.b16 %v2491
        %v2968 = vunpack.c.l.b16 %v2492
        %v2969 = vunpack.c.l.b16 %v2493
        %v2970 = vunpack.c.l.b16 %v2494
        %v2971 = vpack.c.b16 %v2968, %v2967
        %v2972 = vpack.c.b16 %v2970, %v2969
        %2975 = vmatprep.subr.bf16.mxu0 0
        %2976 = vmatpush1.bf16.msra.mxu0 0
        %2977 = vmatprep.subr.bf16.mxu0 0
        %2978 = vmatpush1.bf16.msra.mxu0 0
        %2979 = vmatprep.subr.bf16.mxu0 0
        %2980 = vmatpush1.bf16.msra.mxu0 0
        %2981 = vmatprep.subr.bf16.mxu0 0
        %2982 = vmatpush1.bf16.msra.mxu0 0
        %2983 = vmatprep.subr.bf16.mxu0 0
        %2984 = vmatpush1.bf16.msra.mxu0 0
        %2985 = vmatprep.subr.bf16.mxu0 0
        %2986 = vmatpush1.bf16.msra.mxu0 0
        %2987 = vmatprep.subr.bf16.mxu0 0
        %2988 = vmatpush1.bf16.msra.mxu0 %v2972
        %2989 = vmatprep.subr.bf16.mxu0 0
        %2990 = vmatpush1.bf16.msra.mxu0 %v2971
        %2991 = vmatprep.subr.bf16.mxu0 0
        %2992 = vmatpush2.bf16.msra.mxu0 0
        %2993 = vmatprep.subr.bf16.mxu0 0
        %2994 = vmatpush2.bf16.msra.mxu0 0
        %2995 = vmatprep.subr.bf16.mxu0 0
        %2996 = vmatpush2.bf16.msra.mxu0 0
        %2997 = vmatprep.subr.bf16.mxu0 0
        %2998 = vmatpush2.bf16.msra.mxu0 0
        %2999 = vmatprep.subr.bf16.mxu0 0
        %3000 = vmatpush2.bf16.msra.mxu0 0
        %3001 = vmatprep.subr.bf16.mxu0 0
        %3002 = vmatpush2.bf16.msra.mxu0 0
        %3003 = vmatprep.subr.bf16.mxu0 0
        %3004 = vmatpush2.bf16.msra.mxu0 0
        %3005 = vmatprep.subr.bf16.mxu0 0
        %3006 = vmatpush2.bf16.msra.mxu0 0
        %3007 = vmatprep.mubr.bf16.mxu0 0
        %3008 = vmatmul.mubr.bf16.gmra.mxu0 %v2609
        %v3009 = vpop.f32.mrf.mxu0
        %v3010 = vadd.f32 %v2567, %v3009
        %v3011 = vpop.f32.mrf.mxu0
        %v3012 = vpop.f32.mrf.mxu0
        %v3013 = vpop.f32.mrf.mxu0
        %3014 = vdwg.mxu0
        %v3019 = vunpack.c.l.b16 %v2495
        %v3020 = vunpack.c.l.b16 %v2496
        %v3021 = vunpack.c.l.b16 %v2497
        %v3022 = vunpack.c.l.b16 %v2498
        %v3023 = vpack.c.b16 %v3020, %v3019
        %v3024 = vpack.c.b16 %v3022, %v3021
        %3027 = vmatprep.subr.bf16.mxu0 0
        %3028 = vmatpush1.bf16.msra.mxu0 0
        %3029 = vmatprep.subr.bf16.mxu0 0
        %3030 = vmatpush1.bf16.msra.mxu0 0
        %3031 = vmatprep.subr.bf16.mxu0 0
        %3032 = vmatpush1.bf16.msra.mxu0 0
        %3033 = vmatprep.subr.bf16.mxu0 0
        %3034 = vmatpush1.bf16.msra.mxu0 0
        %3035 = vmatprep.subr.bf16.mxu0 0
        %3036 = vmatpush1.bf16.msra.mxu0 0
        %3037 = vmatprep.subr.bf16.mxu0 0
        %3038 = vmatpush1.bf16.msra.mxu0 0
        %3039 = vmatprep.subr.bf16.mxu0 0
        %3040 = vmatpush1.bf16.msra.mxu0 %v3024
        %3041 = vmatprep.subr.bf16.mxu0 0
        %3042 = vmatpush1.bf16.msra.mxu0 %v3023
        %3043 = vmatprep.subr.bf16.mxu0 0
        %3044 = vmatpush2.bf16.msra.mxu0 0
        %3045 = vmatprep.subr.bf16.mxu0 0
        %3046 = vmatpush2.bf16.msra.mxu0 0
        %3047 = vmatprep.subr.bf16.mxu0 0
        %3048 = vmatpush2.bf16.msra.mxu0 0
        %3049 = vmatprep.subr.bf16.mxu0 0
        %3050 = vmatpush2.bf16.msra.mxu0 0
        %3051 = vmatprep.subr.bf16.mxu0 0
        %3052 = vmatpush2.bf16.msra.mxu0 0
        %3053 = vmatprep.subr.bf16.mxu0 0
        %3054 = vmatpush2.bf16.msra.mxu0 0
        %3055 = vmatprep.subr.bf16.mxu0 0
        %3056 = vmatpush2.bf16.msra.mxu0 0
        %3057 = vmatprep.subr.bf16.mxu0 0
        %3058 = vmatpush2.bf16.msra.mxu0 0
        %3059 = vmatprep.mubr.bf16.mxu0 0
        %3060 = vmatmul.mubr.bf16.gmra.mxu0 %v2609
        %v3061 = vpop.f32.mrf.mxu0
        %v3062 = vadd.f32 %v2571, %v3061
        %v3063 = vpop.f32.mrf.mxu0
        %v3064 = vpop.f32.mrf.mxu0
        %v3065 = vpop.f32.mrf.mxu0
        %3066 = vdwg.mxu0
        %v3071 = vunpack.c.l.b16 %v2499
        %v3072 = vunpack.c.l.b16 %v2500
        %v3073 = vunpack.c.l.b16 %v2501
        %v3074 = vunpack.c.l.b16 %v2502
        %v3075 = vpack.c.b16 %v3072, %v3071
        %v3076 = vpack.c.b16 %v3074, %v3073
        %3079 = vmatprep.subr.bf16.mxu0 0
        %3080 = vmatpush1.bf16.msra.mxu0 0
        %3081 = vmatprep.subr.bf16.mxu0 0
        %3082 = vmatpush1.bf16.msra.mxu0 0
        %3083 = vmatprep.subr.bf16.mxu0 0
        %3084 = vmatpush1.bf16.msra.mxu0 0
        %3085 = vmatprep.subr.bf16.mxu0 0
        %3086 = vmatpush1.bf16.msra.mxu0 0
        %3087 = vmatprep.subr.bf16.mxu0 0
        %3088 = vmatpush1.bf16.msra.mxu0 0
        %3089 = vmatprep.subr.bf16.mxu0 0
        %3090 = vmatpush1.bf16.msra.mxu0 0
        %3091 = vmatprep.subr.bf16.mxu0 0
        %3092 = vmatpush1.bf16.msra.mxu0 %v3076
        %3093 = vmatprep.subr.bf16.mxu0 0
        %3094 = vmatpush1.bf16.msra.mxu0 %v3075
        %3095 = vmatprep.subr.bf16.mxu0 0
        %3096 = vmatpush2.bf16.msra.mxu0 0
        %3097 = vmatprep.subr.bf16.mxu0 0
        %3098 = vmatpush2.bf16.msra.mxu0 0
        %3099 = vmatprep.subr.bf16.mxu0 0
        %3100 = vmatpush2.bf16.msra.mxu0 0
        %3101 = vmatprep.subr.bf16.mxu0 0
        %3102 = vmatpush2.bf16.msra.mxu0 0
        %3103 = vmatprep.subr.bf16.mxu0 0
        %3104 = vmatpush2.bf16.msra.mxu0 0
        %3105 = vmatprep.subr.bf16.mxu0 0
        %3106 = vmatpush2.bf16.msra.mxu0 0
        %3107 = vmatprep.subr.bf16.mxu0 0
        %3108 = vmatpush2.bf16.msra.mxu0 0
        %3109 = vmatprep.subr.bf16.mxu0 0
        %3110 = vmatpush2.bf16.msra.mxu0 0
        %3111 = vmatprep.mubr.bf16.mxu0 0
        %3112 = vmatmul.mubr.bf16.gmra.mxu0 %v2609
        %v3113 = vpop.f32.mrf.mxu0
        %v3114 = vadd.f32 %v2575, %v3113
        %v3115 = vpop.f32.mrf.mxu0
        %v3116 = vpop.f32.mrf.mxu0
        %v3117 = vpop.f32.mrf.mxu0
        %3118 = vdwg.mxu0
        %v3123 = vunpack.c.l.b16 %v2503
        %v3124 = vunpack.c.l.b16 %v2504
        %v3125 = vunpack.c.l.b16 %v2505
        %v3126 = vunpack.c.l.b16 %v2506
        %v3127 = vpack.c.b16 %v3124, %v3123
        %v3128 = vpack.c.b16 %v3126, %v3125
        %3131 = vmatprep.subr.bf16.mxu0 0
        %3132 = vmatpush1.bf16.msra.mxu0 0
        %3133 = vmatprep.subr.bf16.mxu0 0
        %3134 = vmatpush1.bf16.msra.mxu0 0
        %3135 = vmatprep.subr.bf16.mxu0 0
        %3136 = vmatpush1.bf16.msra.mxu0 0
        %3137 = vmatprep.subr.bf16.mxu0 0
        %3138 = vmatpush1.bf16.msra.mxu0 0
        %3139 = vmatprep.subr.bf16.mxu0 0
        %3140 = vmatpush1.bf16.msra.mxu0 0
        %3141 = vmatprep.subr.bf16.mxu0 0
        %3142 = vmatpush1.bf16.msra.mxu0 0
        %3143 = vmatprep.subr.bf16.mxu0 0
        %3144 = vmatpush1.bf16.msra.mxu0 %v3128
        %3145 = vmatprep.subr.bf16.mxu0 0
        %3146 = vmatpush1.bf16.msra.mxu0 %v3127
        %3147 = vmatprep.subr.bf16.mxu0 0
        %3148 = vmatpush2.bf16.msra.mxu0 0
        %3149 = vmatprep.subr.bf16.mxu0 0
        %3150 = vmatpush2.bf16.msra.mxu0 0
        %3151 = vmatprep.subr.bf16.mxu0 0
        %3152 = vmatpush2.bf16.msra.mxu0 0
        %3153 = vmatprep.subr.bf16.mxu0 0
        %3154 = vmatpush2.bf16.msra.mxu0 0
        %3155 = vmatprep.subr.bf16.mxu0 0
        %3156 = vmatpush2.bf16.msra.mxu0 0
        %3157 = vmatprep.subr.bf16.mxu0 0
        %3158 = vmatpush2.bf16.msra.mxu0 0
        %3159 = vmatprep.subr.bf16.mxu0 0
        %3160 = vmatpush2.bf16.msra.mxu0 0
        %3161 = vmatprep.subr.bf16.mxu0 0
        %3162 = vmatpush2.bf16.msra.mxu0 0
        %3163 = vmatprep.mubr.bf16.mxu0 0
        %3164 = vmatmul.mubr.bf16.gmra.mxu0 %v2609
        %v3165 = vpop.f32.mrf.mxu0
        %v3166 = vadd.f32 %v2579, %v3165
        %v3167 = vpop.f32.mrf.mxu0
        %v3168 = vpop.f32.mrf.mxu0
        %v3169 = vpop.f32.mrf.mxu0
        %3170 = vdwg.mxu0
        %v3175 = vunpack.c.l.b16 %v2507
        %v3176 = vunpack.c.l.b16 %v2508
        %v3177 = vunpack.c.l.b16 %v2509
        %v3178 = vunpack.c.l.b16 %v2510
        %v3179 = vpack.c.b16 %v3176, %v3175
        %v3180 = vpack.c.b16 %v3178, %v3177
        %3183 = vmatprep.subr.bf16.mxu0 0
        %3184 = vmatpush1.bf16.msra.mxu0 0
        %3185 = vmatprep.subr.bf16.mxu0 0
        %3186 = vmatpush1.bf16.msra.mxu0 0
        %3187 = vmatprep.subr.bf16.mxu0 0
        %3188 = vmatpush1.bf16.msra.mxu0 0
        %3189 = vmatprep.subr.bf16.mxu0 0
        %3190 = vmatpush1.bf16.msra.mxu0 0
        %3191 = vmatprep.subr.bf16.mxu0 0
        %3192 = vmatpush1.bf16.msra.mxu0 0
        %3193 = vmatprep.subr.bf16.mxu0 0
        %3194 = vmatpush1.bf16.msra.mxu0 0
        %3195 = vmatprep.subr.bf16.mxu0 0
        %3196 = vmatpush1.bf16.msra.mxu0 %v3180
        %3197 = vmatprep.subr.bf16.mxu0 0
        %3198 = vmatpush1.bf16.msra.mxu0 %v3179
        %3199 = vmatprep.subr.bf16.mxu0 0
        %3200 = vmatpush2.bf16.msra.mxu0 0
        %3201 = vmatprep.subr.bf16.mxu0 0
        %3202 = vmatpush2.bf16.msra.mxu0 0
        %3203 = vmatprep.subr.bf16.mxu0 0
        %3204 = vmatpush2.bf16.msra.mxu0 0
        %3205 = vmatprep.subr.bf16.mxu0 0
        %3206 = vmatpush2.bf16.msra.mxu0 0
        %3207 = vmatprep.subr.bf16.mxu0 0
        %3208 = vmatpush2.bf16.msra.mxu0 0
        %3209 = vmatprep.subr.bf16.mxu0 0
        %3210 = vmatpush2.bf16.msra.mxu0 0
        %3211 = vmatprep.subr.bf16.mxu0 0
        %3212 = vmatpush2.bf16.msra.mxu0 0
        %3213 = vmatprep.subr.bf16.mxu0 0
        %3214 = vmatpush2.bf16.msra.mxu0 0
        %3215 = vmatprep.mubr.bf16.mxu0 0
        %3216 = vmatmul.mubr.bf16.gmra.mxu0 %v2609
        %v3217 = vpop.f32.mrf.mxu0
        %v3218 = vadd.f32 %v2583, %v3217
        %v3219 = vpop.f32.mrf.mxu0
        %v3220 = vpop.f32.mrf.mxu0
        %v3221 = vpop.f32.mrf.mxu0
        %3222 = vdwg.mxu0
        %v3223 = vmul.f32 %v2646, 0.35355338
        %v3224 = vmul.f32 %v2698, 0.35355338
        %v3225 = vmul.f32 %v2750, 0.35355338
        %v3226 = vmul.f32 %v2802, 0.35355338
        %v3227 = vpack.c.bf16 %v3223, %v3223
        %v3228 = vpack.c.bf16 %v3224, %v3224
        %v3229 = vpack.c.bf16 %v3225, %v3225
        %v3230 = vpack.c.bf16 %v3226, %v3226
        %v3231 = vpack.c.bf16 %v2854, %v2854
        %v3232 = vpack.c.bf16 %v2906, %v2906
        %v3233 = vpack.c.bf16 %v2958, %v2958
        %v3234 = vpack.c.bf16 %v3010, %v3010
        %v3236 = vsel %vm1581, %v3227, 0
        %v3239 = vsel %vm1581, %v3231, 0
        %3241 = vmatprep.subr.bf16.mxu0 0
        %3242 = vmatpush1.bf16.xpose.msra.mxu0 0
        %3243 = vmatprep.subr.bf16.mxu0 0
        %3244 = vmatpush1.bf16.xpose.msra.mxu0 0
        %3245 = vmatprep.subr.bf16.mxu0 0
        %3246 = vmatpush1.bf16.xpose.msra.mxu0 0
        %3247 = vmatprep.subr.bf16.mxu0 0
        %3248 = vmatpush1.bf16.xpose.msra.mxu0 0
        %3249 = vmatprep.subr.bf16.mxu0 0
        %3250 = vmatpush1.bf16.xpose.msra.mxu0 0
        %3251 = vmatprep.subr.bf16.mxu0 0
        %3252 = vmatpush1.bf16.xpose.msra.mxu0 0
        %3253 = vmatprep.subr.bf16.mxu0 0
        %3254 = vmatpush1.bf16.xpose.msra.mxu0 0
        %3255 = vmatprep.subr.bf16.mxu0 0
        %3256 = vmatpush1.bf16.xpose.msra.mxu0 %v3239
        %3257 = vmatprep.subr.bf16.mxu0 0
        %3258 = vmatpush2.bf16.xpose.msra.mxu0 0
        %3259 = vmatprep.subr.bf16.mxu0 0
        %3260 = vmatpush2.bf16.xpose.msra.mxu0 0
        %3261 = vmatprep.subr.bf16.mxu0 0
        %3262 = vmatpush2.bf16.xpose.msra.mxu0 0
        %3263 = vmatprep.subr.bf16.mxu0 0
        %3264 = vmatpush2.bf16.xpose.msra.mxu0 0
        %3265 = vmatprep.subr.bf16.mxu0 0
        %3266 = vmatpush2.bf16.xpose.msra.mxu0 0
        %3267 = vmatprep.subr.bf16.mxu0 0
        %3268 = vmatpush2.bf16.xpose.msra.mxu0 0
        %3269 = vmatprep.subr.bf16.mxu0 0
        %3270 = vmatpush2.bf16.xpose.msra.mxu0 0
        %3271 = vmatprep.subr.bf16.mxu0 0
        %3272 = vmatpush2.bf16.xpose.msra.mxu0 0
        %3273 = vmatprep.mubr.bf16.mxu0 0
        %3274 = vmatmul.mubr.bf16.gmra.mxu0 %v3236
        %v3275 = vpop.f32.mrf.mxu0
        %v3276 = vadd.f32 %v777, %v3275
        %v3277 = vpop.f32.mrf.mxu0
        %v3278 = vpop.f32.mrf.mxu0
        %v3279 = vpop.f32.mrf.mxu0
        %3280 = vdwg.mxu0
        %v3282 = vsel %vm1581, %v3228, 0
        %v3285 = vsel %vm1581, %v3232, 0
        %3287 = vmatprep.subr.bf16.mxu0 0
        %3288 = vmatpush1.bf16.xpose.msra.mxu0 0
        %3289 = vmatprep.subr.bf16.mxu0 0
        %3290 = vmatpush1.bf16.xpose.msra.mxu0 0
        %3291 = vmatprep.subr.bf16.mxu0 0
        %3292 = vmatpush1.bf16.xpose.msra.mxu0 0
        %3293 = vmatprep.subr.bf16.mxu0 0
        %3294 = vmatpush1.bf16.xpose.msra.mxu0 0
        %3295 = vmatprep.subr.bf16.mxu0 0
        %3296 = vmatpush1.bf16.xpose.msra.mxu0 0
        %3297 = vmatprep.subr.bf16.mxu0 0
        %3298 = vmatpush1.bf16.xpose.msra.mxu0 0
        %3299 = vmatprep.subr.bf16.mxu0 0
        %3300 = vmatpush1.bf16.xpose.msra.mxu0 0
        %3301 = vmatprep.subr.bf16.mxu0 0
        %3302 = vmatpush1.bf16.xpose.msra.mxu0 %v3285
        %3303 = vmatprep.subr.bf16.mxu0 0
        %3304 = vmatpush2.bf16.xpose.msra.mxu0 0
        %3305 = vmatprep.subr.bf16.mxu0 0
        %3306 = vmatpush2.bf16.xpose.msra.mxu0 0
        %3307 = vmatprep.subr.bf16.mxu0 0
        %3308 = vmatpush2.bf16.xpose.msra.mxu0 0
        %3309 = vmatprep.subr.bf16.mxu0 0
        %3310 = vmatpush2.bf16.xpose.msra.mxu0 0
        %3311 = vmatprep.subr.bf16.mxu0 0
        %3312 = vmatpush2.bf16.xpose.msra.mxu0 0
        %3313 = vmatprep.subr.bf16.mxu0 0
        %3314 = vmatpush2.bf16.xpose.msra.mxu0 0
        %3315 = vmatprep.subr.bf16.mxu0 0
        %3316 = vmatpush2.bf16.xpose.msra.mxu0 0
        %3317 = vmatprep.subr.bf16.mxu0 0
        %3318 = vmatpush2.bf16.xpose.msra.mxu0 0
        %3319 = vmatprep.mubr.bf16.mxu0 0
        %3320 = vmatmul.mubr.bf16.gmra.mxu0 %v3282
        %v3321 = vpop.f32.mrf.mxu0
        %v3322 = vadd.f32 %v777, %v3321
        %v3323 = vpop.f32.mrf.mxu0
        %v3324 = vpop.f32.mrf.mxu0
        %v3325 = vpop.f32.mrf.mxu0
        %3326 = vdwg.mxu0
        %v3328 = vsel %vm1581, %v3229, 0
        %v3331 = vsel %vm1581, %v3233, 0
        %3333 = vmatprep.subr.bf16.mxu0 0
        %3334 = vmatpush1.bf16.xpose.msra.mxu0 0
        %3335 = vmatprep.subr.bf16.mxu0 0
        %3336 = vmatpush1.bf16.xpose.msra.mxu0 0
        %3337 = vmatprep.subr.bf16.mxu0 0
        %3338 = vmatpush1.bf16.xpose.msra.mxu0 0
        %3339 = vmatprep.subr.bf16.mxu0 0
        %3340 = vmatpush1.bf16.xpose.msra.mxu0 0
        %3341 = vmatprep.subr.bf16.mxu0 0
        %3342 = vmatpush1.bf16.xpose.msra.mxu0 0
        %3343 = vmatprep.subr.bf16.mxu0 0
        %3344 = vmatpush1.bf16.xpose.msra.mxu0 0
        %3345 = vmatprep.subr.bf16.mxu0 0
        %3346 = vmatpush1.bf16.xpose.msra.mxu0 0
        %3347 = vmatprep.subr.bf16.mxu0 0
        %3348 = vmatpush1.bf16.xpose.msra.mxu0 %v3331
        %3349 = vmatprep.subr.bf16.mxu0 0
        %3350 = vmatpush2.bf16.xpose.msra.mxu0 0
        %3351 = vmatprep.subr.bf16.mxu0 0
        %3352 = vmatpush2.bf16.xpose.msra.mxu0 0
        %3353 = vmatprep.subr.bf16.mxu0 0
        %3354 = vmatpush2.bf16.xpose.msra.mxu0 0
        %3355 = vmatprep.subr.bf16.mxu0 0
        %3356 = vmatpush2.bf16.xpose.msra.mxu0 0
        %3357 = vmatprep.subr.bf16.mxu0 0
        %3358 = vmatpush2.bf16.xpose.msra.mxu0 0
        %3359 = vmatprep.subr.bf16.mxu0 0
        %3360 = vmatpush2.bf16.xpose.msra.mxu0 0
        %3361 = vmatprep.subr.bf16.mxu0 0
        %3362 = vmatpush2.bf16.xpose.msra.mxu0 0
        %3363 = vmatprep.subr.bf16.mxu0 0
        %3364 = vmatpush2.bf16.xpose.msra.mxu0 0
        %3365 = vmatprep.mubr.bf16.mxu0 0
        %3366 = vmatmul.mubr.bf16.gmra.mxu0 %v3328
        %v3367 = vpop.f32.mrf.mxu0
        %v3368 = vadd.f32 %v777, %v3367
        %v3369 = vpop.f32.mrf.mxu0
        %v3370 = vpop.f32.mrf.mxu0
        %v3371 = vpop.f32.mrf.mxu0
        %3372 = vdwg.mxu0
        %v3374 = vsel %vm1581, %v3230, 0
        %v3377 = vsel %vm1581, %v3234, 0
        %3379 = vmatprep.subr.bf16.mxu0 0
        %3380 = vmatpush1.bf16.xpose.msra.mxu0 0
        %3381 = vmatprep.subr.bf16.mxu0 0
        %3382 = vmatpush1.bf16.xpose.msra.mxu0 0
        %3383 = vmatprep.subr.bf16.mxu0 0
        %3384 = vmatpush1.bf16.xpose.msra.mxu0 0
        %3385 = vmatprep.subr.bf16.mxu0 0
        %3386 = vmatpush1.bf16.xpose.msra.mxu0 0
        %3387 = vmatprep.subr.bf16.mxu0 0
        %3388 = vmatpush1.bf16.xpose.msra.mxu0 0
        %3389 = vmatprep.subr.bf16.mxu0 0
        %3390 = vmatpush1.bf16.xpose.msra.mxu0 0
        %3391 = vmatprep.subr.bf16.mxu0 0
        %3392 = vmatpush1.bf16.xpose.msra.mxu0 0
        %3393 = vmatprep.subr.bf16.mxu0 0
        %3394 = vmatpush1.bf16.xpose.msra.mxu0 %v3377
        %3395 = vmatprep.subr.bf16.mxu0 0
        %3396 = vmatpush2.bf16.xpose.msra.mxu0 0
        %3397 = vmatprep.subr.bf16.mxu0 0
        %3398 = vmatpush2.bf16.xpose.msra.mxu0 0
        %3399 = vmatprep.subr.bf16.mxu0 0
        %3400 = vmatpush2.bf16.xpose.msra.mxu0 0
        %3401 = vmatprep.subr.bf16.mxu0 0
        %3402 = vmatpush2.bf16.xpose.msra.mxu0 0
        %3403 = vmatprep.subr.bf16.mxu0 0
        %3404 = vmatpush2.bf16.xpose.msra.mxu0 0
        %3405 = vmatprep.subr.bf16.mxu0 0
        %3406 = vmatpush2.bf16.xpose.msra.mxu0 0
        %3407 = vmatprep.subr.bf16.mxu0 0
        %3408 = vmatpush2.bf16.xpose.msra.mxu0 0
        %3409 = vmatprep.subr.bf16.mxu0 0
        %3410 = vmatpush2.bf16.xpose.msra.mxu0 0
        %3411 = vmatprep.mubr.bf16.mxu0 0
        %3412 = vmatmul.mubr.bf16.gmra.mxu0 %v3374
        %v3413 = vpop.f32.mrf.mxu0
        %v3414 = vadd.f32 %v777, %v3413
        %v3415 = vpop.f32.mrf.mxu0
        %v3416 = vpop.f32.mrf.mxu0
        %v3417 = vpop.f32.mrf.mxu0
        %3418 = vdwg.mxu0
        %v3419 = vsel %vm1581, %v3276, -inf
        %3420 = vmax.xlane.f32.xlu0 %v3419
        %v3421 = vpop.xlane.xlu0 %3420
        %v3422 = vsel %vm1581, %v3322, -inf
        %3423 = vmax.xlane.f32.xlu0 %v3422
        %v3424 = vpop.xlane.xlu0 %3423
        %v3425 = vsel %vm1581, %v3368, -inf
        %3426 = vmax.xlane.f32.xlu0 %v3425
        %v3427 = vpop.xlane.xlu0 %3426
        %v3428 = vsel %vm1581, %v3414, -inf
        %3429 = vmax.xlane.f32.xlu0 %v3428
        %v3430 = vpop.xlane.xlu0 %3429
        %v3431 = vsub.f32 %v3276, %v3421
        %v3432 = vsub.f32 %v3322, %v3424
        %v3433 = vsub.f32 %v3368, %v3427
        %v3434 = vsub.f32 %v3414, %v3430
        %v3435 = vmul.f32 %v3431, 1.442695
        %v3436 = vpow.pop %v3435
        %v3437 = vmul.f32 %v3432, 1.442695
        %v3438 = vpow.pop %v3437
        %v3439 = vmul.f32 %v3433, 1.442695
        %v3440 = vpow.pop %v3439
        %v3441 = vmul.f32 %v3434, 1.442695
        %v3442 = vpow.pop %v3441
        %v3443 = vsel %vm1581, %v3436, 0.0
        %3444 = vadd.xlane.f32.xlu0 %v3443
        %v3445 = vpop.xlane.xlu0 %3444
        %v3446 = vsel %vm1581, %v3438, 0.0
        %3447 = vadd.xlane.f32.xlu0 %v3446
        %v3448 = vpop.xlane.xlu0 %3447
        %v3449 = vsel %vm1581, %v3440, 0.0
        %3450 = vadd.xlane.f32.xlu0 %v3449
        %v3451 = vpop.xlane.xlu0 %3450
        %v3452 = vsel %vm1581, %v3442, 0.0
        %3453 = vadd.xlane.f32.xlu0 %v3452
        %v3454 = vpop.xlane.xlu0 %3453
        %v3455 = vrcp.pop %v3445
        %v3456 = vrcp.pop %v3448
        %v3457 = vrcp.pop %v3451
        %v3458 = vrcp.pop %v3454
        %v3459 = vmul.f32 %v3436, %v3455
        %v3460 = vmul.f32 %v3438, %v3456
        %v3461 = vmul.f32 %v3440, %v3457
        %v3462 = vmul.f32 %v3442, %v3458
        %v3463 = vpack.c.bf16 %v3459, %v3459
        %v3464 = vpack.c.bf16 %v3460, %v3460
        %v3465 = vpack.c.bf16 %v3461, %v3461
        %v3466 = vpack.c.bf16 %v3462, %v3462
        %v3467 = vpack.c.bf16 %v3062, %v3062
        %v3468 = vpack.c.bf16 %v3114, %v3114
        %v3469 = vpack.c.bf16 %v3166, %v3166
        %v3470 = vpack.c.bf16 %v3218, %v3218
        %v3472 = vsel %vm1581, %v3463, 0
        %v3475 = vsel %vm1821, %v3467, 0
        %3477 = vmatprep.subr.bf16.mxu0 0
        %3478 = vmatpush1.bf16.msra.mxu0 0
        %3479 = vmatprep.subr.bf16.mxu0 0
        %3480 = vmatpush1.bf16.msra.mxu0 0
        %3481 = vmatprep.subr.bf16.mxu0 0
        %3482 = vmatpush1.bf16.msra.mxu0 0
        %3483 = vmatprep.subr.bf16.mxu0 0
        %3484 = vmatpush1.bf16.msra.mxu0 0
        %3485 = vmatprep.subr.bf16.mxu0 0
        %3486 = vmatpush1.bf16.msra.mxu0 0
        %3487 = vmatprep.subr.bf16.mxu0 0
        %3488 = vmatpush1.bf16.msra.mxu0 0
        %3489 = vmatprep.subr.bf16.mxu0 0
        %3490 = vmatpush1.bf16.msra.mxu0 0
        %3491 = vmatprep.subr.bf16.mxu0 0
        %3492 = vmatpush1.bf16.msra.mxu0 %v3475
        %3493 = vmatprep.subr.bf16.mxu0 0
        %3494 = vmatpush2.bf16.msra.mxu0 0
        %3495 = vmatprep.subr.bf16.mxu0 0
        %3496 = vmatpush2.bf16.msra.mxu0 0
        %3497 = vmatprep.subr.bf16.mxu0 0
        %3498 = vmatpush2.bf16.msra.mxu0 0
        %3499 = vmatprep.subr.bf16.mxu0 0
        %3500 = vmatpush2.bf16.msra.mxu0 0
        %3501 = vmatprep.subr.bf16.mxu0 0
        %3502 = vmatpush2.bf16.msra.mxu0 0
        %3503 = vmatprep.subr.bf16.mxu0 0
        %3504 = vmatpush2.bf16.msra.mxu0 0
        %3505 = vmatprep.subr.bf16.mxu0 0
        %3506 = vmatpush2.bf16.msra.mxu0 0
        %3507 = vmatprep.subr.bf16.mxu0 0
        %3508 = vmatpush2.bf16.msra.mxu0 0
        %3509 = vmatprep.mubr.bf16.mxu0 0
        %3510 = vmatmul.mubr.bf16.gmra.mxu0 %v3472
        %v3511 = vpop.f32.mrf.mxu0
        %v3512 = vadd.f32 0.0, %v3511
        %v3513 = vpop.f32.mrf.mxu0
        %v3514 = vpop.f32.mrf.mxu0
        %v3515 = vpop.f32.mrf.mxu0
        %3516 = vdwg.mxu0
        %v3518 = vsel %vm1581, %v3464, 0
        %v3521 = vsel %vm1821, %v3468, 0
        %3523 = vmatprep.subr.bf16.mxu0 0
        %3524 = vmatpush1.bf16.msra.mxu0 0
        %3525 = vmatprep.subr.bf16.mxu0 0
        %3526 = vmatpush1.bf16.msra.mxu0 0
        %3527 = vmatprep.subr.bf16.mxu0 0
        %3528 = vmatpush1.bf16.msra.mxu0 0
        %3529 = vmatprep.subr.bf16.mxu0 0
        %3530 = vmatpush1.bf16.msra.mxu0 0
        %3531 = vmatprep.subr.bf16.mxu0 0
        %3532 = vmatpush1.bf16.msra.mxu0 0
        %3533 = vmatprep.subr.bf16.mxu0 0
        %3534 = vmatpush1.bf16.msra.mxu0 0
        %3535 = vmatprep.subr.bf16.mxu0 0
        %3536 = vmatpush1.bf16.msra.mxu0 0
        %3537 = vmatprep.subr.bf16.mxu0 0
        %3538 = vmatpush1.bf16.msra.mxu0 %v3521
        %3539 = vmatprep.subr.bf16.mxu0 0
        %3540 = vmatpush2.bf16.msra.mxu0 0
        %3541 = vmatprep.subr.bf16.mxu0 0
        %3542 = vmatpush2.bf16.msra.mxu0 0
        %3543 = vmatprep.subr.bf16.mxu0 0
        %3544 = vmatpush2.bf16.msra.mxu0 0
        %3545 = vmatprep.subr.bf16.mxu0 0
        %3546 = vmatpush2.bf16.msra.mxu0 0
        %3547 = vmatprep.subr.bf16.mxu0 0
        %3548 = vmatpush2.bf16.msra.mxu0 0
        %3549 = vmatprep.subr.bf16.mxu0 0
        %3550 = vmatpush2.bf16.msra.mxu0 0
        %3551 = vmatprep.subr.bf16.mxu0 0
        %3552 = vmatpush2.bf16.msra.mxu0 0
        %3553 = vmatprep.subr.bf16.mxu0 0
        %3554 = vmatpush2.bf16.msra.mxu0 0
        %3555 = vmatprep.mubr.bf16.mxu0 0
        %3556 = vmatmul.mubr.bf16.gmra.mxu0 %v3518
        %v3557 = vpop.f32.mrf.mxu0
        %v3558 = vadd.f32 0.0, %v3557
        %v3559 = vpop.f32.mrf.mxu0
        %v3560 = vpop.f32.mrf.mxu0
        %v3561 = vpop.f32.mrf.mxu0
        %3562 = vdwg.mxu0
        %v3564 = vsel %vm1581, %v3465, 0
        %v3567 = vsel %vm1821, %v3469, 0
        %3569 = vmatprep.subr.bf16.mxu0 0
        %3570 = vmatpush1.bf16.msra.mxu0 0
        %3571 = vmatprep.subr.bf16.mxu0 0
        %3572 = vmatpush1.bf16.msra.mxu0 0
        %3573 = vmatprep.subr.bf16.mxu0 0
        %3574 = vmatpush1.bf16.msra.mxu0 0
        %3575 = vmatprep.subr.bf16.mxu0 0
        %3576 = vmatpush1.bf16.msra.mxu0 0
        %3577 = vmatprep.subr.bf16.mxu0 0
        %3578 = vmatpush1.bf16.msra.mxu0 0
        %3579 = vmatprep.subr.bf16.mxu0 0
        %3580 = vmatpush1.bf16.msra.mxu0 0
        %3581 = vmatprep.subr.bf16.mxu0 0
        %3582 = vmatpush1.bf16.msra.mxu0 0
        %3583 = vmatprep.subr.bf16.mxu0 0
        %3584 = vmatpush1.bf16.msra.mxu0 %v3567
        %3585 = vmatprep.subr.bf16.mxu0 0
        %3586 = vmatpush2.bf16.msra.mxu0 0
        %3587 = vmatprep.subr.bf16.mxu0 0
        %3588 = vmatpush2.bf16.msra.mxu0 0
        %3589 = vmatprep.subr.bf16.mxu0 0
        %3590 = vmatpush2.bf16.msra.mxu0 0
        %3591 = vmatprep.subr.bf16.mxu0 0
        %3592 = vmatpush2.bf16.msra.mxu0 0
        %3593 = vmatprep.subr.bf16.mxu0 0
        %3594 = vmatpush2.bf16.msra.mxu0 0
        %3595 = vmatprep.subr.bf16.mxu0 0
        %3596 = vmatpush2.bf16.msra.mxu0 0
        %3597 = vmatprep.subr.bf16.mxu0 0
        %3598 = vmatpush2.bf16.msra.mxu0 0
        %3599 = vmatprep.subr.bf16.mxu0 0
        %3600 = vmatpush2.bf16.msra.mxu0 0
        %3601 = vmatprep.mubr.bf16.mxu0 0
        %3602 = vmatmul.mubr.bf16.gmra.mxu0 %v3564
        %v3603 = vpop.f32.mrf.mxu0
        %v3604 = vadd.f32 0.0, %v3603
        %v3605 = vpop.f32.mrf.mxu0
        %v3606 = vpop.f32.mrf.mxu0
        %v3607 = vpop.f32.mrf.mxu0
        %3608 = vdwg.mxu0
        %v3610 = vsel %vm1581, %v3466, 0
        %v3613 = vsel %vm1821, %v3470, 0
        %3615 = vmatprep.subr.bf16.mxu0 0
        %3616 = vmatpush1.bf16.msra.mxu0 0
        %3617 = vmatprep.subr.bf16.mxu0 0
        %3618 = vmatpush1.bf16.msra.mxu0 0
        %3619 = vmatprep.subr.bf16.mxu0 0
        %3620 = vmatpush1.bf16.msra.mxu0 0
        %3621 = vmatprep.subr.bf16.mxu0 0
        %3622 = vmatpush1.bf16.msra.mxu0 0
        %3623 = vmatprep.subr.bf16.mxu0 0
        %3624 = vmatpush1.bf16.msra.mxu0 0
        %3625 = vmatprep.subr.bf16.mxu0 0
        %3626 = vmatpush1.bf16.msra.mxu0 0
        %3627 = vmatprep.subr.bf16.mxu0 0
        %3628 = vmatpush1.bf16.msra.mxu0 0
        %3629 = vmatprep.subr.bf16.mxu0 0
        %3630 = vmatpush1.bf16.msra.mxu0 %v3613
        %3631 = vmatprep.subr.bf16.mxu0 0
        %3632 = vmatpush2.bf16.msra.mxu0 0
        %3633 = vmatprep.subr.bf16.mxu0 0
        %3634 = vmatpush2.bf16.msra.mxu0 0
        %3635 = vmatprep.subr.bf16.mxu0 0
        %3636 = vmatpush2.bf16.msra.mxu0 0
        %3637 = vmatprep.subr.bf16.mxu0 0
        %3638 = vmatpush2.bf16.msra.mxu0 0
        %3639 = vmatprep.subr.bf16.mxu0 0
        %3640 = vmatpush2.bf16.msra.mxu0 0
        %3641 = vmatprep.subr.bf16.mxu0 0
        %3642 = vmatpush2.bf16.msra.mxu0 0
        %3643 = vmatprep.subr.bf16.mxu0 0
        %3644 = vmatpush2.bf16.msra.mxu0 0
        %3645 = vmatprep.subr.bf16.mxu0 0
        %3646 = vmatpush2.bf16.msra.mxu0 0
        %3647 = vmatprep.mubr.bf16.mxu0 0
        %3648 = vmatmul.mubr.bf16.gmra.mxu0 %v3610
        %v3649 = vpop.f32.mrf.mxu0
        %v3650 = vadd.f32 0.0, %v3649
        %v3651 = vpop.f32.mrf.mxu0
        %v3652 = vpop.f32.mrf.mxu0
        %v3653 = vpop.f32.mrf.mxu0
        %3654 = vdwg.mxu0
        %v3655 = vpack.c.bf16 %v3512, %v3512
        %v3656 = vpack.c.bf16 %v3558, %v3558
        %v3657 = vpack.c.bf16 %v3604, %v3604
        %v3658 = vpack.c.bf16 %v3650, %v3650
        %s3659 = scalar_lea.vmem %s7, 16
        %v3660 = vld [vmem:[%s3659] sm:$0xf]
        %v3661 = vld [vmem:[%s3659 + $0x4] sm:$0xf]
        %v3662 = vld [vmem:[%s3659 + $0x8] sm:$0xf]
        %v3663 = vld [vmem:[%s3659 + $0xc] sm:$0xf]
        %v3665 = vsel %vm1581, %v3655, 0
        %v3668 = vsel %vm1821, %v3660, 0
        %3670 = vmatprep.subr.bf16.mxu0 0
        %3671 = vmatpush1.bf16.msra.mxu0 0
        %3672 = vmatprep.subr.bf16.mxu0 0
        %3673 = vmatpush1.bf16.msra.mxu0 0
        %3674 = vmatprep.subr.bf16.mxu0 0
        %3675 = vmatpush1.bf16.msra.mxu0 0
        %3676 = vmatprep.subr.bf16.mxu0 0
        %3677 = vmatpush1.bf16.msra.mxu0 0
        %3678 = vmatprep.subr.bf16.mxu0 0
        %3679 = vmatpush1.bf16.msra.mxu0 0
        %3680 = vmatprep.subr.bf16.mxu0 0
        %3681 = vmatpush1.bf16.msra.mxu0 0
        %3682 = vmatprep.subr.bf16.mxu0 0
        %3683 = vmatpush1.bf16.msra.mxu0 0
        %3684 = vmatprep.subr.bf16.mxu0 0
        %3685 = vmatpush1.bf16.msra.mxu0 %v3668
        %3686 = vmatprep.subr.bf16.mxu0 0
        %3687 = vmatpush2.bf16.msra.mxu0 0
        %3688 = vmatprep.subr.bf16.mxu0 0
        %3689 = vmatpush2.bf16.msra.mxu0 0
        %3690 = vmatprep.subr.bf16.mxu0 0
        %3691 = vmatpush2.bf16.msra.mxu0 0
        %3692 = vmatprep.subr.bf16.mxu0 0
        %3693 = vmatpush2.bf16.msra.mxu0 0
        %3694 = vmatprep.subr.bf16.mxu0 0
        %3695 = vmatpush2.bf16.msra.mxu0 0
        %3696 = vmatprep.subr.bf16.mxu0 0
        %3697 = vmatpush2.bf16.msra.mxu0 0
        %3698 = vmatprep.subr.bf16.mxu0 0
        %3699 = vmatpush2.bf16.msra.mxu0 0
        %3700 = vmatprep.subr.bf16.mxu0 0
        %3701 = vmatpush2.bf16.msra.mxu0 0
        %3702 = vmatprep.mubr.bf16.mxu0 0
        %3703 = vmatmul.mubr.bf16.gmra.mxu0 %v3665
        %v3704 = vpop.f32.mrf.mxu0
        %v3705 = vadd.f32 0.0, %v3704
        %v3706 = vpop.f32.mrf.mxu0
        %v3707 = vpop.f32.mrf.mxu0
        %v3708 = vpop.f32.mrf.mxu0
        %3709 = vdwg.mxu0
        %v3711 = vsel %vm1581, %v3656, 0
        %v3714 = vsel %vm1821, %v3661, 0
        %3716 = vmatprep.subr.bf16.mxu0 0
        %3717 = vmatpush1.bf16.msra.mxu0 0
        %3718 = vmatprep.subr.bf16.mxu0 0
        %3719 = vmatpush1.bf16.msra.mxu0 0
        %3720 = vmatprep.subr.bf16.mxu0 0
        %3721 = vmatpush1.bf16.msra.mxu0 0
        %3722 = vmatprep.subr.bf16.mxu0 0
        %3723 = vmatpush1.bf16.msra.mxu0 0
        %3724 = vmatprep.subr.bf16.mxu0 0
        %3725 = vmatpush1.bf16.msra.mxu0 0
        %3726 = vmatprep.subr.bf16.mxu0 0
        %3727 = vmatpush1.bf16.msra.mxu0 0
        %3728 = vmatprep.subr.bf16.mxu0 0
        %3729 = vmatpush1.bf16.msra.mxu0 0
        %3730 = vmatprep.subr.bf16.mxu0 0
        %3731 = vmatpush1.bf16.msra.mxu0 %v3714
        %3732 = vmatprep.subr.bf16.mxu0 0
        %3733 = vmatpush2.bf16.msra.mxu0 0
        %3734 = vmatprep.subr.bf16.mxu0 0
        %3735 = vmatpush2.bf16.msra.mxu0 0
        %3736 = vmatprep.subr.bf16.mxu0 0
        %3737 = vmatpush2.bf16.msra.mxu0 0
        %3738 = vmatprep.subr.bf16.mxu0 0
        %3739 = vmatpush2.bf16.msra.mxu0 0
        %3740 = vmatprep.subr.bf16.mxu0 0
        %3741 = vmatpush2.bf16.msra.mxu0 0
        %3742 = vmatprep.subr.bf16.mxu0 0
        %3743 = vmatpush2.bf16.msra.mxu0 0
        %3744 = vmatprep.subr.bf16.mxu0 0
        %3745 = vmatpush2.bf16.msra.mxu0 0
        %3746 = vmatprep.subr.bf16.mxu0 0
        %3747 = vmatpush2.bf16.msra.mxu0 0
        %3748 = vmatprep.mubr.bf16.mxu0 0
        %3749 = vmatmul.mubr.bf16.gmra.mxu0 %v3711
        %v3750 = vpop.f32.mrf.mxu0
        %v3751 = vadd.f32 0.0, %v3750
        %v3752 = vpop.f32.mrf.mxu0
        %v3753 = vpop.f32.mrf.mxu0
        %v3754 = vpop.f32.mrf.mxu0
        %3755 = vdwg.mxu0
        %v3757 = vsel %vm1581, %v3657, 0
        %v3760 = vsel %vm1821, %v3662, 0
        %3762 = vmatprep.subr.bf16.mxu0 0
        %3763 = vmatpush1.bf16.msra.mxu0 0
        %3764 = vmatprep.subr.bf16.mxu0 0
        %3765 = vmatpush1.bf16.msra.mxu0 0
        %3766 = vmatprep.subr.bf16.mxu0 0
        %3767 = vmatpush1.bf16.msra.mxu0 0
        %3768 = vmatprep.subr.bf16.mxu0 0
        %3769 = vmatpush1.bf16.msra.mxu0 0
        %3770 = vmatprep.subr.bf16.mxu0 0
        %3771 = vmatpush1.bf16.msra.mxu0 0
        %3772 = vmatprep.subr.bf16.mxu0 0
        %3773 = vmatpush1.bf16.msra.mxu0 0
        %3774 = vmatprep.subr.bf16.mxu0 0
        %3775 = vmatpush1.bf16.msra.mxu0 0
        %3776 = vmatprep.subr.bf16.mxu0 0
        %3777 = vmatpush1.bf16.msra.mxu0 %v3760
        %3778 = vmatprep.subr.bf16.mxu0 0
        %3779 = vmatpush2.bf16.msra.mxu0 0
        %3780 = vmatprep.subr.bf16.mxu0 0
        %3781 = vmatpush2.bf16.msra.mxu0 0
        %3782 = vmatprep.subr.bf16.mxu0 0
        %3783 = vmatpush2.bf16.msra.mxu0 0
        %3784 = vmatprep.subr.bf16.mxu0 0
        %3785 = vmatpush2.bf16.msra.mxu0 0
        %3786 = vmatprep.subr.bf16.mxu0 0
        %3787 = vmatpush2.bf16.msra.mxu0 0
        %3788 = vmatprep.subr.bf16.mxu0 0
        %3789 = vmatpush2.bf16.msra.mxu0 0
        %3790 = vmatprep.subr.bf16.mxu0 0
        %3791 = vmatpush2.bf16.msra.mxu0 0
        %3792 = vmatprep.subr.bf16.mxu0 0
        %3793 = vmatpush2.bf16.msra.mxu0 0
        %3794 = vmatprep.mubr.bf16.mxu0 0
        %3795 = vmatmul.mubr.bf16.gmra.mxu0 %v3757
        %v3796 = vpop.f32.mrf.mxu0
        %v3797 = vadd.f32 0.0, %v3796
        %v3798 = vpop.f32.mrf.mxu0
        %v3799 = vpop.f32.mrf.mxu0
        %v3800 = vpop.f32.mrf.mxu0
        %3801 = vdwg.mxu0
        %v3803 = vsel %vm1581, %v3658, 0
        %v3806 = vsel %vm1821, %v3663, 0
        %3808 = vmatprep.subr.bf16.mxu0 0
        %3809 = vmatpush1.bf16.msra.mxu0 0
        %3810 = vmatprep.subr.bf16.mxu0 0
        %3811 = vmatpush1.bf16.msra.mxu0 0
        %3812 = vmatprep.subr.bf16.mxu0 0
        %3813 = vmatpush1.bf16.msra.mxu0 0
        %3814 = vmatprep.subr.bf16.mxu0 0
        %3815 = vmatpush1.bf16.msra.mxu0 0
        %3816 = vmatprep.subr.bf16.mxu0 0
        %3817 = vmatpush1.bf16.msra.mxu0 0
        %3818 = vmatprep.subr.bf16.mxu0 0
        %3819 = vmatpush1.bf16.msra.mxu0 0
        %3820 = vmatprep.subr.bf16.mxu0 0
        %3821 = vmatpush1.bf16.msra.mxu0 0
        %3822 = vmatprep.subr.bf16.mxu0 0
        %3823 = vmatpush1.bf16.msra.mxu0 %v3806
        %3824 = vmatprep.subr.bf16.mxu0 0
        %3825 = vmatpush2.bf16.msra.mxu0 0
        %3826 = vmatprep.subr.bf16.mxu0 0
        %3827 = vmatpush2.bf16.msra.mxu0 0
        %3828 = vmatprep.subr.bf16.mxu0 0
        %3829 = vmatpush2.bf16.msra.mxu0 0
        %3830 = vmatprep.subr.bf16.mxu0 0
        %3831 = vmatpush2.bf16.msra.mxu0 0
        %3832 = vmatprep.subr.bf16.mxu0 0
        %3833 = vmatpush2.bf16.msra.mxu0 0
        %3834 = vmatprep.subr.bf16.mxu0 0
        %3835 = vmatpush2.bf16.msra.mxu0 0
        %3836 = vmatprep.subr.bf16.mxu0 0
        %3837 = vmatpush2.bf16.msra.mxu0 0
        %3838 = vmatprep.subr.bf16.mxu0 0
        %3839 = vmatpush2.bf16.msra.mxu0 0
        %3840 = vmatprep.mubr.bf16.mxu0 0
        %3841 = vmatmul.mubr.bf16.gmra.mxu0 %v3803
        %v3842 = vpop.f32.mrf.mxu0
        %v3843 = vadd.f32 0.0, %v3842
        %v3844 = vpop.f32.mrf.mxu0
        %v3845 = vpop.f32.mrf.mxu0
        %v3846 = vpop.f32.mrf.mxu0
        %3847 = vdwg.mxu0
        %v3848 = vsel %vm780, %v3705, 0.0
        %v3849 = vsel %vm780, %v3751, 0.0
        %v3850 = vadd.f32 %v3848, %v3849
        %v3851 = vsel %vm780, %v3797, 0.0
        %v3852 = vadd.f32 %v3850, %v3851
        %v3853 = vsel %vm780, %v3843, 0.0
        %v3854 = vadd.f32 %v3852, %v3853
        %v3855 = vadd.f32 %v2429, %v3854
        %s3856 = scalar_lea.vmem %s8, 1
        %v3857 = vld [vmem:[%s3856] sm:$0x1]
        %v3859 = vlaneseq
        %v3860 = vshrl.u32 %v3859, 7
        %v3861 = vsub.s32 0, %v3860
        %v3862 = vrot.slane %v3857, %v3861
        %v3864 = vadd.f32 %v3855, %v3862
        %s3865 = scalar_lea.vmem %s9, 1
        %v3866 = vld [vmem:[%s3865] sm:$0x1]
        %s3867 = scalar_lea.vmem %s10, 1
        %v3868 = vld [vmem:[%s3867] sm:$0x1]
        %v3869 = vsel %vm780, %v3864, 0.0
        %3870 = vadd.xlane.f32.xlu0 %v3869
        %v3871 = vpop.xlane.xlu0 %3870
        %v3872 = vmul.f32 %v3871, %v784
        %v3873 = vsub.f32 %v3864, %v3872
        %v3874 = vmul.f32 %v3873, %v3873
        %v3875 = vsel %vm780, %v3874, 0.0
        %3876 = vadd.xlane.f32.xlu0 %v3875
        %v3877 = vpop.xlane.xlu0 %3876
        %v3878 = vmul.f32 %v3877, %v784
        %v3879 = vadd.f32 %v3878, 1e-05
        %v3880 = vrsqrt.pop %v3879
        %v3881 = vmul.f32 %v3873, %v3880
        %v3883 = vlaneseq
        %v3884 = vshrl.u32 %v3883, 7
        %v3885 = vsub.s32 0, %v3884
        %v3886 = vrot.slane %v3866, %v3885
        %v3888 = vmul.f32 %v3881, %v3886
        %v3890 = vlaneseq
        %v3891 = vshrl.u32 %v3890, 7
        %v3892 = vsub.s32 0, %v3891
        %v3893 = vrot.slane %v3868, %v3892
        %v3895 = vadd.f32 %v3888, %v3893
        %v3896 = vpack.c.bf16 %v3895, %v3895
        %s3897 = scalar_lea.vmem %s11, 16
        %v3898 = vld [vmem:[%s3897] sm:$0xf]
        %v3899 = vld [vmem:[%s3897 + $0x4] sm:$0xf]
        %v3900 = vld [vmem:[%s3897 + $0x8] sm:$0xf]
        %v3901 = vld [vmem:[%s3897 + $0xc] sm:$0xf]
        %s3902 = scalar_lea.vmem %s12, 1
        %v3903 = vld [vmem:[%s3902] sm:$0x1]
        %v3905 = vlaneseq
        %v3906 = vshrl.u32 %v3905, 7
        %v3907 = vsub.s32 0, %v3906
        %v3908 = vrot.slane %v3903, %v3907
        %v3914 = vunpack.c.l.b16 %v3898
        %v3915 = vunpack.c.l.b16 %v3899
        %v3916 = vunpack.c.l.b16 %v3900
        %v3917 = vunpack.c.l.b16 %v3901
        %v3918 = vpack.c.b16 %v3915, %v3914
        %v3919 = vpack.c.b16 %v3917, %v3916
        %v3923 = vsel %vm780, %v3896, 0
        %3925 = vmatprep.subr.bf16.mxu0 0
        %3926 = vmatpush1.bf16.msra.mxu0 0
        %3927 = vmatprep.subr.bf16.mxu0 0
        %3928 = vmatpush1.bf16.msra.mxu0 0
        %3929 = vmatprep.subr.bf16.mxu0 0
        %3930 = vmatpush1.bf16.msra.mxu0 0
        %3931 = vmatprep.subr.bf16.mxu0 0
        %3932 = vmatpush1.bf16.msra.mxu0 0
        %3933 = vmatprep.subr.bf16.mxu0 0
        %3934 = vmatpush1.bf16.msra.mxu0 0
        %3935 = vmatprep.subr.bf16.mxu0 0
        %3936 = vmatpush1.bf16.msra.mxu0 0
        %3937 = vmatprep.subr.bf16.mxu0 0
        %3938 = vmatpush1.bf16.msra.mxu0 %v3919
        %3939 = vmatprep.subr.bf16.mxu0 0
        %3940 = vmatpush1.bf16.msra.mxu0 %v3918
        %3941 = vmatprep.subr.bf16.mxu0 0
        %3942 = vmatpush2.bf16.msra.mxu0 0
        %3943 = vmatprep.subr.bf16.mxu0 0
        %3944 = vmatpush2.bf16.msra.mxu0 0
        %3945 = vmatprep.subr.bf16.mxu0 0
        %3946 = vmatpush2.bf16.msra.mxu0 0
        %3947 = vmatprep.subr.bf16.mxu0 0
        %3948 = vmatpush2.bf16.msra.mxu0 0
        %3949 = vmatprep.subr.bf16.mxu0 0
        %3950 = vmatpush2.bf16.msra.mxu0 0
        %3951 = vmatprep.subr.bf16.mxu0 0
        %3952 = vmatpush2.bf16.msra.mxu0 0
        %3953 = vmatprep.subr.bf16.mxu0 0
        %3954 = vmatpush2.bf16.msra.mxu0 0
        %3955 = vmatprep.subr.bf16.mxu0 0
        %3956 = vmatpush2.bf16.msra.mxu0 0
        %3957 = vmatprep.mubr.bf16.mxu0 0
        %3958 = vmatmul.mubr.bf16.gmra.mxu0 %v3923
        %v3959 = vpop.f32.mrf.mxu0
        %v3960 = vadd.f32 %v3908, %v3959
        %v3961 = vpop.f32.mrf.mxu0
        %v3962 = vpop.f32.mrf.mxu0
        %v3963 = vpop.f32.mrf.mxu0
        %3964 = vdwg.mxu0
        %v3965 = vmul.f32 %v3960, 0.5
        %v3966 = vmul.f32 %v3960, %v3960
        %v3967 = vmul.f32 %v3966, %v3960
        %v3968 = vmul.f32 %v3967, 0.044715
        %v3969 = vadd.f32 %v3960, %v3968
        %v3970 = vmul.f32 %v3969, 0.7978846
        %v3971 = vtanh.pop %v3970
        %v3972 = vadd.f32 %v3971, 1.0
        %v3973 = vmul.f32 %v3965, %v3972
        %v3974 = vpack.c.bf16 %v3973, %v3973
        %s3975 = scalar_lea.vmem %s13, 64
        %v3976 = vld [vmem:[%s3975] sm:$0xf]
        %v3977 = vld [vmem:[%s3975 + $0x4] sm:$0xf]
        %v3978 = vld [vmem:[%s3975 + $0x8] sm:$0xf]
        %v3979 = vld [vmem:[%s3975 + $0xc] sm:$0xf]
        %v3980 = vld [vmem:[%s3975 + $0x10] sm:$0xf]
        %v3981 = vld [vmem:[%s3975 + $0x14] sm:$0xf]
        %v3982 = vld [vmem:[%s3975 + $0x18] sm:$0xf]
        %v3983 = vld [vmem:[%s3975 + $0x1c] sm:$0xf]
        %v3984 = vld [vmem:[%s3975 + $0x20] sm:$0xf]
        %v3985 = vld [vmem:[%s3975 + $0x24] sm:$0xf]
        %v3986 = vld [vmem:[%s3975 + $0x28] sm:$0xf]
        %v3987 = vld [vmem:[%s3975 + $0x2c] sm:$0xf]
        %v3988 = vld [vmem:[%s3975 + $0x30] sm:$0xf]
        %v3989 = vld [vmem:[%s3975 + $0x34] sm:$0xf]
        %v3990 = vld [vmem:[%s3975 + $0x38] sm:$0xf]
        %v3991 = vld [vmem:[%s3975 + $0x3c] sm:$0xf]
        %v4008 = vunpack.c.l.b16 %v3976
        %v4009 = vunpack.c.l.b16 %v3977
        %v4010 = vunpack.c.l.b16 %v3978
        %v4011 = vunpack.c.l.b16 %v3979
        %v4012 = vunpack.c.l.b16 %v3980
        %v4013 = vunpack.c.l.b16 %v3981
        %v4014 = vunpack.c.l.b16 %v3982
        %v4015 = vunpack.c.l.b16 %v3983
        %v4016 = vunpack.c.l.b16 %v3984
        %v4017 = vunpack.c.l.b16 %v3985
        %v4018 = vunpack.c.l.b16 %v3986
        %v4019 = vunpack.c.l.b16 %v3987
        %v4020 = vunpack.c.l.b16 %v3988
        %v4021 = vunpack.c.l.b16 %v3989
        %v4022 = vunpack.c.l.b16 %v3990
        %v4023 = vunpack.c.l.b16 %v3991
        %v4024 = vpack.c.b16 %v4009, %v4008
        %v4025 = vpack.c.b16 %v4011, %v4010
        %v4026 = vpack.c.b16 %v4013, %v4012
        %v4027 = vpack.c.b16 %v4015, %v4014
        %v4028 = vpack.c.b16 %v4017, %v4016
        %v4029 = vpack.c.b16 %v4019, %v4018
        %v4030 = vpack.c.b16 %v4021, %v4020
        %v4031 = vpack.c.b16 %v4023, %v4022
        %4040 = vmatprep.subr.bf16.mxu0 0
        %4041 = vmatpush1.bf16.msra.mxu0 %v4031
        %4042 = vmatprep.subr.bf16.mxu0 0
        %4043 = vmatpush1.bf16.msra.mxu0 %v4030
        %4044 = vmatprep.subr.bf16.mxu0 0
        %4045 = vmatpush1.bf16.msra.mxu0 %v4029
        %4046 = vmatprep.subr.bf16.mxu0 0
        %4047 = vmatpush1.bf16.msra.mxu0 %v4028
        %4048 = vmatprep.subr.bf16.mxu0 0
        %4049 = vmatpush1.bf16.msra.mxu0 %v4027
        %4050 = vmatprep.subr.bf16.mxu0 0
        %4051 = vmatpush1.bf16.msra.mxu0 %v4026
        %4052 = vmatprep.subr.bf16.mxu0 0
        %4053 = vmatpush1.bf16.msra.mxu0 %v4025
        %4054 = vmatprep.subr.bf16.mxu0 0
        %4055 = vmatpush1.bf16.msra.mxu0 %v4024
        %4056 = vmatprep.subr.bf16.mxu0 0
        %4057 = vmatpush2.bf16.msra.mxu0 0
        %4058 = vmatprep.subr.bf16.mxu0 0
        %4059 = vmatpush2.bf16.msra.mxu0 0
        %4060 = vmatprep.subr.bf16.mxu0 0
        %4061 = vmatpush2.bf16.msra.mxu0 0
        %4062 = vmatprep.subr.bf16.mxu0 0
        %4063 = vmatpush2.bf16.msra.mxu0 0
        %4064 = vmatprep.subr.bf16.mxu0 0
        %4065 = vmatpush2.bf16.msra.mxu0 0
        %4066 = vmatprep.subr.bf16.mxu0 0
        %4067 = vmatpush2.bf16.msra.mxu0 0
        %4068 = vmatprep.subr.bf16.mxu0 0
        %4069 = vmatpush2.bf16.msra.mxu0 0
        %4070 = vmatprep.subr.bf16.mxu0 0
        %4071 = vmatpush2.bf16.msra.mxu0 0
        %4072 = vmatprep.mubr.bf16.mxu0 0
        %4073 = vmatmul.mubr.bf16.gmra.mxu0 %v3974
        %v4074 = vpop.f32.mrf.mxu0
        %v4075 = vadd.f32 0.0, %v4074
        %v4076 = vpop.f32.mrf.mxu0
        %v4077 = vpop.f32.mrf.mxu0
        %v4078 = vpop.f32.mrf.mxu0
        %4079 = vdwg.mxu0
        %v4080 = vadd.f32 %v3864, %v4075
        %s4081 = scalar_lea.vmem %s14, 1
        %v4082 = vld [vmem:[%s4081] sm:$0x1]
        %v4084 = vlaneseq
        %v4085 = vshrl.u32 %v4084, 7
        %v4086 = vsub.s32 0, %v4085
        %v4087 = vrot.slane %v4082, %v4086
        %v4089 = vadd.f32 %v4080, %v4087
        %v4090 = vld [vmem:[%s15] sm:$0x1]
        %v4091 = vld [vmem:[%s16] sm:$0x1]
        %v4092 = vsel %vm780, %v4089, 0.0
        %4093 = vadd.xlane.f32.xlu0 %v4092
        %v4094 = vpop.xlane.xlu0 %4093
        %v4095 = vmul.f32 %v4094, %v784
        %v4096 = vsub.f32 %v4089, %v4095
        %v4097 = vmul.f32 %v4096, %v4096
        %v4098 = vsel %vm780, %v4097, 0.0
        %4099 = vadd.xlane.f32.xlu0 %v4098
        %v4100 = vpop.xlane.xlu0 %4099
        %v4101 = vmul.f32 %v4100, %v784
        %v4102 = vadd.f32 %v4101, 1e-05
        %v4103 = vrsqrt.pop %v4102
        %v4104 = vmul.f32 %v4096, %v4103
        %v4106 = vlaneseq
        %v4107 = vshrl.u32 %v4106, 7
        %v4108 = vsub.s32 0, %v4107
        %v4109 = vrot.slane %v4090, %v4108
        %v4111 = vmul.f32 %v4104, %v4109
        %v4113 = vlaneseq
        %v4114 = vshrl.u32 %v4113, 7
        %v4115 = vsub.s32 0, %v4114
        %v4116 = vrot.slane %v4091, %v4115
        %v4118 = vadd.f32 %v4111, %v4116
        %v4119 = vpack.c.bf16 %v4118, %v4118
        %v4120 = vld [vmem:[%s17] sm:$0xff]
        %v4121 = vld [vmem:[%s17 + $0x8] sm:$0xff]
        %v4122 = vld [vmem:[%s17 + $0x10] sm:$0xff]
        %v4123 = vld [vmem:[%s17 + $0x18] sm:$0xff]
        %v4124 = vld [vmem:[%s17 + $0x20] sm:$0xff]
        %v4125 = vld [vmem:[%s17 + $0x28] sm:$0xff]
        %v4126 = vld [vmem:[%s17 + $0x30] sm:$0xff]
        %v4127 = vld [vmem:[%s17 + $0x38] sm:$0xff]
        %v4136 = vunpack.c.l.b16 %v4120
        %v4137 = vunpack.c.h.b16 %v4120
        %v4138 = vunpack.c.l.b16 %v4121
        %v4139 = vunpack.c.h.b16 %v4121
        %v4140 = vunpack.c.l.b16 %v4122
        %v4141 = vunpack.c.h.b16 %v4122
        %v4142 = vunpack.c.l.b16 %v4123
        %v4143 = vunpack.c.h.b16 %v4123
        %v4144 = vunpack.c.l.b16 %v4124
        %v4145 = vunpack.c.h.b16 %v4124
        %v4146 = vunpack.c.l.b16 %v4125
        %v4147 = vunpack.c.h.b16 %v4125
        %v4148 = vunpack.c.l.b16 %v4126
        %v4149 = vunpack.c.h.b16 %v4126
        %v4150 = vunpack.c.l.b16 %v4127
        %v4151 = vunpack.c.h.b16 %v4127
        %v4152 = vpack.c.b16 %v4140, %v4136
        %v4153 = vpack.c.b16 %v4141, %v4137
        %v4154 = vpack.c.b16 %v4142, %v4138
        %v4155 = vpack.c.b16 %v4143, %v4139
        %v4156 = vpack.c.b16 %v4148, %v4144
        %v4157 = vpack.c.b16 %v4149, %v4145
        %v4158 = vpack.c.b16 %v4150, %v4146
        %v4159 = vpack.c.b16 %v4151, %v4147
        %v4169 = vsel %vm780, %v4119, 0
        %4171 = vmatprep.subr.bf16.mxu0 0
        %4172 = vmatpush1.bf16.msra.mxu0 0
        %4173 = vmatprep.subr.bf16.mxu0 0
        %4174 = vmatpush1.bf16.msra.mxu0 0
        %4175 = vmatprep.subr.bf16.mxu0 0
        %4176 = vmatpush1.bf16.msra.mxu0 0
        %4177 = vmatprep.subr.bf16.mxu0 0
        %4178 = vmatpush1.bf16.msra.mxu0 0
        %4179 = vmatprep.subr.bf16.mxu0 0
        %4180 = vmatpush1.bf16.msra.mxu0 0
        %4181 = vmatprep.subr.bf16.mxu0 0
        %4182 = vmatpush1.bf16.msra.mxu0 0
        %4183 = vmatprep.subr.bf16.mxu0 %v4157
        %4184 = vmatpush1.bf16.msra.mxu0 %v4156
        %4185 = vmatprep.subr.bf16.mxu0 %v4153
        %4186 = vmatpush1.bf16.msra.mxu0 %v4152
        %4187 = vmatprep.subr.bf16.mxu0 0
        %4188 = vmatpush2.bf16.msra.mxu0 0
        %4189 = vmatprep.subr.bf16.mxu0 0
        %4190 = vmatpush2.bf16.msra.mxu0 0
        %4191 = vmatprep.subr.bf16.mxu0 0
        %4192 = vmatpush2.bf16.msra.mxu0 0
        %4193 = vmatprep.subr.bf16.mxu0 0
        %4194 = vmatpush2.bf16.msra.mxu0 0
        %4195 = vmatprep.subr.bf16.mxu0 0
        %4196 = vmatpush2.bf16.msra.mxu0 0
        %4197 = vmatprep.subr.bf16.mxu0 0
        %4198 = vmatpush2.bf16.msra.mxu0 0
        %4199 = vmatprep.subr.bf16.mxu0 0
        %4200 = vmatpush2.bf16.msra.mxu0 0
        %4201 = vmatprep.subr.bf16.mxu0 0
        %4202 = vmatpush2.bf16.msra.mxu0 0
        %4203 = vmatprep.mubr.bf16.mxu0 0
        %4204 = vmatmul.mubr.bf16.gmra.mxu0 %v4169
        %v4205 = vpop.f32.mrf.mxu0
        %v4206 = vadd.f32 0.0, %v4205
        %v4207 = vpop.f32.mrf.mxu0
        %v4208 = vadd.f32 0.0, %v4207
        %v4209 = vpop.f32.mrf.mxu0
        %v4210 = vpop.f32.mrf.mxu0
        %4211 = vdwg.mxu0
        %4212 = vmatprep.subr.bf16.mxu0 0
        %4213 = vmatpush1.bf16.msra.mxu0 0
        %4214 = vmatprep.subr.bf16.mxu0 0
        %4215 = vmatpush1.bf16.msra.mxu0 0
        %4216 = vmatprep.subr.bf16.mxu0 0
        %4217 = vmatpush1.bf16.msra.mxu0 0
        %4218 = vmatprep.subr.bf16.mxu0 0
        %4219 = vmatpush1.bf16.msra.mxu0 0
        %4220 = vmatprep.subr.bf16.mxu0 0
        %4221 = vmatpush1.bf16.msra.mxu0 0
        %4222 = vmatprep.subr.bf16.mxu0 0
        %4223 = vmatpush1.bf16.msra.mxu0 0
        %4224 = vmatprep.subr.bf16.mxu0 %v4159
        %4225 = vmatpush1.bf16.msra.mxu0 %v4158
        %4226 = vmatprep.subr.bf16.mxu0 %v4155
        %4227 = vmatpush1.bf16.msra.mxu0 %v4154
        %4228 = vmatprep.subr.bf16.mxu0 0
        %4229 = vmatpush2.bf16.msra.mxu0 0
        %4230 = vmatprep.subr.bf16.mxu0 0
        %4231 = vmatpush2.bf16.msra.mxu0 0
        %4232 = vmatprep.subr.bf16.mxu0 0
        %4233 = vmatpush2.bf16.msra.mxu0 0
        %4234 = vmatprep.subr.bf16.mxu0 0
        %4235 = vmatpush2.bf16.msra.mxu0 0
        %4236 = vmatprep.subr.bf16.mxu0 0
        %4237 = vmatpush2.bf16.msra.mxu0 0
        %4238 = vmatprep.subr.bf16.mxu0 0
        %4239 = vmatpush2.bf16.msra.mxu0 0
        %4240 = vmatprep.subr.bf16.mxu0 0
        %4241 = vmatpush2.bf16.msra.mxu0 0
        %4242 = vmatprep.subr.bf16.mxu0 0
        %4243 = vmatpush2.bf16.msra.mxu0 0
        %4244 = vmatprep.mubr.bf16.mxu0 0
        %4245 = vmatmul.mubr.bf16.gmra.mxu0 %v4169
        %v4246 = vpop.f32.mrf.mxu0
        %v4247 = vadd.f32 0.0, %v4246
        %v4248 = vpop.f32.mrf.mxu0
        %v4249 = vadd.f32 0.0, %v4248
        %v4250 = vpop.f32.mrf.mxu0
        %v4251 = vpop.f32.mrf.mxu0
        %4252 = vdwg.mxu0
        %4253 = vst [vmem:[%s566] sm:$0xff] %v4206
        %4254 = vst [vmem:[%s566 + $0x8] sm:$0xff] %v4208
        %4255 = vst [vmem:[%s566 + $0x10] sm:$0xff] %v4247
        %4256 = vst [vmem:[%s566 + $0x18] sm:$0xff] %v4249
        %s4257 = sand.u32 %s423, 1
        %s4258 = scalar_lea.sflag [#allocation3], %s4257
        %s4259 = sand.u32 %s423, 1
        %s4260 = smul.addr %s4259, 32
        %s4261 = scalar_lea.vmem [#allocation2], %s4260
        // Predicated region
        $region93: #{gpt2_forward.1} parent=91 // pred_check
          %p4262 = pneg %p433
        $region94: #{gpt2_forward.1} parent=91 // pred_check_branch
          %4264 = sbr.rel (%p4262) target = $region96
        $region95: #{gpt2_forward.1} parent=91 // pred_region
          %s4266 = ssub.s32 512, 512
          %4267 = vsyncadd %s4258, %s4266
          %s4268 = smul.addr %s32, 4
          %s4269 = smul.addr %s4268, 128
          %s4270 = scalar_lea.hbm %s18, %s4269
          %s4272 = sshll.u32 %s4261, 4
          %s4273 = int_to_ptr.vmem [resolvable:$true] %s4272
          %4275 = dma.vmem_to_hbm [thread:$0]  %s4273, 512, %s4270, %s4258
        $region96: #{gpt2_forward.1} parent=91 // pred_fallthru
          _
      $region92: #{gpt2_forward.1} parent=5 // pred_fallthru
        _
      %p4276 = scmp.le.s32.totalorder 2, %s27
      // Predicated region
      $region97: #{gpt2_forward.1} parent=5 // pred_check
        %p4277 = pneg %p4276
      $region98: #{gpt2_forward.1} parent=5 // pred_check_branch
        %4279 = sbr.rel (%p4277) target = $region100
      $region99: #{gpt2_forward.1} parent=5 // pred_region
        %s4280 = ssub.s32 %s27, 2
        // Predicated region
        $region101: #{gpt2_forward.1} parent=99 // pred_check
          %p4281 = pneg %p439
        $region102: #{gpt2_forward.1} parent=99 // pred_check_branch
          %4283 = sbr.rel (%p4281) target = $region104
        $region103: #{gpt2_forward.1} parent=99 // pred_region
          %s4284 = sand.u32 %s424, 1
          %s4285 = scalar_lea.sflag [#allocation3], %s4284
          %s4286 = sand.u32 %s424, 1
          %s4287 = smul.addr %s4286, 32
          %s4288 = scalar_lea.vmem [#allocation2], %s4287
          %4289 = dma.done %s4285, 512
        $region104: #{gpt2_forward.1} parent=99 // pred_fallthru
          _
      $region100: #{gpt2_forward.1} parent=5 // pred_fallthru
        _
    $region6: #{gpt2_forward.1} parent=1 // loop_footer
      %s31 = sadd.s32 1, %s27
    $region7: #{gpt2_forward.1} parent=1 // loop_footer_branch
      %26 = sbr.rel target = $region3
    $region8: #{gpt2_forward.1} parent=1 // loop_exit
      _
    %4290 = vsyncpa [#allocation3], 1
    %s4291 = scalar_lea.sflag [#allocation3], 1
    %4292 = vsyncpa %s4291, 1

</llo_original>
